<compile_context>
chip_gen: v7x
topology: tpu7x:2x2x1
jax: 0.10.0
libtpu: 0.0.40
codegen_flags: <defaults>
</compile_context>

<pallas_src>
import functools

import jax
import jax.numpy as jnp
import numpy as np
from jax.experimental import pallas as pl
from jax.experimental.pallas import tpu as pltpu


# ---------------------------------------------------------------------------
# Fused Pallas kernel (all LSTM layers + Linear head)
# ---------------------------------------------------------------------------
def _make_fused_kernel(num_layers, S, B, H):
    """refs = [x_flat, (w_ih_t, w_hh_t, b) * L, h0, c0, fc_w_t, fc_b, pred]."""

    def kernel(*refs):
        x_ref = refs[0]
        p = 1
        layer_refs = []
        for _ in range(num_layers):
            layer_refs.append((refs[p], refs[p + 1], refs[p + 2]))
            p += 3
        h0_ref, c0_ref, fcw_ref, fcb_ref, pred_ref = refs[p:p + 5]

        # Load all (tiny) weights/biases once, outside the time loop.
        wih = [r[0][...] for r in layer_refs]      # (D_in, 4H) each, g-cols *2
        whh = [r[1][...] for r in layer_refs]      # (H,    4H) each, g-cols *2
        bias = [r[2][...] for r in layer_refs]     # (1,    4H) each, g-cols *2

        # Hoisted layer-0 input projection + bias for the whole sequence:
        # one well-shaped MXU matmul instead of S per-step ones.
        gx0 = jnp.dot(x_ref[...].astype(jnp.float32), wih[0],
                      preferred_element_type=jnp.float32) + bias[0]   # (S*B,4H)

        h = [h0_ref[l].astype(jnp.float32) for l in range(num_layers)]  # (B,H)
        c = [c0_ref[l].astype(jnp.float32) for l in range(num_layers)]  # (B,H)

        def cell(gates, c_prev):
            # Single whole-slab EUP pass.  The g-gate columns of `gates` hold
            # 2*z (weights/bias pre-scaled in the wrapper), so
            # tanh(z) == 2*sigmoid(2z) - 1 — one cheap VPU FMA, no tanh slab.
            sg = jax.nn.sigmoid(gates)
            i_g = sg[:, 0 * H:1 * H]
            f_g = sg[:, 1 * H:2 * H]
            g_g = 2.0 * sg[:, 2 * H:3 * H] - 1.0
            o_g = sg[:, 3 * H:4 * H]
            c_new = f_g * c_prev + i_g * g_g
            h_new = o_g * jnp.tanh(c_new)
            return h_new, c_new

        # Wavefront over time: at step t run layer 0, then every upper layer
        # for the same t (which depends only on layer l-1's step t and layer
        # l's step t-1) — upper-layer work overlaps with layer 0's step t+1.
        for t in range(S):                          # static, fully unrolled
            gates0 = gx0[t * B:(t + 1) * B, :] + jnp.dot(
                h[0], whh[0], preferred_element_type=jnp.float32)      # (B,4H)
            h[0], c[0] = cell(gates0, c[0])
            for l in range(1, num_layers):
                gates = (jnp.dot(h[l - 1], wih[l],
                                 preferred_element_type=jnp.float32)
                         + jnp.dot(h[l], whh[l],
                                   preferred_element_type=jnp.float32)
                         + bias[l])                                    # (B,4H)
                h[l], c[l] = cell(gates, c[l])

        # Linear head applied to the last timestep only (== pred[:, -1, :]).
        pred_ref[...] = (
            jnp.dot(h[num_layers - 1], fcw_ref[...],
                    preferred_element_type=jnp.float32)
            + fcb_ref[...]
        ).astype(pred_ref.dtype)

    return kernel


# ---------------------------------------------------------------------------
# Wrapper
# ---------------------------------------------------------------------------
@functools.partial(jax.jit, static_argnames=("num_layers",))
def lstm_forward(x, lstm_params, fc_w, fc_b, h0_all, c0_all, *, num_layers):
    """pred = Linear(LSTM(x)[:, -1, :]);  x: (B, S, input_size), batch_first."""
    B, S, D = x.shape
    H = h0_all.shape[-1]
    O = fc_w.shape[0]

    # Pad batch to a full sublane group (multiple of 8) -> no masked vld/vst.
    B_pad = ((B + 7) // 8) * 8
    pad = B_pad - B
    if pad:
        x = jnp.pad(x, ((0, pad), (0, 0), (0, 0)))
        h0_all = jnp.pad(h0_all, ((0, 0), (0, pad), (0, 0)))
        c0_all = jnp.pad(c0_all, ((0, 0), (0, pad), (0, 0)))

    # Time-major, flattened to (S*B_pad, D) so the kernel only does 2D,
    # sublane-aligned static slicing.
    x_flat = jnp.transpose(x, (1, 0, 2)).reshape(S * B_pad, D)

    # Pre-scale the g-gate pre-activation (columns 2H:3H of the transposed
    # weights and the bias) by 2: the kernel then needs only sigmoid(gates)
    # and recovers tanh(z) = 2*sigmoid(2z) - 1 exactly.
    gate_scale = jnp.concatenate(
        [jnp.ones((1, 2 * H), jnp.float32),
         jnp.full((1, H), 2.0, jnp.float32),
         jnp.ones((1, H), jnp.float32)], axis=1)                 # (1, 4H)

    args = [x_flat]
    in_specs = [pl.BlockSpec((S * B_pad, D), lambda i: (0, 0))]
    for l in range(num_layers):
        w_ih, w_hh, b = lstm_params[l]
        d_in = w_ih.shape[1]
        # Pre-transpose once (lane-dense 4H) + fold the g-gate 2x scale in.
        args += [w_ih.T * gate_scale, w_hh.T * gate_scale, b * gate_scale]
        in_specs += [
            pl.BlockSpec((d_in, 4 * H), lambda i: (0, 0)),
            pl.BlockSpec((H, 4 * H), lambda i: (0, 0)),
            pl.BlockSpec((1, 4 * H), lambda i: (0, 0)),
        ]
    args += [h0_all, c0_all, fc_w.T, fc_b.reshape(1, O)]
    in_specs += [
        pl.BlockSpec((num_layers, B_pad, H), lambda i: (0, 0, 0)),
        pl.BlockSpec((num_layers, B_pad, H), lambda i: (0, 0, 0)),
        pl.BlockSpec((H, O), lambda i: (0, 0)),
        pl.BlockSpec((1, O), lambda i: (0, 0)),
    ]

    # Note: for real batch sizes (B_pad >= 16) a leading "parallel" batch grid
    # axis would use v7x's second TensorCore; at B_pad=8 it is a no-op.
    pred = pl.pallas_call(
        _make_fused_kernel(num_layers, S, B_pad, H),
        out_shape=jax.ShapeDtypeStruct((B_pad, O), jnp.float32),
        grid=(1,),
        in_specs=in_specs,
        out_specs=pl.BlockSpec((B_pad, O), lambda i: (0, 0)),
        compiler_params=pltpu.CompilerParams(
            dimension_semantics=("arbitrary",),
            vmem_limit_bytes=32 * 1024 * 1024),
    )(*args)
    return pred[:B]


# ---------------------------------------------------------------------------
# Pure-JAX reference (semantics check, standard LSTM math)
# ---------------------------------------------------------------------------
def ref_forward(x, lstm_params, fc_w, fc_b, h0_all, c0_all, num_layers):
    inp = x
    for l in range(num_layers):
        w_ih, w_hh, b = lstm_params[l]

        def step(carry, x_t):
            h, c = carry
            gates = x_t @ w_ih.T + h @ w_hh.T + b[0]
            i, f, g, o = jnp.split(gates, 4, axis=-1)
            i, f, o = jax.nn.sigmoid(i), jax.nn.sigmoid(f), jax.nn.sigmoid(o)
            g = jnp.tanh(g)
            c = f * c + i * g
            h = o * jnp.tanh(c)
            return (h, c), h

        (_, _), hs = jax.lax.scan(step, (h0_all[l], c0_all[l]),
                                  jnp.transpose(inp, (1, 0, 2)))
        inp = jnp.transpose(hs, (1, 0, 2))
    return inp[:, -1, :] @ fc_w.T + fc_b


# ---------------------------------------------------------------------------
if __name__ == "__main__":
    input_size, hidden_size, num_layers = 4, 32, 2
    output_size, batch_size, seq_len = 1, 4, 8

    key = jax.random.PRNGKey(0)
    keys = jax.random.split(key, 4 * num_layers + 5)
    k = 1.0 / np.sqrt(hidden_size)

    # Deterministic parameter init (matches nn.LSTM / nn.Linear shapes).
    lstm_params = []
    for l in range(num_layers):
        d_in = input_size if l == 0 else hidden_size
        w_ih = jax.random.uniform(keys[4 * l + 0], (4 * hidden_size, d_in),
                                  jnp.float32, -k, k)
        w_hh = jax.random.uniform(keys[4 * l + 1], (4 * hidden_size, hidden_size),
                                  jnp.float32, -k, k)
        b_ih = jax.random.uniform(keys[4 * l + 2], (4 * hidden_size,),
                                  jnp.float32, -k, k)
        b_hh = jax.random.uniform(keys[4 * l + 3], (4 * hidden_size,),
                                  jnp.float32, -k, k)
        lstm_params.append((w_ih, w_hh, (b_ih + b_hh).reshape(1, 4 * hidden_size)))
    lstm_params = tuple(lstm_params)

    fc_w = jax.random.uniform(keys[-5], (output_size, hidden_size),
                              jnp.float32, -k, k)
    fc_b = jax.random.uniform(keys[-4], (output_size,), jnp.float32, -k, k)

    # h_0 / c_0 are torch.randn in the reference forward -> deterministic
    # normal draws here (generated outside the kernel, passed in).
    h0_all = jax.random.normal(keys[-3], (num_layers, batch_size, hidden_size),
                               jnp.float32)
    c0_all = jax.random.normal(keys[-2], (num_layers, batch_size, hidden_size),
                               jnp.float32)

    x = jax.random.normal(keys[-1], (batch_size, seq_len, input_size), jnp.float32)

    pred = lstm_forward(x, lstm_params, fc_w, fc_b, h0_all, c0_all,
                        num_layers=num_layers)
    jax.block_until_ready(pred)

    expected = ref_forward(x, lstm_params, fc_w, fc_b, h0_all, c0_all, num_layers)
    # Slightly relaxed vs. before: the kernel evaluates the g-gate via the
    # exact identity tanh(z) = 2*sigmoid(2z) - 1, so only the EUP sigmoid-vs-
    # tanh approximation paths differ (last-bit level).
    np.testing.assert_allclose(np.asarray(pred), np.asarray(expected),
                               rtol=2e-4, atol=2e-5)
    assert pred.shape == (batch_size, output_size)
    print("KERNEL_OK")
</pallas_src>

<mosaic_0001>
module attributes {stable_mosaic.version = 11 : i64} {
  func.func @kernel(%arg0: i32, %arg1: memref<64x4xf32, #tpu.memory_space<vmem>>, %arg2: memref<4x128xf32, #tpu.memory_space<vmem>>, %arg3: memref<32x128xf32, #tpu.memory_space<vmem>>, %arg4: memref<1x128xf32, #tpu.memory_space<vmem>>, %arg5: memref<32x128xf32, #tpu.memory_space<vmem>>, %arg6: memref<32x128xf32, #tpu.memory_space<vmem>>, %arg7: memref<1x128xf32, #tpu.memory_space<vmem>>, %arg8: memref<2x8x32xf32, #tpu.memory_space<vmem>>, %arg9: memref<2x8x32xf32, #tpu.memory_space<vmem>>, %arg10: memref<32x1xf32, #tpu.memory_space<vmem>>, %arg11: memref<1x1xf32, #tpu.memory_space<vmem>>, %arg12: memref<8x1xf32, #tpu.memory_space<vmem>>) attributes {dimension_semantics = [#tpu.dimension_semantics<arbitrary>], iteration_bounds = array<i64: 1>, scalar_prefetch = 0 : i64, scratch_operands = 0 : i64, tpu.core_type = #tpu.core_type<tc>, window_params = [{pipeline_mode = #tpu.pipeline_mode<synchronous>, transform_indices = @transform_0, window_bounds = array<i64: 64, 4>}, {pipeline_mode = #tpu.pipeline_mode<synchronous>, transform_indices = @transform_1, window_bounds = array<i64: 4, 128>}, {pipeline_mode = #tpu.pipeline_mode<synchronous>, transform_indices = @transform_2, window_bounds = array<i64: 32, 128>}, {pipeline_mode = #tpu.pipeline_mode<synchronous>, transform_indices = @transform_3, window_bounds = array<i64: 1, 128>}, {pipeline_mode = #tpu.pipeline_mode<synchronous>, transform_indices = @transform_4, window_bounds = array<i64: 32, 128>}, {pipeline_mode = #tpu.pipeline_mode<synchronous>, transform_indices = @transform_5, window_bounds = array<i64: 32, 128>}, {pipeline_mode = #tpu.pipeline_mode<synchronous>, transform_indices = @transform_6, window_bounds = array<i64: 1, 128>}, {pipeline_mode = #tpu.pipeline_mode<synchronous>, transform_indices = @transform_7, window_bounds = array<i64: 2, 8, 32>}, {pipeline_mode = #tpu.pipeline_mode<synchronous>, transform_indices = @transform_8, window_bounds = array<i64: 2, 8, 32>}, {pipeline_mode = #tpu.pipeline_mode<synchronous>, transform_indices = @transform_9, window_bounds = array<i64: 32, 1>}, {pipeline_mode = #tpu.pipeline_mode<synchronous>, transform_indices = @transform_10, window_bounds = array<i64: 1, 1>}, {pipeline_mode = #tpu.pipeline_mode<synchronous>, transform_indices = @transform_11, window_bounds = array<i64: 8, 1>}]} {
    %c0 = arith.constant 0 : index
    %c0_0 = arith.constant 0 : index
    %0 = vector.load %arg2[%c0, %c0_0] : memref<4x128xf32, #tpu.memory_space<vmem>>, vector<4x128xf32>
    %c0_1 = arith.constant 0 : index
    %c0_2 = arith.constant 0 : index
    %1 = vector.load %arg5[%c0_1, %c0_2] : memref<32x128xf32, #tpu.memory_space<vmem>>, vector<32x128xf32>
    %c0_3 = arith.constant 0 : index
    %c0_4 = arith.constant 0 : index
    %2 = vector.load %arg3[%c0_3, %c0_4] : memref<32x128xf32, #tpu.memory_space<vmem>>, vector<32x128xf32>
    %c0_5 = arith.constant 0 : index
    %c0_6 = arith.constant 0 : index
    %3 = vector.load %arg6[%c0_5, %c0_6] : memref<32x128xf32, #tpu.memory_space<vmem>>, vector<32x128xf32>
    %c0_7 = arith.constant 0 : index
    %c0_8 = arith.constant 0 : index
    %4 = vector.load %arg4[%c0_7, %c0_8] : memref<1x128xf32, #tpu.memory_space<vmem>>, vector<1x128xf32>
    %c0_9 = arith.constant 0 : index
    %c0_10 = arith.constant 0 : index
    %5 = vector.load %arg7[%c0_9, %c0_10] : memref<1x128xf32, #tpu.memory_space<vmem>>, vector<1x128xf32>
    %c0_11 = arith.constant 0 : index
    %c0_12 = arith.constant 0 : index
    %6 = vector.load %arg1[%c0_11, %c0_12] : memref<64x4xf32, #tpu.memory_space<vmem>>, vector<64x4xf32>
    %cst = arith.constant dense<0.000000e+00> : vector<64x128xf32>
    %7 = tpu.matmul %6, %0, %cst {dimension_numbers = #tpu.dot_dimension_numbers<[1], [0], [0], [1], [0, 0, 1, 1], [], []>} : vector<64x4xf32>, vector<4x128xf32>, vector<64x128xf32> -> vector<64x128xf32>
    %8 = vector.broadcast %4 : vector<1x128xf32> to vector<64x128xf32>
    %9 = arith.addf %7, %8 : vector<64x128xf32>
    %c0_13 = arith.constant 0 : index
    %c0_14 = arith.constant 0 : index
    %c0_15 = arith.constant 0 : index
    %10 = vector.load %arg8[%c0_13, %c0_14, %c0_15] : memref<2x8x32xf32, #tpu.memory_space<vmem>>, vector<1x8x32xf32>
    %11 = vector.shape_cast %10 : vector<1x8x32xf32> to vector<8x32xf32>
    %c1 = arith.constant 1 : index
    %c0_16 = arith.constant 0 : index
    %c0_17 = arith.constant 0 : index
    %12 = vector.load %arg8[%c1, %c0_16, %c0_17] : memref<2x8x32xf32, #tpu.memory_space<vmem>>, vector<1x8x32xf32>
    %13 = vector.shape_cast %12 : vector<1x8x32xf32> to vector<8x32xf32>
    %c0_18 = arith.constant 0 : index
    %c0_19 = arith.constant 0 : index
    %c0_20 = arith.constant 0 : index
    %14 = vector.load %arg9[%c0_18, %c0_19, %c0_20] : memref<2x8x32xf32, #tpu.memory_space<vmem>>, vector<1x8x32xf32>
    %15 = vector.shape_cast %14 : vector<1x8x32xf32> to vector<8x32xf32>
    %c1_21 = arith.constant 1 : index
    %c0_22 = arith.constant 0 : index
    %c0_23 = arith.constant 0 : index
    %16 = vector.load %arg9[%c1_21, %c0_22, %c0_23] : memref<2x8x32xf32, #tpu.memory_space<vmem>>, vector<1x8x32xf32>
    %17 = vector.shape_cast %16 : vector<1x8x32xf32> to vector<8x32xf32>
    %18 = vector.extract_strided_slice %9 {offsets = [0, 0], sizes = [8, 128], strides = [1, 1]} : vector<64x128xf32> to vector<8x128xf32>
    %cst_24 = arith.constant dense<0.000000e+00> : vector<8x128xf32>
    %19 = tpu.matmul %11, %2, %cst_24 {dimension_numbers = #tpu.dot_dimension_numbers<[1], [0], [0], [1], [0, 0, 1, 1], [], []>} : vector<8x32xf32>, vector<32x128xf32>, vector<8x128xf32> -> vector<8x128xf32>
    %20 = arith.addf %18, %19 : vector<8x128xf32>
    %21 = arith.negf %20 : vector<8x128xf32>
    %22 = math.exp %21 : vector<8x128xf32>
    %cst_25 = arith.constant 1.000000e+00 : f32
    %23 = vector.broadcast %cst_25 : f32 to vector<8x128xf32>
    %24 = arith.addf %23, %22 : vector<8x128xf32>
    %25 = arith.divf %23, %24 : vector<8x128xf32>
    %26 = vector.extract_strided_slice %25 {offsets = [0, 0], sizes = [8, 32], strides = [1, 1]} : vector<8x128xf32> to vector<8x32xf32>
    %27 = vector.extract_strided_slice %25 {offsets = [0, 32], sizes = [8, 32], strides = [1, 1]} : vector<8x128xf32> to vector<8x32xf32>
    %28 = vector.extract_strided_slice %25 {offsets = [0, 64], sizes = [8, 32], strides = [1, 1]} : vector<8x128xf32> to vector<8x32xf32>
    %cst_26 = arith.constant 2.000000e+00 : f32
    %29 = vector.broadcast %cst_26 : f32 to vector<8x32xf32>
    %30 = arith.mulf %29, %28 : vector<8x32xf32>
    %cst_27 = arith.constant 1.000000e+00 : f32
    %31 = vector.broadcast %cst_27 : f32 to vector<8x32xf32>
    %32 = arith.subf %30, %31 : vector<8x32xf32>
    %33 = vector.extract_strided_slice %25 {offsets = [0, 96], sizes = [8, 32], strides = [1, 1]} : vector<8x128xf32> to vector<8x32xf32>
    %34 = arith.mulf %27, %15 : vector<8x32xf32>
    %35 = arith.mulf %26, %32 : vector<8x32xf32>
    %36 = arith.addf %34, %35 : vector<8x32xf32>
    %37 = math.tanh %36 : vector<8x32xf32>
    %38 = arith.mulf %33, %37 : vector<8x32xf32>
    %cst_28 = arith.constant dense<0.000000e+00> : vector<8x128xf32>
    %39 = tpu.matmul %38, %1, %cst_28 {dimension_numbers = #tpu.dot_dimension_numbers<[1], [0], [0], [1], [0, 0, 1, 1], [], []>} : vector<8x32xf32>, vector<32x128xf32>, vector<8x128xf32> -> vector<8x128xf32>
    %cst_29 = arith.constant dense<0.000000e+00> : vector<8x128xf32>
    %40 = tpu.matmul %13, %3, %cst_29 {dimension_numbers = #tpu.dot_dimension_numbers<[1], [0], [0], [1], [0, 0, 1, 1], [], []>} : vector<8x32xf32>, vector<32x128xf32>, vector<8x128xf32> -> vector<8x128xf32>
    %41 = arith.addf %39, %40 : vector<8x128xf32>
    %42 = vector.broadcast %5 : vector<1x128xf32> to vector<8x128xf32>
    %43 = arith.addf %41, %42 : vector<8x128xf32>
    %44 = arith.negf %43 : vector<8x128xf32>
    %45 = math.exp %44 : vector<8x128xf32>
    %cst_30 = arith.constant 1.000000e+00 : f32
    %46 = vector.broadcast %cst_30 : f32 to vector<8x128xf32>
    %47 = arith.addf %46, %45 : vector<8x128xf32>
    %48 = arith.divf %46, %47 : vector<8x128xf32>
    %49 = vector.extract_strided_slice %48 {offsets = [0, 0], sizes = [8, 32], strides = [1, 1]} : vector<8x128xf32> to vector<8x32xf32>
    %50 = vector.extract_strided_slice %48 {offsets = [0, 32], sizes = [8, 32], strides = [1, 1]} : vector<8x128xf32> to vector<8x32xf32>
    %51 = vector.extract_strided_slice %48 {offsets = [0, 64], sizes = [8, 32], strides = [1, 1]} : vector<8x128xf32> to vector<8x32xf32>
    %cst_31 = arith.constant 2.000000e+00 : f32
    %52 = vector.broadcast %cst_31 : f32 to vector<8x32xf32>
    %53 = arith.mulf %52, %51 : vector<8x32xf32>
    %cst_32 = arith.constant 1.000000e+00 : f32
    %54 = vector.broadcast %cst_32 : f32 to vector<8x32xf32>
    %55 = arith.subf %53, %54 : vector<8x32xf32>
    %56 = vector.extract_strided_slice %48 {offsets = [0, 96], sizes = [8, 32], strides = [1, 1]} : vector<8x128xf32> to vector<8x32xf32>
    %57 = arith.mulf %50, %17 : vector<8x32xf32>
    %58 = arith.mulf %49, %55 : vector<8x32xf32>
    %59 = arith.addf %57, %58 : vector<8x32xf32>
    %60 = math.tanh %59 : vector<8x32xf32>
    %61 = arith.mulf %56, %60 : vector<8x32xf32>
    %62 = vector.extract_strided_slice %9 {offsets = [8, 0], sizes = [8, 128], strides = [1, 1]} : vector<64x128xf32> to vector<8x128xf32>
    %cst_33 = arith.constant dense<0.000000e+00> : vector<8x128xf32>
    %63 = tpu.matmul %38, %2, %cst_33 {dimension_numbers = #tpu.dot_dimension_numbers<[1], [0], [0], [1], [0, 0, 1, 1], [], []>} : vector<8x32xf32>, vector<32x128xf32>, vector<8x128xf32> -> vector<8x128xf32>
    %64 = arith.addf %62, %63 : vector<8x128xf32>
    %65 = arith.negf %64 : vector<8x128xf32>
    %66 = math.exp %65 : vector<8x128xf32>
    %cst_34 = arith.constant 1.000000e+00 : f32
    %67 = vector.broadcast %cst_34 : f32 to vector<8x128xf32>
    %68 = arith.addf %67, %66 : vector<8x128xf32>
    %69 = arith.divf %67, %68 : vector<8x128xf32>
    %70 = vector.extract_strided_slice %69 {offsets = [0, 0], sizes = [8, 32], strides = [1, 1]} : vector<8x128xf32> to vector<8x32xf32>
    %71 = vector.extract_strided_slice %69 {offsets = [0, 32], sizes = [8, 32], strides = [1, 1]} : vector<8x128xf32> to vector<8x32xf32>
    %72 = vector.extract_strided_slice %69 {offsets = [0, 64], sizes = [8, 32], strides = [1, 1]} : vector<8x128xf32> to vector<8x32xf32>
    %cst_35 = arith.constant 2.000000e+00 : f32
    %73 = vector.broadcast %cst_35 : f32 to vector<8x32xf32>
    %74 = arith.mulf %73, %72 : vector<8x32xf32>
    %cst_36 = arith.constant 1.000000e+00 : f32
    %75 = vector.broadcast %cst_36 : f32 to vector<8x32xf32>
    %76 = arith.subf %74, %75 : vector<8x32xf32>
    %77 = vector.extract_strided_slice %69 {offsets = [0, 96], sizes = [8, 32], strides = [1, 1]} : vector<8x128xf32> to vector<8x32xf32>
    %78 = arith.mulf %71, %36 : vector<8x32xf32>
    %79 = arith.mulf %70, %76 : vector<8x32xf32>
    %80 = arith.addf %78, %79 : vector<8x32xf32>
    %81 = math.tanh %80 : vector<8x32xf32>
    %82 = arith.mulf %77, %81 : vector<8x32xf32>
    %cst_37 = arith.constant dense<0.000000e+00> : vector<8x128xf32>
    %83 = tpu.matmul %82, %1, %cst_37 {dimension_numbers = #tpu.dot_dimension_numbers<[1], [0], [0], [1], [0, 0, 1, 1], [], []>} : vector<8x32xf32>, vector<32x128xf32>, vector<8x128xf32> -> vector<8x128xf32>
    %cst_38 = arith.constant dense<0.000000e+00> : vector<8x128xf32>
    %84 = tpu.matmul %61, %3, %cst_38 {dimension_numbers = #tpu.dot_dimension_numbers<[1], [0], [0], [1], [0, 0, 1, 1], [], []>} : vector<8x32xf32>, vector<32x128xf32>, vector<8x128xf32> -> vector<8x128xf32>
    %85 = arith.addf %83, %84 : vector<8x128xf32>
    %86 = vector.broadcast %5 : vector<1x128xf32> to vector<8x128xf32>
    %87 = arith.addf %85, %86 : vector<8x128xf32>
    %88 = arith.negf %87 : vector<8x128xf32>
    %89 = math.exp %88 : vector<8x128xf32>
    %cst_39 = arith.constant 1.000000e+00 : f32
    %90 = vector.broadcast %cst_39 : f32 to vector<8x128xf32>
    %91 = arith.addf %90, %89 : vector<8x128xf32>
    %92 = arith.divf %90, %91 : vector<8x128xf32>
    %93 = vector.extract_strided_slice %92 {offsets = [0, 0], sizes = [8, 32], strides = [1, 1]} : vector<8x128xf32> to vector<8x32xf32>
    %94 = vector.extract_strided_slice %92 {offsets = [0, 32], sizes = [8, 32], strides = [1, 1]} : vector<8x128xf32> to vector<8x32xf32>
    %95 = vector.extract_strided_slice %92 {offsets = [0, 64], sizes = [8, 32], strides = [1, 1]} : vector<8x128xf32> to vector<8x32xf32>
    %cst_40 = arith.constant 2.000000e+00 : f32
    %96 = vector.broadcast %cst_40 : f32 to vector<8x32xf32>
    %97 = arith.mulf %96, %95 : vector<8x32xf32>
    %cst_41 = arith.constant 1.000000e+00 : f32
    %98 = vector.broadcast %cst_41 : f32 to vector<8x32xf32>
    %99 = arith.subf %97, %98 : vector<8x32xf32>
    %100 = vector.extract_strided_slice %92 {offsets = [0, 96], sizes = [8, 32], strides = [1, 1]} : vector<8x128xf32> to vector<8x32xf32>
    %101 = arith.mulf %94, %59 : vector<8x32xf32>
    %102 = arith.mulf %93, %99 : vector<8x32xf32>
    %103 = arith.addf %101, %102 : vector<8x32xf32>
    %104 = math.tanh %103 : vector<8x32xf32>
    %105 = arith.mulf %100, %104 : vector<8x32xf32>
    %106 = vector.extract_strided_slice %9 {offsets = [16, 0], sizes = [8, 128], strides = [1, 1]} : vector<64x128xf32> to vector<8x128xf32>
    %cst_42 = arith.constant dense<0.000000e+00> : vector<8x128xf32>
    %107 = tpu.matmul %82, %2, %cst_42 {dimension_numbers = #tpu.dot_dimension_numbers<[1], [0], [0], [1], [0, 0, 1, 1], [], []>} : vector<8x32xf32>, vector<32x128xf32>, vector<8x128xf32> -> vector<8x128xf32>
    %108 = arith.addf %106, %107 : vector<8x128xf32>
    %109 = arith.negf %108 : vector<8x128xf32>
    %110 = math.exp %109 : vector<8x128xf32>
    %cst_43 = arith.constant 1.000000e+00 : f32
    %111 = vector.broadcast %cst_43 : f32 to vector<8x128xf32>
    %112 = arith.addf %111, %110 : vector<8x128xf32>
    %113 = arith.divf %111, %112 : vector<8x128xf32>
    %114 = vector.extract_strided_slice %113 {offsets = [0, 0], sizes = [8, 32], strides = [1, 1]} : vector<8x128xf32> to vector<8x32xf32>
    %115 = vector.extract_strided_slice %113 {offsets = [0, 32], sizes = [8, 32], strides = [1, 1]} : vector<8x128xf32> to vector<8x32xf32>
    %116 = vector.extract_strided_slice %113 {offsets = [0, 64], sizes = [8, 32], strides = [1, 1]} : vector<8x128xf32> to vector<8x32xf32>
    %cst_44 = arith.constant 2.000000e+00 : f32
    %117 = vector.broadcast %cst_44 : f32 to vector<8x32xf32>
    %118 = arith.mulf %117, %116 : vector<8x32xf32>
    %cst_45 = arith.constant 1.000000e+00 : f32
    %119 = vector.broadcast %cst_45 : f32 to vector<8x32xf32>
    %120 = arith.subf %118, %119 : vector<8x32xf32>
    %121 = vector.extract_strided_slice %113 {offsets = [0, 96], sizes = [8, 32], strides = [1, 1]} : vector<8x128xf32> to vector<8x32xf32>
    %122 = arith.mulf %115, %80 : vector<8x32xf32>
    %123 = arith.mulf %114, %120 : vector<8x32xf32>
    %124 = arith.addf %122, %123 : vector<8x32xf32>
    %125 = math.tanh %124 : vector<8x32xf32>
    %126 = arith.mulf %121, %125 : vector<8x32xf32>
    %cst_46 = arith.constant dense<0.000000e+00> : vector<8x128xf32>
    %127 = tpu.matmul %126, %1, %cst_46 {dimension_numbers = #tpu.dot_dimension_numbers<[1], [0], [0], [1], [0, 0, 1, 1], [], []>} : vector<8x32xf32>, vector<32x128xf32>, vector<8x128xf32> -> vector<8x128xf32>
    %cst_47 = arith.constant dense<0.000000e+00> : vector<8x128xf32>
    %128 = tpu.matmul %105, %3, %cst_47 {dimension_numbers = #tpu.dot_dimension_numbers<[1], [0], [0], [1], [0, 0, 1, 1], [], []>} : vector<8x32xf32>, vector<32x128xf32>, vector<8x128xf32> -> vector<8x128xf32>
    %129 = arith.addf %127, %128 : vector<8x128xf32>
    %130 = vector.broadcast %5 : vector<1x128xf32> to vector<8x128xf32>
    %131 = arith.addf %129, %130 : vector<8x128xf32>
    %132 = arith.negf %131 : vector<8x128xf32>
    %133 = math.exp %132 : vector<8x128xf32>
    %cst_48 = arith.constant 1.000000e+00 : f32
    %134 = vector.broadcast %cst_48 : f32 to vector<8x128xf32>
    %135 = arith.addf %134, %133 : vector<8x128xf32>
    %136 = arith.divf %134, %135 : vector<8x128xf32>
    %137 = vector.extract_strided_slice %136 {offsets = [0, 0], sizes = [8, 32], strides = [1, 1]} : vector<8x128xf32> to vector<8x32xf32>
    %138 = vector.extract_strided_slice %136 {offsets = [0, 32], sizes = [8, 32], strides = [1, 1]} : vector<8x128xf32> to vector<8x32xf32>
    %139 = vector.extract_strided_slice %136 {offsets = [0, 64], sizes = [8, 32], strides = [1, 1]} : vector<8x128xf32> to vector<8x32xf32>
    %cst_49 = arith.constant 2.000000e+00 : f32
    %140 = vector.broadcast %cst_49 : f32 to vector<8x32xf32>
    %141 = arith.mulf %140, %139 : vector<8x32xf32>
    %cst_50 = arith.constant 1.000000e+00 : f32
    %142 = vector.broadcast %cst_50 : f32 to vector<8x32xf32>
    %143 = arith.subf %141, %142 : vector<8x32xf32>
    %144 = vector.extract_strided_slice %136 {offsets = [0, 96], sizes = [8, 32], strides = [1, 1]} : vector<8x128xf32> to vector<8x32xf32>
    %145 = arith.mulf %138, %103 : vector<8x32xf32>
    %146 = arith.mulf %137, %143 : vector<8x32xf32>
    %147 = arith.addf %145, %146 : vector<8x32xf32>
    %148 = math.tanh %147 : vector<8x32xf32>
    %149 = arith.mulf %144, %148 : vector<8x32xf32>
    %150 = vector.extract_strided_slice %9 {offsets = [24, 0], sizes = [8, 128], strides = [1, 1]} : vector<64x128xf32> to vector<8x128xf32>
    %cst_51 = arith.constant dense<0.000000e+00> : vector<8x128xf32>
    %151 = tpu.matmul %126, %2, %cst_51 {dimension_numbers = #tpu.dot_dimension_numbers<[1], [0], [0], [1], [0, 0, 1, 1], [], []>} : vector<8x32xf32>, vector<32x128xf32>, vector<8x128xf32> -> vector<8x128xf32>
    %152 = arith.addf %150, %151 : vector<8x128xf32>
    %153 = arith.negf %152 : vector<8x128xf32>
    %154 = math.exp %153 : vector<8x128xf32>
    %cst_52 = arith.constant 1.000000e+00 : f32
    %155 = vector.broadcast %cst_52 : f32 to vector<8x128xf32>
    %156 = arith.addf %155, %154 : vector<8x128xf32>
    %157 = arith.divf %155, %156 : vector<8x128xf32>
    %158 = vector.extract_strided_slice %157 {offsets = [0, 0], sizes = [8, 32], strides = [1, 1]} : vector<8x128xf32> to vector<8x32xf32>
    %159 = vector.extract_strided_slice %157 {offsets = [0, 32], sizes = [8, 32], strides = [1, 1]} : vector<8x128xf32> to vector<8x32xf32>
    %160 = vector.extract_strided_slice %157 {offsets = [0, 64], sizes = [8, 32], strides = [1, 1]} : vector<8x128xf32> to vector<8x32xf32>
    %cst_53 = arith.constant 2.000000e+00 : f32
    %161 = vector.broadcast %cst_53 : f32 to vector<8x32xf32>
    %162 = arith.mulf %161, %160 : vector<8x32xf32>
    %cst_54 = arith.constant 1.000000e+00 : f32
    %163 = vector.broadcast %cst_54 : f32 to vector<8x32xf32>
    %164 = arith.subf %162, %163 : vector<8x32xf32>
    %165 = vector.extract_strided_slice %157 {offsets = [0, 96], sizes = [8, 32], strides = [1, 1]} : vector<8x128xf32> to vector<8x32xf32>
    %166 = arith.mulf %159, %124 : vector<8x32xf32>
    %167 = arith.mulf %158, %164 : vector<8x32xf32>
    %168 = arith.addf %166, %167 : vector<8x32xf32>
    %169 = math.tanh %168 : vector<8x32xf32>
    %170 = arith.mulf %165, %169 : vector<8x32xf32>
    %cst_55 = arith.constant dense<0.000000e+00> : vector<8x128xf32>
    %171 = tpu.matmul %170, %1, %cst_55 {dimension_numbers = #tpu.dot_dimension_numbers<[1], [0], [0], [1], [0, 0, 1, 1], [], []>} : vector<8x32xf32>, vector<32x128xf32>, vector<8x128xf32> -> vector<8x128xf32>
    %cst_56 = arith.constant dense<0.000000e+00> : vector<8x128xf32>
    %172 = tpu.matmul %149, %3, %cst_56 {dimension_numbers = #tpu.dot_dimension_numbers<[1], [0], [0], [1], [0, 0, 1, 1], [], []>} : vector<8x32xf32>, vector<32x128xf32>, vector<8x128xf32> -> vector<8x128xf32>
    %173 = arith.addf %171, %172 : vector<8x128xf32>
    %174 = vector.broadcast %5 : vector<1x128xf32> to vector<8x128xf32>
    %175 = arith.addf %173, %174 : vector<8x128xf32>
    %176 = arith.negf %175 : vector<8x128xf32>
    %177 = math.exp %176 : vector<8x128xf32>
    %cst_57 = arith.constant 1.000000e+00 : f32
    %178 = vector.broadcast %cst_57 : f32 to vector<8x128xf32>
    %179 = arith.addf %178, %177 : vector<8x128xf32>
    %180 = arith.divf %178, %179 : vector<8x128xf32>
    %181 = vector.extract_strided_slice %180 {offsets = [0, 0], sizes = [8, 32], strides = [1, 1]} : vector<8x128xf32> to vector<8x32xf32>
    %182 = vector.extract_strided_slice %180 {offsets = [0, 32], sizes = [8, 32], strides = [1, 1]} : vector<8x128xf32> to vector<8x32xf32>
    %183 = vector.extract_strided_slice %180 {offsets = [0, 64], sizes = [8, 32], strides = [1, 1]} : vector<8x128xf32> to vector<8x32xf32>
    %cst_58 = arith.constant 2.000000e+00 : f32
    %184 = vector.broadcast %cst_58 : f32 to vector<8x32xf32>
    %185 = arith.mulf %184, %183 : vector<8x32xf32>
    %cst_59 = arith.constant 1.000000e+00 : f32
    %186 = vector.broadcast %cst_59 : f32 to vector<8x32xf32>
    %187 = arith.subf %185, %186 : vector<8x32xf32>
    %188 = vector.extract_strided_slice %180 {offsets = [0, 96], sizes = [8, 32], strides = [1, 1]} : vector<8x128xf32> to vector<8x32xf32>
    %189 = arith.mulf %182, %147 : vector<8x32xf32>
    %190 = arith.mulf %181, %187 : vector<8x32xf32>
    %191 = arith.addf %189, %190 : vector<8x32xf32>
    %192 = math.tanh %191 : vector<8x32xf32>
    %193 = arith.mulf %188, %192 : vector<8x32xf32>
    %194 = vector.extract_strided_slice %9 {offsets = [32, 0], sizes = [8, 128], strides = [1, 1]} : vector<64x128xf32> to vector<8x128xf32>
    %cst_60 = arith.constant dense<0.000000e+00> : vector<8x128xf32>
    %195 = tpu.matmul %170, %2, %cst_60 {dimension_numbers = #tpu.dot_dimension_numbers<[1], [0], [0], [1], [0, 0, 1, 1], [], []>} : vector<8x32xf32>, vector<32x128xf32>, vector<8x128xf32> -> vector<8x128xf32>
    %196 = arith.addf %194, %195 : vector<8x128xf32>
    %197 = arith.negf %196 : vector<8x128xf32>
    %198 = math.exp %197 : vector<8x128xf32>
    %cst_61 = arith.constant 1.000000e+00 : f32
    %199 = vector.broadcast %cst_61 : f32 to vector<8x128xf32>
    %200 = arith.addf %199, %198 : vector<8x128xf32>
    %201 = arith.divf %199, %200 : vector<8x128xf32>
    %202 = vector.extract_strided_slice %201 {offsets = [0, 0], sizes = [8, 32], strides = [1, 1]} : vector<8x128xf32> to vector<8x32xf32>
    %203 = vector.extract_strided_slice %201 {offsets = [0, 32], sizes = [8, 32], strides = [1, 1]} : vector<8x128xf32> to vector<8x32xf32>
    %204 = vector.extract_strided_slice %201 {offsets = [0, 64], sizes = [8, 32], strides = [1, 1]} : vector<8x128xf32> to vector<8x32xf32>
    %cst_62 = arith.constant 2.000000e+00 : f32
    %205 = vector.broadcast %cst_62 : f32 to vector<8x32xf32>
    %206 = arith.mulf %205, %204 : vector<8x32xf32>
    %cst_63 = arith.constant 1.000000e+00 : f32
    %207 = vector.broadcast %cst_63 : f32 to vector<8x32xf32>
    %208 = arith.subf %206, %207 : vector<8x32xf32>
    %209 = vector.extract_strided_slice %201 {offsets = [0, 96], sizes = [8, 32], strides = [1, 1]} : vector<8x128xf32> to vector<8x32xf32>
    %210 = arith.mulf %203, %168 : vector<8x32xf32>
    %211 = arith.mulf %202, %208 : vector<8x32xf32>
    %212 = arith.addf %210, %211 : vector<8x32xf32>
    %213 = math.tanh %212 : vector<8x32xf32>
    %214 = arith.mulf %209, %213 : vector<8x32xf32>
    %cst_64 = arith.constant dense<0.000000e+00> : vector<8x128xf32>
    %215 = tpu.matmul %214, %1, %cst_64 {dimension_numbers = #tpu.dot_dimension_numbers<[1], [0], [0], [1], [0, 0, 1, 1], [], []>} : vector<8x32xf32>, vector<32x128xf32>, vector<8x128xf32> -> vector<8x128xf32>
    %cst_65 = arith.constant dense<0.000000e+00> : vector<8x128xf32>
    %216 = tpu.matmul %193, %3, %cst_65 {dimension_numbers = #tpu.dot_dimension_numbers<[1], [0], [0], [1], [0, 0, 1, 1], [], []>} : vector<8x32xf32>, vector<32x128xf32>, vector<8x128xf32> -> vector<8x128xf32>
    %217 = arith.addf %215, %216 : vector<8x128xf32>
    %218 = vector.broadcast %5 : vector<1x128xf32> to vector<8x128xf32>
    %219 = arith.addf %217, %218 : vector<8x128xf32>
    %220 = arith.negf %219 : vector<8x128xf32>
    %221 = math.exp %220 : vector<8x128xf32>
    %cst_66 = arith.constant 1.000000e+00 : f32
    %222 = vector.broadcast %cst_66 : f32 to vector<8x128xf32>
    %223 = arith.addf %222, %221 : vector<8x128xf32>
    %224 = arith.divf %222, %223 : vector<8x128xf32>
    %225 = vector.extract_strided_slice %224 {offsets = [0, 0], sizes = [8, 32], strides = [1, 1]} : vector<8x128xf32> to vector<8x32xf32>
    %226 = vector.extract_strided_slice %224 {offsets = [0, 32], sizes = [8, 32], strides = [1, 1]} : vector<8x128xf32> to vector<8x32xf32>
    %227 = vector.extract_strided_slice %224 {offsets = [0, 64], sizes = [8, 32], strides = [1, 1]} : vector<8x128xf32> to vector<8x32xf32>
    %cst_67 = arith.constant 2.000000e+00 : f32
    %228 = vector.broadcast %cst_67 : f32 to vector<8x32xf32>
    %229 = arith.mulf %228, %227 : vector<8x32xf32>
    %cst_68 = arith.constant 1.000000e+00 : f32
    %230 = vector.broadcast %cst_68 : f32 to vector<8x32xf32>
    %231 = arith.subf %229, %230 : vector<8x32xf32>
    %232 = vector.extract_strided_slice %224 {offsets = [0, 96], sizes = [8, 32], strides = [1, 1]} : vector<8x128xf32> to vector<8x32xf32>
    %233 = arith.mulf %226, %191 : vector<8x32xf32>
    %234 = arith.mulf %225, %231 : vector<8x32xf32>
    %235 = arith.addf %233, %234 : vector<8x32xf32>
    %236 = math.tanh %235 : vector<8x32xf32>
    %237 = arith.mulf %232, %236 : vector<8x32xf32>
    %238 = vector.extract_strided_slice %9 {offsets = [40, 0], sizes = [8, 128], strides = [1, 1]} : vector<64x128xf32> to vector<8x128xf32>
    %cst_69 = arith.constant dense<0.000000e+00> : vector<8x128xf32>
    %239 = tpu.matmul %214, %2, %cst_69 {dimension_numbers = #tpu.dot_dimension_numbers<[1], [0], [0], [1], [0, 0, 1, 1], [], []>} : vector<8x32xf32>, vector<32x128xf32>, vector<8x128xf32> -> vector<8x128xf32>
    %240 = arith.addf %238, %239 : vector<8x128xf32>
    %241 = arith.negf %240 : vector<8x128xf32>
    %242 = math.exp %241 : vector<8x128xf32>
    %cst_70 = arith.constant 1.000000e+00 : f32
    %243 = vector.broadcast %cst_70 : f32 to vector<8x128xf32>
    %244 = arith.addf %243, %242 : vector<8x128xf32>
    %245 = arith.divf %243, %244 : vector<8x128xf32>
    %246 = vector.extract_strided_slice %245 {offsets = [0, 0], sizes = [8, 32], strides = [1, 1]} : vector<8x128xf32> to vector<8x32xf32>
    %247 = vector.extract_strided_slice %245 {offsets = [0, 32], sizes = [8, 32], strides = [1, 1]} : vector<8x128xf32> to vector<8x32xf32>
    %248 = vector.extract_strided_slice %245 {offsets = [0, 64], sizes = [8, 32], strides = [1, 1]} : vector<8x128xf32> to vector<8x32xf32>
    %cst_71 = arith.constant 2.000000e+00 : f32
    %249 = vector.broadcast %cst_71 : f32 to vector<8x32xf32>
    %250 = arith.mulf %249, %248 : vector<8x32xf32>
    %cst_72 = arith.constant 1.000000e+00 : f32
    %251 = vector.broadcast %cst_72 : f32 to vector<8x32xf32>
    %252 = arith.subf %250, %251 : vector<8x32xf32>
    %253 = vector.extract_strided_slice %245 {offsets = [0, 96], sizes = [8, 32], strides = [1, 1]} : vector<8x128xf32> to vector<8x32xf32>
    %254 = arith.mulf %247, %212 : vector<8x32xf32>
    %255 = arith.mulf %246, %252 : vector<8x32xf32>
    %256 = arith.addf %254, %255 : vector<8x32xf32>
    %257 = math.tanh %256 : vector<8x32xf32>
    %258 = arith.mulf %253, %257 : vector<8x32xf32>
    %cst_73 = arith.constant dense<0.000000e+00> : vector<8x128xf32>
    %259 = tpu.matmul %258, %1, %cst_73 {dimension_numbers = #tpu.dot_dimension_numbers<[1], [0], [0], [1], [0, 0, 1, 1], [], []>} : vector<8x32xf32>, vector<32x128xf32>, vector<8x128xf32> -> vector<8x128xf32>
    %cst_74 = arith.constant dense<0.000000e+00> : vector<8x128xf32>
    %260 = tpu.matmul %237, %3, %cst_74 {dimension_numbers = #tpu.dot_dimension_numbers<[1], [0], [0], [1], [0, 0, 1, 1], [], []>} : vector<8x32xf32>, vector<32x128xf32>, vector<8x128xf32> -> vector<8x128xf32>
    %261 = arith.addf %259, %260 : vector<8x128xf32>
    %262 = vector.broadcast %5 : vector<1x128xf32> to vector<8x128xf32>
    %263 = arith.addf %261, %262 : vector<8x128xf32>
    %264 = arith.negf %263 : vector<8x128xf32>
    %265 = math.exp %264 : vector<8x128xf32>
    %cst_75 = arith.constant 1.000000e+00 : f32
    %266 = vector.broadcast %cst_75 : f32 to vector<8x128xf32>
    %267 = arith.addf %266, %265 : vector<8x128xf32>
    %268 = arith.divf %266, %267 : vector<8x128xf32>
    %269 = vector.extract_strided_slice %268 {offsets = [0, 0], sizes = [8, 32], strides = [1, 1]} : vector<8x128xf32> to vector<8x32xf32>
    %270 = vector.extract_strided_slice %268 {offsets = [0, 32], sizes = [8, 32], strides = [1, 1]} : vector<8x128xf32> to vector<8x32xf32>
    %271 = vector.extract_strided_slice %268 {offsets = [0, 64], sizes = [8, 32], strides = [1, 1]} : vector<8x128xf32> to vector<8x32xf32>
    %cst_76 = arith.constant 2.000000e+00 : f32
    %272 = vector.broadcast %cst_76 : f32 to vector<8x32xf32>
    %273 = arith.mulf %272, %271 : vector<8x32xf32>
    %cst_77 = arith.constant 1.000000e+00 : f32
    %274 = vector.broadcast %cst_77 : f32 to vector<8x32xf32>
    %275 = arith.subf %273, %274 : vector<8x32xf32>
    %276 = vector.extract_strided_slice %268 {offsets = [0, 96], sizes = [8, 32], strides = [1, 1]} : vector<8x128xf32> to vector<8x32xf32>
    %277 = arith.mulf %270, %235 : vector<8x32xf32>
    %278 = arith.mulf %269, %275 : vector<8x32xf32>
    %279 = arith.addf %277, %278 : vector<8x32xf32>
    %280 = math.tanh %279 : vector<8x32xf32>
    %281 = arith.mulf %276, %280 : vector<8x32xf32>
    %282 = vector.extract_strided_slice %9 {offsets = [48, 0], sizes = [8, 128], strides = [1, 1]} : vector<64x128xf32> to vector<8x128xf32>
    %cst_78 = arith.constant dense<0.000000e+00> : vector<8x128xf32>
    %283 = tpu.matmul %258, %2, %cst_78 {dimension_numbers = #tpu.dot_dimension_numbers<[1], [0], [0], [1], [0, 0, 1, 1], [], []>} : vector<8x32xf32>, vector<32x128xf32>, vector<8x128xf32> -> vector<8x128xf32>
    %284 = arith.addf %282, %283 : vector<8x128xf32>
    %285 = arith.negf %284 : vector<8x128xf32>
    %286 = math.exp %285 : vector<8x128xf32>
    %cst_79 = arith.constant 1.000000e+00 : f32
    %287 = vector.broadcast %cst_79 : f32 to vector<8x128xf32>
    %288 = arith.addf %287, %286 : vector<8x128xf32>
    %289 = arith.divf %287, %288 : vector<8x128xf32>
    %290 = vector.extract_strided_slice %289 {offsets = [0, 0], sizes = [8, 32], strides = [1, 1]} : vector<8x128xf32> to vector<8x32xf32>
    %291 = vector.extract_strided_slice %289 {offsets = [0, 32], sizes = [8, 32], strides = [1, 1]} : vector<8x128xf32> to vector<8x32xf32>
    %292 = vector.extract_strided_slice %289 {offsets = [0, 64], sizes = [8, 32], strides = [1, 1]} : vector<8x128xf32> to vector<8x32xf32>
    %cst_80 = arith.constant 2.000000e+00 : f32
    %293 = vector.broadcast %cst_80 : f32 to vector<8x32xf32>
    %294 = arith.mulf %293, %292 : vector<8x32xf32>
    %cst_81 = arith.constant 1.000000e+00 : f32
    %295 = vector.broadcast %cst_81 : f32 to vector<8x32xf32>
    %296 = arith.subf %294, %295 : vector<8x32xf32>
    %297 = vector.extract_strided_slice %289 {offsets = [0, 96], sizes = [8, 32], strides = [1, 1]} : vector<8x128xf32> to vector<8x32xf32>
    %298 = arith.mulf %291, %256 : vector<8x32xf32>
    %299 = arith.mulf %290, %296 : vector<8x32xf32>
    %300 = arith.addf %298, %299 : vector<8x32xf32>
    %301 = math.tanh %300 : vector<8x32xf32>
    %302 = arith.mulf %297, %301 : vector<8x32xf32>
    %cst_82 = arith.constant dense<0.000000e+00> : vector<8x128xf32>
    %303 = tpu.matmul %302, %1, %cst_82 {dimension_numbers = #tpu.dot_dimension_numbers<[1], [0], [0], [1], [0, 0, 1, 1], [], []>} : vector<8x32xf32>, vector<32x128xf32>, vector<8x128xf32> -> vector<8x128xf32>
    %cst_83 = arith.constant dense<0.000000e+00> : vector<8x128xf32>
    %304 = tpu.matmul %281, %3, %cst_83 {dimension_numbers = #tpu.dot_dimension_numbers<[1], [0], [0], [1], [0, 0, 1, 1], [], []>} : vector<8x32xf32>, vector<32x128xf32>, vector<8x128xf32> -> vector<8x128xf32>
    %305 = arith.addf %303, %304 : vector<8x128xf32>
    %306 = vector.broadcast %5 : vector<1x128xf32> to vector<8x128xf32>
    %307 = arith.addf %305, %306 : vector<8x128xf32>
    %308 = arith.negf %307 : vector<8x128xf32>
    %309 = math.exp %308 : vector<8x128xf32>
    %cst_84 = arith.constant 1.000000e+00 : f32
    %310 = vector.broadcast %cst_84 : f32 to vector<8x128xf32>
    %311 = arith.addf %310, %309 : vector<8x128xf32>
    %312 = arith.divf %310, %311 : vector<8x128xf32>
    %313 = vector.extract_strided_slice %312 {offsets = [0, 0], sizes = [8, 32], strides = [1, 1]} : vector<8x128xf32> to vector<8x32xf32>
    %314 = vector.extract_strided_slice %312 {offsets = [0, 32], sizes = [8, 32], strides = [1, 1]} : vector<8x128xf32> to vector<8x32xf32>
    %315 = vector.extract_strided_slice %312 {offsets = [0, 64], sizes = [8, 32], strides = [1, 1]} : vector<8x128xf32> to vector<8x32xf32>
    %cst_85 = arith.constant 2.000000e+00 : f32
    %316 = vector.broadcast %cst_85 : f32 to vector<8x32xf32>
    %317 = arith.mulf %316, %315 : vector<8x32xf32>
    %cst_86 = arith.constant 1.000000e+00 : f32
    %318 = vector.broadcast %cst_86 : f32 to vector<8x32xf32>
    %319 = arith.subf %317, %318 : vector<8x32xf32>
    %320 = vector.extract_strided_slice %312 {offsets = [0, 96], sizes = [8, 32], strides = [1, 1]} : vector<8x128xf32> to vector<8x32xf32>
    %321 = arith.mulf %314, %279 : vector<8x32xf32>
    %322 = arith.mulf %313, %319 : vector<8x32xf32>
    %323 = arith.addf %321, %322 : vector<8x32xf32>
    %324 = math.tanh %323 : vector<8x32xf32>
    %325 = arith.mulf %320, %324 : vector<8x32xf32>
    %326 = vector.extract_strided_slice %9 {offsets = [56, 0], sizes = [8, 128], strides = [1, 1]} : vector<64x128xf32> to vector<8x128xf32>
    %cst_87 = arith.constant dense<0.000000e+00> : vector<8x128xf32>
    %327 = tpu.matmul %302, %2, %cst_87 {dimension_numbers = #tpu.dot_dimension_numbers<[1], [0], [0], [1], [0, 0, 1, 1], [], []>} : vector<8x32xf32>, vector<32x128xf32>, vector<8x128xf32> -> vector<8x128xf32>
    %328 = arith.addf %326, %327 : vector<8x128xf32>
    %329 = arith.negf %328 : vector<8x128xf32>
    %330 = math.exp %329 : vector<8x128xf32>
    %cst_88 = arith.constant 1.000000e+00 : f32
    %331 = vector.broadcast %cst_88 : f32 to vector<8x128xf32>
    %332 = arith.addf %331, %330 : vector<8x128xf32>
    %333 = arith.divf %331, %332 : vector<8x128xf32>
    %334 = vector.extract_strided_slice %333 {offsets = [0, 0], sizes = [8, 32], strides = [1, 1]} : vector<8x128xf32> to vector<8x32xf32>
    %335 = vector.extract_strided_slice %333 {offsets = [0, 32], sizes = [8, 32], strides = [1, 1]} : vector<8x128xf32> to vector<8x32xf32>
    %336 = vector.extract_strided_slice %333 {offsets = [0, 64], sizes = [8, 32], strides = [1, 1]} : vector<8x128xf32> to vector<8x32xf32>
    %cst_89 = arith.constant 2.000000e+00 : f32
    %337 = vector.broadcast %cst_89 : f32 to vector<8x32xf32>
    %338 = arith.mulf %337, %336 : vector<8x32xf32>
    %cst_90 = arith.constant 1.000000e+00 : f32
    %339 = vector.broadcast %cst_90 : f32 to vector<8x32xf32>
    %340 = arith.subf %338, %339 : vector<8x32xf32>
    %341 = vector.extract_strided_slice %333 {offsets = [0, 96], sizes = [8, 32], strides = [1, 1]} : vector<8x128xf32> to vector<8x32xf32>
    %342 = arith.mulf %335, %300 : vector<8x32xf32>
    %343 = arith.mulf %334, %340 : vector<8x32xf32>
    %344 = arith.addf %342, %343 : vector<8x32xf32>
    %345 = math.tanh %344 : vector<8x32xf32>
    %346 = arith.mulf %341, %345 : vector<8x32xf32>
    %cst_91 = arith.constant dense<0.000000e+00> : vector<8x128xf32>
    %347 = tpu.matmul %346, %1, %cst_91 {dimension_numbers = #tpu.dot_dimension_numbers<[1], [0], [0], [1], [0, 0, 1, 1], [], []>} : vector<8x32xf32>, vector<32x128xf32>, vector<8x128xf32> -> vector<8x128xf32>
    %cst_92 = arith.constant dense<0.000000e+00> : vector<8x128xf32>
    %348 = tpu.matmul %325, %3, %cst_92 {dimension_numbers = #tpu.dot_dimension_numbers<[1], [0], [0], [1], [0, 0, 1, 1], [], []>} : vector<8x32xf32>, vector<32x128xf32>, vector<8x128xf32> -> vector<8x128xf32>
    %349 = arith.addf %347, %348 : vector<8x128xf32>
    %350 = vector.broadcast %5 : vector<1x128xf32> to vector<8x128xf32>
    %351 = arith.addf %349, %350 : vector<8x128xf32>
    %352 = arith.negf %351 : vector<8x128xf32>
    %353 = math.exp %352 : vector<8x128xf32>
    %cst_93 = arith.constant 1.000000e+00 : f32
    %354 = vector.broadcast %cst_93 : f32 to vector<8x128xf32>
    %355 = arith.addf %354, %353 : vector<8x128xf32>
    %356 = arith.divf %354, %355 : vector<8x128xf32>
    %357 = vector.extract_strided_slice %356 {offsets = [0, 0], sizes = [8, 32], strides = [1, 1]} : vector<8x128xf32> to vector<8x32xf32>
    %358 = vector.extract_strided_slice %356 {offsets = [0, 32], sizes = [8, 32], strides = [1, 1]} : vector<8x128xf32> to vector<8x32xf32>
    %359 = vector.extract_strided_slice %356 {offsets = [0, 64], sizes = [8, 32], strides = [1, 1]} : vector<8x128xf32> to vector<8x32xf32>
    %cst_94 = arith.constant 2.000000e+00 : f32
    %360 = vector.broadcast %cst_94 : f32 to vector<8x32xf32>
    %361 = arith.mulf %360, %359 : vector<8x32xf32>
    %cst_95 = arith.constant 1.000000e+00 : f32
    %362 = vector.broadcast %cst_95 : f32 to vector<8x32xf32>
    %363 = arith.subf %361, %362 : vector<8x32xf32>
    %364 = vector.extract_strided_slice %356 {offsets = [0, 96], sizes = [8, 32], strides = [1, 1]} : vector<8x128xf32> to vector<8x32xf32>
    %365 = arith.mulf %358, %323 : vector<8x32xf32>
    %366 = arith.mulf %357, %363 : vector<8x32xf32>
    %367 = arith.addf %365, %366 : vector<8x32xf32>
    %368 = math.tanh %367 : vector<8x32xf32>
    %369 = arith.mulf %364, %368 : vector<8x32xf32>
    %c0_96 = arith.constant 0 : index
    %c0_97 = arith.constant 0 : index
    %370 = vector.load %arg10[%c0_96, %c0_97] : memref<32x1xf32, #tpu.memory_space<vmem>>, vector<32x1xf32>
    %cst_98 = arith.constant dense<0.000000e+00> : vector<8x1xf32>
    %371 = tpu.matmul %369, %370, %cst_98 {dimension_numbers = #tpu.dot_dimension_numbers<[1], [0], [0], [1], [0, 0, 1, 1], [], []>} : vector<8x32xf32>, vector<32x1xf32>, vector<8x1xf32> -> vector<8x1xf32>
    %c0_99 = arith.constant 0 : index
    %c0_100 = arith.constant 0 : index
    %372 = vector.load %arg11[%c0_99, %c0_100] : memref<1x1xf32, #tpu.memory_space<vmem>>, vector<1x1xf32>
    %373 = vector.broadcast %372 : vector<1x1xf32> to vector<8x1xf32>
    %374 = arith.addf %371, %373 : vector<8x1xf32>
    %c0_101 = arith.constant 0 : index
    %c0_102 = arith.constant 0 : index
    %375 = vector.load %arg12[%c0_101, %c0_102] : memref<8x1xf32, #tpu.memory_space<vmem>>, vector<8x1xf32>
    tpu.vector_store %arg12[%c0_101, %c0_102], %374 {strides = array<i32>} : memref<8x1xf32, #tpu.memory_space<vmem>>, vector<8x1xf32>,
    return
  }
  func.func @transform_0(%arg0: i32) -> (i32, i32) {
    %c0_i32 = arith.constant 0 : i32
    %c0_i32_0 = arith.constant 0 : i32
    %c0_i32_1 = arith.constant 0 : i32
    return %c0_i32, %c0_i32_0 : i32, i32
  }
  func.func @transform_1(%arg0: i32) -> (i32, i32) {
    %c0_i32 = arith.constant 0 : i32
    %c0_i32_0 = arith.constant 0 : i32
    %c0_i32_1 = arith.constant 0 : i32
    return %c0_i32, %c0_i32_0 : i32, i32
  }
  func.func @transform_2(%arg0: i32) -> (i32, i32) {
    %c0_i32 = arith.constant 0 : i32
    %c0_i32_0 = arith.constant 0 : i32
    %c0_i32_1 = arith.constant 0 : i32
    return %c0_i32, %c0_i32_0 : i32, i32
  }
  func.func @transform_3(%arg0: i32) -> (i32, i32) {
    %c0_i32 = arith.constant 0 : i32
    %c0_i32_0 = arith.constant 0 : i32
    %c0_i32_1 = arith.constant 0 : i32
    return %c0_i32, %c0_i32_0 : i32, i32
  }
  func.func @transform_4(%arg0: i32) -> (i32, i32) {
    %c0_i32 = arith.constant 0 : i32
    %c0_i32_0 = arith.constant 0 : i32
    %c0_i32_1 = arith.constant 0 : i32
    return %c0_i32, %c0_i32_0 : i32, i32
  }
  func.func @transform_5(%arg0: i32) -> (i32, i32) {
    %c0_i32 = arith.constant 0 : i32
    %c0_i32_0 = arith.constant 0 : i32
    %c0_i32_1 = arith.constant 0 : i32
    return %c0_i32, %c0_i32_0 : i32, i32
  }
  func.func @transform_6(%arg0: i32) -> (i32, i32) {
    %c0_i32 = arith.constant 0 : i32
    %c0_i32_0 = arith.constant 0 : i32
    %c0_i32_1 = arith.constant 0 : i32
    return %c0_i32, %c0_i32_0 : i32, i32
  }
  func.func @transform_7(%arg0: i32) -> (i32, i32, i32) {
    %c0_i32 = arith.constant 0 : i32
    %c0_i32_0 = arith.constant 0 : i32
    %c0_i32_1 = arith.constant 0 : i32
    %c0_i32_2 = arith.constant 0 : i32
    return %c0_i32, %c0_i32_0, %c0_i32_1 : i32, i32, i32
  }
  func.func @transform_8(%arg0: i32) -> (i32, i32, i32) {
    %c0_i32 = arith.constant 0 : i32
    %c0_i32_0 = arith.constant 0 : i32
    %c0_i32_1 = arith.constant 0 : i32
    %c0_i32_2 = arith.constant 0 : i32
    return %c0_i32, %c0_i32_0, %c0_i32_1 : i32, i32, i32
  }
  func.func @transform_9(%arg0: i32) -> (i32, i32) {
    %c0_i32 = arith.constant 0 : i32
    %c0_i32_0 = arith.constant 0 : i32
    %c0_i32_1 = arith.constant 0 : i32
    return %c0_i32, %c0_i32_0 : i32, i32
  }
  func.func @transform_10(%arg0: i32) -> (i32, i32) {
    %c0_i32 = arith.constant 0 : i32
    %c0_i32_0 = arith.constant 0 : i32
    %c0_i32_1 = arith.constant 0 : i32
    return %c0_i32, %c0_i32_0 : i32, i32
  }
  func.func @transform_11(%arg0: i32) -> (i32, i32) {
    %c0_i32 = arith.constant 0 : i32
    %c0_i32_0 = arith.constant 0 : i32
    %c0_i32_1 = arith.constant 0 : i32
    return %c0_i32, %c0_i32_0 : i32, i32
  }
}

</mosaic_0001>

<llo_original>
// kernel: lstm_forward.1
$region0: #{lstm_forward.1}
  #allocation0 [shape = 'u32[]', space=smem, size = 0x4, offset = 0x4, fixed_abs, tag = 'smem constant byte address 0x4 - core index']
  #allocation1 [shape = 'u32[144,128]{1,0:T(1,128)}', space=vmem, size = 0x12000, scoped, tag = 'internal scratch']
  #allocation2 [shape = 'f32[1,1]{1,0:T(1,128)S(1)}', space=vmem, size = 0x200, scoped, tag = 'scoped memory for lstm_forward.1']
  %s0 = inlined_call_operand.vmem [shape: f32[64,4], index: 0, kind: input, shape index: {}]
  %s1 = inlined_call_operand.vmem [shape: f32[4,128], index: 1, kind: input, shape index: {}]
  %s2 = inlined_call_operand.vmem [shape: f32[32,128], index: 2, kind: input, shape index: {}]
  %s3 = inlined_call_operand.vmem [shape: f32[1,128], index: 3, kind: input, shape index: {}]
  %s4 = inlined_call_operand.vmem [shape: f32[32,128], index: 4, kind: input, shape index: {}]
  %s5 = inlined_call_operand.vmem [shape: f32[32,128], index: 5, kind: input, shape index: {}]
  %s6 = inlined_call_operand.vmem [shape: f32[1,128], index: 6, kind: input, shape index: {}]
  %s7 = inlined_call_operand.vmem [shape: f32[2,8,32], index: 7, kind: input, shape index: {}]
  %s8 = inlined_call_operand.vmem [shape: f32[2,8,32], index: 8, kind: input, shape index: {}]
  %s9 = inlined_call_operand.vmem [shape: f32[32,1], index: 9, kind: input, shape index: {}]
  %s10 = inlined_call_operand.<no memory space> [shape: f32[1,1], index: 10, kind: input, shape index: {}]
  %s11 = inlined_call_operand.vmem [shape: f32[8,1], index: 11, kind: output, shape index: {}]
  %s12 = sld [smem:[#allocation0]]
  $region54: #{lstm_forward.1} parent=0
    _
  %s14 = ssub.s32 1, %s12
  %s15 = scalar_select 0, %s14, %s12
  %v16 = vstv %s10
  %17 = vst [vmem:[#allocation2] sm:$0x1] %v16
  // Predicated region
  $region2: #{lstm_forward.1} parent=0 // pred_check
    _
  $region3: #{lstm_forward.1} parent=0 // pred_check_branch
    %19 = sbr.rel (0) target = $region5
  $region4: #{lstm_forward.1} parent=0 // pred_region
    _
  $region5: #{lstm_forward.1} parent=0 // pred_fallthru
    _
  // Predicated region
  $region6: #{lstm_forward.1} parent=0 // pred_check
    _
  $region7: #{lstm_forward.1} parent=0 // pred_check_branch
    %21 = sbr.rel (0) target = $region9
  $region8: #{lstm_forward.1} parent=0 // pred_region
    _
  $region9: #{lstm_forward.1} parent=0 // pred_fallthru
    _
  // Predicated region
  $region10: #{lstm_forward.1} parent=0 // pred_check
    _
  $region11: #{lstm_forward.1} parent=0 // pred_check_branch
    %23 = sbr.rel (0) target = $region13
  $region12: #{lstm_forward.1} parent=0 // pred_region
    _
  $region13: #{lstm_forward.1} parent=0 // pred_fallthru
    _
  // Predicated region
  $region14: #{lstm_forward.1} parent=0 // pred_check
    _
  $region15: #{lstm_forward.1} parent=0 // pred_check_branch
    %25 = sbr.rel (0) target = $region17
  $region16: #{lstm_forward.1} parent=0 // pred_region
    _
  $region17: #{lstm_forward.1} parent=0 // pred_fallthru
    _
  // Predicated region
  $region18: #{lstm_forward.1} parent=0 // pred_check
    _
  $region19: #{lstm_forward.1} parent=0 // pred_check_branch
    %27 = sbr.rel (0) target = $region21
  $region20: #{lstm_forward.1} parent=0 // pred_region
    _
  $region21: #{lstm_forward.1} parent=0 // pred_fallthru
    _
  // Predicated region
  $region22: #{lstm_forward.1} parent=0 // pred_check
    _
  $region23: #{lstm_forward.1} parent=0 // pred_check_branch
    %29 = sbr.rel (0) target = $region25
  $region24: #{lstm_forward.1} parent=0 // pred_region
    _
  $region25: #{lstm_forward.1} parent=0 // pred_fallthru
    _
  // Predicated region
  $region26: #{lstm_forward.1} parent=0 // pred_check
    _
  $region27: #{lstm_forward.1} parent=0 // pred_check_branch
    %31 = sbr.rel (0) target = $region29
  $region28: #{lstm_forward.1} parent=0 // pred_region
    _
  $region29: #{lstm_forward.1} parent=0 // pred_fallthru
    _
  // Predicated region
  $region30: #{lstm_forward.1} parent=0 // pred_check
    _
  $region31: #{lstm_forward.1} parent=0 // pred_check_branch
    %33 = sbr.rel (0) target = $region33
  $region32: #{lstm_forward.1} parent=0 // pred_region
    _
  $region33: #{lstm_forward.1} parent=0 // pred_fallthru
    _
  // Predicated region
  $region34: #{lstm_forward.1} parent=0 // pred_check
    _
  $region35: #{lstm_forward.1} parent=0 // pred_check_branch
    %35 = sbr.rel (0) target = $region37
  $region36: #{lstm_forward.1} parent=0 // pred_region
    _
  $region37: #{lstm_forward.1} parent=0 // pred_fallthru
    _
  // Predicated region
  $region38: #{lstm_forward.1} parent=0 // pred_check
    _
  $region39: #{lstm_forward.1} parent=0 // pred_check_branch
    %37 = sbr.rel (0) target = $region41
  $region40: #{lstm_forward.1} parent=0 // pred_region
    _
  $region41: #{lstm_forward.1} parent=0 // pred_fallthru
    _
  // Predicated region
  $region42: #{lstm_forward.1} parent=0 // pred_check
    _
  $region43: #{lstm_forward.1} parent=0 // pred_check_branch
    %39 = sbr.rel (0) target = $region45
  $region44: #{lstm_forward.1} parent=0 // pred_region
    _
  $region45: #{lstm_forward.1} parent=0 // pred_fallthru
    _
  %v40 = vld [vmem:[%s1] sm:$0xf]
  %v41 = vld [vmem:[%s4] sm:$0xff]
  %v42 = vld [vmem:[%s4 + $0x8] sm:$0xff]
  %v43 = vld [vmem:[%s4 + $0x10] sm:$0xff]
  %v44 = vld [vmem:[%s4 + $0x18] sm:$0xff]
  %v45 = vld [vmem:[%s2] sm:$0xff]
  %v46 = vld [vmem:[%s2 + $0x8] sm:$0xff]
  %v47 = vld [vmem:[%s2 + $0x10] sm:$0xff]
  %v48 = vld [vmem:[%s2 + $0x18] sm:$0xff]
  %v49 = vld [vmem:[%s5] sm:$0xff]
  %v50 = vld [vmem:[%s5 + $0x8] sm:$0xff]
  %v51 = vld [vmem:[%s5 + $0x10] sm:$0xff]
  %v52 = vld [vmem:[%s5 + $0x18] sm:$0xff]
  %v53 = vld [vmem:[%s3] sm:$0x1]
  %v54 = vld [vmem:[%s6] sm:$0x1]
  %v55 = vld [vmem:[%s0] sm:$0xff]
  %v56 = vld [vmem:[%s0 + $0x8] sm:$0xff]
  %v57 = vld [vmem:[%s0 + $0x10] sm:$0xff]
  %v58 = vld [vmem:[%s0 + $0x18] sm:$0xff]
  %v59 = vld [vmem:[%s0 + $0x20] sm:$0xff]
  %v60 = vld [vmem:[%s0 + $0x28] sm:$0xff]
  %v61 = vld [vmem:[%s0 + $0x30] sm:$0xff]
  %v62 = vld [vmem:[%s0 + $0x38] sm:$0xff]
  %v64 = vlaneseq
  %v65 = vshrl.u32 %v64, 7
  %v66 = vsub.s32 0, %v65
  %v67 = vrot.slane %v53, %v66
  %vm69 = vcmask 31744
  %v71 = vsel %vm69, %v55, 0
  %v74 = vsel %vm69, %v56, 0
  %v77 = vsel %vm69, %v57, 0
  %v80 = vsel %vm69, %v58, 0
  %v83 = vsel %vm69, %v59, 0
  %v86 = vsel %vm69, %v60, 0
  %v89 = vsel %vm69, %v61, 0
  %v92 = vsel %vm69, %v62, 0
  %vm94 = vcmask 1043456
  %v96 = vsel %vm94, %v40, 0
  %98 = vmatprep.subr.mxu0 0.0
  %99 = vmatpush1.msra.mxu0 %v96
  %100 = vmatprep.subr.mxu0 0.0
  %101 = vmatpush1.msra.mxu0 0.0
  %102 = vmatprep.subr.mxu0 0.0
  %103 = vmatpush1.msra.mxu0 0.0
  %104 = vmatprep.subr.mxu0 0.0
  %105 = vmatpush1.msra.mxu0 0.0
  %106 = vmatprep.subr.mxu0 0.0
  %107 = vmatpush1.msra.mxu0 0.0
  %108 = vmatprep.subr.mxu0 0.0
  %109 = vmatpush1.msra.mxu0 0.0
  %110 = vmatprep.subr.mxu0 0.0
  %111 = vmatpush1.msra.mxu0 0.0
  %112 = vmatprep.subr.mxu0 0.0
  %113 = vmatpush1.msra.mxu0 0.0
  %114 = vmatprep.subr.mxu0 0.0
  %115 = vmatpush1.msra.mxu0 0.0
  %116 = vmatprep.subr.mxu0 0.0
  %117 = vmatpush1.msra.mxu0 0.0
  %118 = vmatprep.subr.mxu0 0.0
  %119 = vmatpush1.msra.mxu0 0.0
  %120 = vmatprep.subr.mxu0 0.0
  %121 = vmatpush1.msra.mxu0 0.0
  %122 = vmatprep.subr.mxu0 0.0
  %123 = vmatpush1.msra.mxu0 0.0
  %124 = vmatprep.subr.mxu0 0.0
  %125 = vmatpush1.msra.mxu0 0.0
  %126 = vmatprep.subr.mxu0 0.0
  %127 = vmatpush1.msra.mxu0 0.0
  %128 = vmatprep.subr.mxu0 0.0
  %129 = vmatpush1.msra.mxu0 0.0
  %130 = vmatprep.subr.mxu0 0.0
  %131 = vmatpush1.msra.mxu0 0.0
  %132 = vmatprep.subr.mxu0 0.0
  %133 = vmatpush1.msra.mxu0 0.0
  %134 = vmatprep.subr.mxu0 0.0
  %135 = vmatpush1.msra.mxu0 0.0
  %136 = vmatprep.subr.mxu0 0.0
  %137 = vmatpush1.msra.mxu0 0.0
  %138 = vmatprep.subr.mxu0 0.0
  %139 = vmatpush1.msra.mxu0 0.0
  %140 = vmatprep.subr.mxu0 0.0
  %141 = vmatpush1.msra.mxu0 0.0
  %142 = vmatprep.subr.mxu0 0.0
  %143 = vmatpush1.msra.mxu0 0.0
  %144 = vmatprep.subr.mxu0 0.0
  %145 = vmatpush1.msra.mxu0 0.0
  %146 = vmatprep.subr.mxu0 0.0
  %147 = vmatpush1.msra.mxu0 0.0
  %148 = vmatprep.subr.mxu0 0.0
  %149 = vmatpush1.msra.mxu0 0.0
  %150 = vmatprep.subr.mxu0 0.0
  %151 = vmatpush1.msra.mxu0 0.0
  %152 = vmatprep.subr.mxu0 0.0
  %153 = vmatpush1.msra.mxu0 0.0
  %154 = vmatprep.subr.mxu0 0.0
  %155 = vmatpush1.msra.mxu0 0.0
  %156 = vmatprep.subr.mxu0 0.0
  %157 = vmatpush1.msra.mxu0 0.0
  %158 = vmatprep.subr.mxu0 0.0
  %159 = vmatpush1.msra.mxu0 0.0
  %160 = vmatprep.subr.mxu0 0.0
  %161 = vmatpush1.msra.mxu0 0.0
  %162 = vmatprep.mubr.f32.mxu0 0.0
  %163 = vmatmul.mubr.f32.gmra.mrb[0].mxu0 %v71
  %v164 = vpop.f32.mrb[0].mxu0
  %v165 = vadd.f32 %v67, %v164
  %v166 = vpop.f32.mrb[0].mxu0
  %167 = vmatprep.mubr.f32.mxu0 0.0
  %168 = vmatmul.mubr.f32.gmra.mrb[0].mxu0 %v74
  %v169 = vpop.f32.mrb[0].mxu0
  %v170 = vadd.f32 %v67, %v169
  %v171 = vpop.f32.mrb[0].mxu0
  %172 = vmatprep.mubr.f32.mxu0 0.0
  %173 = vmatmul.mubr.f32.gmra.mrb[0].mxu0 %v77
  %v174 = vpop.f32.mrb[0].mxu0
  %v175 = vadd.f32 %v67, %v174
  %v176 = vpop.f32.mrb[0].mxu0
  %177 = vmatprep.mubr.f32.mxu0 0.0
  %178 = vmatmul.mubr.f32.gmra.mrb[0].mxu0 %v80
  %v179 = vpop.f32.mrb[0].mxu0
  %v180 = vadd.f32 %v67, %v179
  %v181 = vpop.f32.mrb[0].mxu0
  %182 = vmatprep.mubr.f32.mxu0 0.0
  %183 = vmatmul.mubr.f32.gmra.mrb[0].mxu0 %v83
  %v184 = vpop.f32.mrb[0].mxu0
  %v185 = vadd.f32 %v67, %v184
  %v186 = vpop.f32.mrb[0].mxu0
  %187 = vmatprep.mubr.f32.mxu0 0.0
  %188 = vmatmul.mubr.f32.gmra.mrb[0].mxu0 %v86
  %v189 = vpop.f32.mrb[0].mxu0
  %v190 = vadd.f32 %v67, %v189
  %v191 = vpop.f32.mrb[0].mxu0
  %192 = vmatprep.mubr.f32.mxu0 0.0
  %193 = vmatmul.mubr.f32.gmra.mrb[0].mxu0 %v89
  %v194 = vpop.f32.mrb[0].mxu0
  %v195 = vadd.f32 %v67, %v194
  %v196 = vpop.f32.mrb[0].mxu0
  %197 = vmatprep.mubr.f32.mxu0 0.0
  %198 = vmatmul.mubr.f32.gmra.mrb[0].mxu0 %v92
  %v199 = vpop.f32.mrb[0].mxu0
  %v200 = vadd.f32 %v67, %v199
  %v201 = vpop.f32.mrb[0].mxu0
  %202 = vdwg.mxu0
  %v203 = vld [vmem:[%s7] sm:$0xff]
  %s204 = scalar_lea.vmem %s7, 8
  %v205 = vld [vmem:[%s204] sm:$0xff]
  %v206 = vld [vmem:[%s8] sm:$0xff]
  %s207 = scalar_lea.vmem %s8, 8
  %v208 = vld [vmem:[%s207] sm:$0xff]
  %vm209 = vcmask 261120
  %v211 = vsel %vm209, %v203, 0
  %213 = vmatprep.subr.mxu0 0.0
  %214 = vmatpush1.msra.mxu0 %v45
  %215 = vmatprep.subr.mxu0 0.0
  %216 = vmatpush1.msra.mxu0 %v46
  %217 = vmatprep.subr.mxu0 0.0
  %218 = vmatpush1.msra.mxu0 %v47
  %219 = vmatprep.subr.mxu0 0.0
  %220 = vmatpush1.msra.mxu0 %v48
  %221 = vmatprep.subr.mxu0 0.0
  %222 = vmatpush1.msra.mxu0 0.0
  %223 = vmatprep.subr.mxu0 0.0
  %224 = vmatpush1.msra.mxu0 0.0
  %225 = vmatprep.subr.mxu0 0.0
  %226 = vmatpush1.msra.mxu0 0.0
  %227 = vmatprep.subr.mxu0 0.0
  %228 = vmatpush1.msra.mxu0 0.0
  %229 = vmatprep.subr.mxu0 0.0
  %230 = vmatpush1.msra.mxu0 0.0
  %231 = vmatprep.subr.mxu0 0.0
  %232 = vmatpush1.msra.mxu0 0.0
  %233 = vmatprep.subr.mxu0 0.0
  %234 = vmatpush1.msra.mxu0 0.0
  %235 = vmatprep.subr.mxu0 0.0
  %236 = vmatpush1.msra.mxu0 0.0
  %237 = vmatprep.subr.mxu0 0.0
  %238 = vmatpush1.msra.mxu0 0.0
  %239 = vmatprep.subr.mxu0 0.0
  %240 = vmatpush1.msra.mxu0 0.0
  %241 = vmatprep.subr.mxu0 0.0
  %242 = vmatpush1.msra.mxu0 0.0
  %243 = vmatprep.subr.mxu0 0.0
  %244 = vmatpush1.msra.mxu0 0.0
  %245 = vmatprep.subr.mxu0 0.0
  %246 = vmatpush1.msra.mxu0 0.0
  %247 = vmatprep.subr.mxu0 0.0
  %248 = vmatpush1.msra.mxu0 0.0
  %249 = vmatprep.subr.mxu0 0.0
  %250 = vmatpush1.msra.mxu0 0.0
  %251 = vmatprep.subr.mxu0 0.0
  %252 = vmatpush1.msra.mxu0 0.0
  %253 = vmatprep.subr.mxu0 0.0
  %254 = vmatpush1.msra.mxu0 0.0
  %255 = vmatprep.subr.mxu0 0.0
  %256 = vmatpush1.msra.mxu0 0.0
  %257 = vmatprep.subr.mxu0 0.0
  %258 = vmatpush1.msra.mxu0 0.0
  %259 = vmatprep.subr.mxu0 0.0
  %260 = vmatpush1.msra.mxu0 0.0
  %261 = vmatprep.subr.mxu0 0.0
  %262 = vmatpush1.msra.mxu0 0.0
  %263 = vmatprep.subr.mxu0 0.0
  %264 = vmatpush1.msra.mxu0 0.0
  %265 = vmatprep.subr.mxu0 0.0
  %266 = vmatpush1.msra.mxu0 0.0
  %267 = vmatprep.subr.mxu0 0.0
  %268 = vmatpush1.msra.mxu0 0.0
  %269 = vmatprep.subr.mxu0 0.0
  %270 = vmatpush1.msra.mxu0 0.0
  %271 = vmatprep.subr.mxu0 0.0
  %272 = vmatpush1.msra.mxu0 0.0
  %273 = vmatprep.subr.mxu0 0.0
  %274 = vmatpush1.msra.mxu0 0.0
  %275 = vmatprep.subr.mxu0 0.0
  %276 = vmatpush1.msra.mxu0 0.0
  %277 = vmatprep.mubr.f32.mxu0 0.0
  %278 = vmatmul.mubr.f32.gmra.mrb[0].mxu0 %v211
  %v279 = vpop.f32.mrb[0].mxu0
  %v280 = vadd.f32 0.0, %v279
  %v281 = vpop.f32.mrb[0].mxu0
  %282 = vdwg.mxu0
  %v283 = vadd.f32 %v165, %v280
  %v284 = vxor.u32 %v283, 2147483648
  %v285 = vmul.f32 %v284, 1.442695
  %v286 = vpow.pop %v285
  %v287 = vadd.f32 %v286, 1.0
  %v288 = vrcp.pop %v287
  %v289 = vmul.f32 1.0, %v288
  %v290 = vmul.f32 %v289, 2.0
  %v291 = vsub.f32 %v290, 1.0
  %293 = vrot.lane.b32.xlu0 %v206, 32
  %v294 = vpop.permute.xlu0 %293
  %v296 = vmul.f32 %v289, %v294
  %298 = vrot.lane.b32.xlu0 %v291, 64
  %v299 = vpop.permute.xlu0 %298
  %v301 = vmul.f32 %v289, %v299
  %303 = vrot.lane.b32.xlu0 %v301, 32
  %v304 = vpop.permute.xlu0 %303
  %v306 = vadd.f32 %v296, %v304
  %v307 = vtanh.pop %v306
  %309 = vrot.lane.b32.xlu0 %v307, 64
  %v310 = vpop.permute.xlu0 %309
  %v312 = vmul.f32 %v289, %v310
  %v314 = vsel %vm209, %v205, 0
  %316 = vmatprep.subr.mxu0 0.0
  %317 = vmatpush1.msra.mxu0 %v49
  %318 = vmatprep.subr.mxu0 0.0
  %319 = vmatpush1.msra.mxu0 %v50
  %320 = vmatprep.subr.mxu0 0.0
  %321 = vmatpush1.msra.mxu0 %v51
  %322 = vmatprep.subr.mxu0 0.0
  %323 = vmatpush1.msra.mxu0 %v52
  %324 = vmatprep.subr.mxu0 0.0
  %325 = vmatpush1.msra.mxu0 0.0
  %326 = vmatprep.subr.mxu0 0.0
  %327 = vmatpush1.msra.mxu0 0.0
  %328 = vmatprep.subr.mxu0 0.0
  %329 = vmatpush1.msra.mxu0 0.0
  %330 = vmatprep.subr.mxu0 0.0
  %331 = vmatpush1.msra.mxu0 0.0
  %332 = vmatprep.subr.mxu0 0.0
  %333 = vmatpush1.msra.mxu0 0.0
  %334 = vmatprep.subr.mxu0 0.0
  %335 = vmatpush1.msra.mxu0 0.0
  %336 = vmatprep.subr.mxu0 0.0
  %337 = vmatpush1.msra.mxu0 0.0
  %338 = vmatprep.subr.mxu0 0.0
  %339 = vmatpush1.msra.mxu0 0.0
  %340 = vmatprep.subr.mxu0 0.0
  %341 = vmatpush1.msra.mxu0 0.0
  %342 = vmatprep.subr.mxu0 0.0
  %343 = vmatpush1.msra.mxu0 0.0
  %344 = vmatprep.subr.mxu0 0.0
  %345 = vmatpush1.msra.mxu0 0.0
  %346 = vmatprep.subr.mxu0 0.0
  %347 = vmatpush1.msra.mxu0 0.0
  %348 = vmatprep.subr.mxu0 0.0
  %349 = vmatpush1.msra.mxu0 0.0
  %350 = vmatprep.subr.mxu0 0.0
  %351 = vmatpush1.msra.mxu0 0.0
  %352 = vmatprep.subr.mxu0 0.0
  %353 = vmatpush1.msra.mxu0 0.0
  %354 = vmatprep.subr.mxu0 0.0
  %355 = vmatpush1.msra.mxu0 0.0
  %356 = vmatprep.subr.mxu0 0.0
  %357 = vmatpush1.msra.mxu0 0.0
  %358 = vmatprep.subr.mxu0 0.0
  %359 = vmatpush1.msra.mxu0 0.0
  %360 = vmatprep.subr.mxu0 0.0
  %361 = vmatpush1.msra.mxu0 0.0
  %362 = vmatprep.subr.mxu0 0.0
  %363 = vmatpush1.msra.mxu0 0.0
  %364 = vmatprep.subr.mxu0 0.0
  %365 = vmatpush1.msra.mxu0 0.0
  %366 = vmatprep.subr.mxu0 0.0
  %367 = vmatpush1.msra.mxu0 0.0
  %368 = vmatprep.subr.mxu0 0.0
  %369 = vmatpush1.msra.mxu0 0.0
  %370 = vmatprep.subr.mxu0 0.0
  %371 = vmatpush1.msra.mxu0 0.0
  %372 = vmatprep.subr.mxu0 0.0
  %373 = vmatpush1.msra.mxu0 0.0
  %374 = vmatprep.subr.mxu0 0.0
  %375 = vmatpush1.msra.mxu0 0.0
  %376 = vmatprep.subr.mxu0 0.0
  %377 = vmatpush1.msra.mxu0 0.0
  %378 = vmatprep.subr.mxu0 0.0
  %379 = vmatpush1.msra.mxu0 0.0
  %380 = vmatprep.mubr.f32.mxu0 0.0
  %381 = vmatmul.mubr.f32.gmra.mrb[0].mxu0 %v314
  %v382 = vpop.f32.mrb[0].mxu0
  %v383 = vadd.f32 0.0, %v382
  %v384 = vpop.f32.mrb[0].mxu0
  %385 = vdwg.mxu0
  %387 = vrot.lane.b32.xlu0 %v312, 32
  %v388 = vpop.permute.xlu0 %387
  %v389 = vsel %vm209, %v388, 0
  %391 = vmatprep.subr.mxu0 0.0
  %392 = vmatpush1.msra.mxu0 %v41
  %393 = vmatprep.subr.mxu0 0.0
  %394 = vmatpush1.msra.mxu0 %v42
  %395 = vmatprep.subr.mxu0 0.0
  %396 = vmatpush1.msra.mxu0 %v43
  %397 = vmatprep.subr.mxu0 0.0
  %398 = vmatpush1.msra.mxu0 %v44
  %399 = vmatprep.subr.mxu0 0.0
  %400 = vmatpush1.msra.mxu0 0.0
  %401 = vmatprep.subr.mxu0 0.0
  %402 = vmatpush1.msra.mxu0 0.0
  %403 = vmatprep.subr.mxu0 0.0
  %404 = vmatpush1.msra.mxu0 0.0
  %405 = vmatprep.subr.mxu0 0.0
  %406 = vmatpush1.msra.mxu0 0.0
  %407 = vmatprep.subr.mxu0 0.0
  %408 = vmatpush1.msra.mxu0 0.0
  %409 = vmatprep.subr.mxu0 0.0
  %410 = vmatpush1.msra.mxu0 0.0
  %411 = vmatprep.subr.mxu0 0.0
  %412 = vmatpush1.msra.mxu0 0.0
  %413 = vmatprep.subr.mxu0 0.0
  %414 = vmatpush1.msra.mxu0 0.0
  %415 = vmatprep.subr.mxu0 0.0
  %416 = vmatpush1.msra.mxu0 0.0
  %417 = vmatprep.subr.mxu0 0.0
  %418 = vmatpush1.msra.mxu0 0.0
  %419 = vmatprep.subr.mxu0 0.0
  %420 = vmatpush1.msra.mxu0 0.0
  %421 = vmatprep.subr.mxu0 0.0
  %422 = vmatpush1.msra.mxu0 0.0
  %423 = vmatprep.subr.mxu0 0.0
  %424 = vmatpush1.msra.mxu0 0.0
  %425 = vmatprep.subr.mxu0 0.0
  %426 = vmatpush1.msra.mxu0 0.0
  %427 = vmatprep.subr.mxu0 0.0
  %428 = vmatpush1.msra.mxu0 0.0
  %429 = vmatprep.subr.mxu0 0.0
  %430 = vmatpush1.msra.mxu0 0.0
  %431 = vmatprep.subr.mxu0 0.0
  %432 = vmatpush1.msra.mxu0 0.0
  %433 = vmatprep.subr.mxu0 0.0
  %434 = vmatpush1.msra.mxu0 0.0
  %435 = vmatprep.subr.mxu0 0.0
  %436 = vmatpush1.msra.mxu0 0.0
  %437 = vmatprep.subr.mxu0 0.0
  %438 = vmatpush1.msra.mxu0 0.0
  %439 = vmatprep.subr.mxu0 0.0
  %440 = vmatpush1.msra.mxu0 0.0
  %441 = vmatprep.subr.mxu0 0.0
  %442 = vmatpush1.msra.mxu0 0.0
  %443 = vmatprep.subr.mxu0 0.0
  %444 = vmatpush1.msra.mxu0 0.0
  %445 = vmatprep.subr.mxu0 0.0
  %446 = vmatpush1.msra.mxu0 0.0
  %447 = vmatprep.subr.mxu0 0.0
  %448 = vmatpush1.msra.mxu0 0.0
  %449 = vmatprep.subr.mxu0 0.0
  %450 = vmatpush1.msra.mxu0 0.0
  %451 = vmatprep.subr.mxu0 0.0
  %452 = vmatpush1.msra.mxu0 0.0
  %453 = vmatprep.subr.mxu0 0.0
  %454 = vmatpush1.msra.mxu0 0.0
  %455 = vmatprep.mubr.f32.mxu0 0.0
  %456 = vmatmul.mubr.f32.gmra.mrb[0].mxu0 %v389
  %v457 = vpop.f32.mrb[0].mxu0
  %v458 = vadd.f32 %v383, %v457
  %v459 = vpop.f32.mrb[0].mxu0
  %460 = vdwg.mxu0
  %v462 = vlaneseq
  %v463 = vshrl.u32 %v462, 7
  %v464 = vsub.s32 0, %v463
  %v465 = vrot.slane %v54, %v464
  %v467 = vadd.f32 %v458, %v465
  %v468 = vxor.u32 %v467, 2147483648
  %v469 = vmul.f32 %v468, 1.442695
  %v470 = vpow.pop %v469
  %v471 = vadd.f32 %v470, 1.0
  %v472 = vrcp.pop %v471
  %v473 = vmul.f32 1.0, %v472
  %v474 = vmul.f32 %v473, 2.0
  %v475 = vsub.f32 %v474, 1.0
  %477 = vrot.lane.b32.xlu0 %v208, 32
  %v478 = vpop.permute.xlu0 %477
  %v480 = vmul.f32 %v473, %v478
  %482 = vrot.lane.b32.xlu0 %v475, 64
  %v483 = vpop.permute.xlu0 %482
  %v485 = vmul.f32 %v473, %v483
  %487 = vrot.lane.b32.xlu0 %v485, 32
  %v488 = vpop.permute.xlu0 %487
  %v490 = vadd.f32 %v480, %v488
  %v491 = vtanh.pop %v490
  %493 = vrot.lane.b32.xlu0 %v491, 64
  %v494 = vpop.permute.xlu0 %493
  %v496 = vmul.f32 %v473, %v494
  %497 = vmatprep.subr.mxu0 0.0
  %498 = vmatpush1.msra.mxu0 %v45
  %499 = vmatprep.subr.mxu0 0.0
  %500 = vmatpush1.msra.mxu0 %v46
  %501 = vmatprep.subr.mxu0 0.0
  %502 = vmatpush1.msra.mxu0 %v47
  %503 = vmatprep.subr.mxu0 0.0
  %504 = vmatpush1.msra.mxu0 %v48
  %505 = vmatprep.subr.mxu0 0.0
  %506 = vmatpush1.msra.mxu0 0.0
  %507 = vmatprep.subr.mxu0 0.0
  %508 = vmatpush1.msra.mxu0 0.0
  %509 = vmatprep.subr.mxu0 0.0
  %510 = vmatpush1.msra.mxu0 0.0
  %511 = vmatprep.subr.mxu0 0.0
  %512 = vmatpush1.msra.mxu0 0.0
  %513 = vmatprep.subr.mxu0 0.0
  %514 = vmatpush1.msra.mxu0 0.0
  %515 = vmatprep.subr.mxu0 0.0
  %516 = vmatpush1.msra.mxu0 0.0
  %517 = vmatprep.subr.mxu0 0.0
  %518 = vmatpush1.msra.mxu0 0.0
  %519 = vmatprep.subr.mxu0 0.0
  %520 = vmatpush1.msra.mxu0 0.0
  %521 = vmatprep.subr.mxu0 0.0
  %522 = vmatpush1.msra.mxu0 0.0
  %523 = vmatprep.subr.mxu0 0.0
  %524 = vmatpush1.msra.mxu0 0.0
  %525 = vmatprep.subr.mxu0 0.0
  %526 = vmatpush1.msra.mxu0 0.0
  %527 = vmatprep.subr.mxu0 0.0
  %528 = vmatpush1.msra.mxu0 0.0
  %529 = vmatprep.subr.mxu0 0.0
  %530 = vmatpush1.msra.mxu0 0.0
  %531 = vmatprep.subr.mxu0 0.0
  %532 = vmatpush1.msra.mxu0 0.0
  %533 = vmatprep.subr.mxu0 0.0
  %534 = vmatpush1.msra.mxu0 0.0
  %535 = vmatprep.subr.mxu0 0.0
  %536 = vmatpush1.msra.mxu0 0.0
  %537 = vmatprep.subr.mxu0 0.0
  %538 = vmatpush1.msra.mxu0 0.0
  %539 = vmatprep.subr.mxu0 0.0
  %540 = vmatpush1.msra.mxu0 0.0
  %541 = vmatprep.subr.mxu0 0.0
  %542 = vmatpush1.msra.mxu0 0.0
  %543 = vmatprep.subr.mxu0 0.0
  %544 = vmatpush1.msra.mxu0 0.0
  %545 = vmatprep.subr.mxu0 0.0
  %546 = vmatpush1.msra.mxu0 0.0
  %547 = vmatprep.subr.mxu0 0.0
  %548 = vmatpush1.msra.mxu0 0.0
  %549 = vmatprep.subr.mxu0 0.0
  %550 = vmatpush1.msra.mxu0 0.0
  %551 = vmatprep.subr.mxu0 0.0
  %552 = vmatpush1.msra.mxu0 0.0
  %553 = vmatprep.subr.mxu0 0.0
  %554 = vmatpush1.msra.mxu0 0.0
  %555 = vmatprep.subr.mxu0 0.0
  %556 = vmatpush1.msra.mxu0 0.0
  %557 = vmatprep.subr.mxu0 0.0
  %558 = vmatpush1.msra.mxu0 0.0
  %559 = vmatprep.subr.mxu0 0.0
  %560 = vmatpush1.msra.mxu0 0.0
  %561 = vmatprep.mubr.f32.mxu0 0.0
  %562 = vmatmul.mubr.f32.gmra.mrb[0].mxu0 %v389
  %v563 = vpop.f32.mrb[0].mxu0
  %v564 = vadd.f32 0.0, %v563
  %v565 = vpop.f32.mrb[0].mxu0
  %566 = vdwg.mxu0
  %v567 = vadd.f32 %v170, %v564
  %v568 = vxor.u32 %v567, 2147483648
  %v569 = vmul.f32 %v568, 1.442695
  %v570 = vpow.pop %v569
  %v571 = vadd.f32 %v570, 1.0
  %v572 = vrcp.pop %v571
  %v573 = vmul.f32 1.0, %v572
  %v574 = vmul.f32 %v573, 2.0
  %v575 = vsub.f32 %v574, 1.0
  %v576 = vmul.f32 %v573, %v306
  %578 = vrot.lane.b32.xlu0 %v575, 64
  %v579 = vpop.permute.xlu0 %578
  %v581 = vmul.f32 %v573, %v579
  %583 = vrot.lane.b32.xlu0 %v581, 32
  %v584 = vpop.permute.xlu0 %583
  %v586 = vadd.f32 %v576, %v584
  %v587 = vtanh.pop %v586
  %589 = vrot.lane.b32.xlu0 %v587, 64
  %v590 = vpop.permute.xlu0 %589
  %v592 = vmul.f32 %v573, %v590
  %594 = vrot.lane.b32.xlu0 %v496, 32
  %v595 = vpop.permute.xlu0 %594
  %v596 = vsel %vm209, %v595, 0
  %598 = vmatprep.subr.mxu0 0.0
  %599 = vmatpush1.msra.mxu0 %v49
  %600 = vmatprep.subr.mxu0 0.0
  %601 = vmatpush1.msra.mxu0 %v50
  %602 = vmatprep.subr.mxu0 0.0
  %603 = vmatpush1.msra.mxu0 %v51
  %604 = vmatprep.subr.mxu0 0.0
  %605 = vmatpush1.msra.mxu0 %v52
  %606 = vmatprep.subr.mxu0 0.0
  %607 = vmatpush1.msra.mxu0 0.0
  %608 = vmatprep.subr.mxu0 0.0
  %609 = vmatpush1.msra.mxu0 0.0
  %610 = vmatprep.subr.mxu0 0.0
  %611 = vmatpush1.msra.mxu0 0.0
  %612 = vmatprep.subr.mxu0 0.0
  %613 = vmatpush1.msra.mxu0 0.0
  %614 = vmatprep.subr.mxu0 0.0
  %615 = vmatpush1.msra.mxu0 0.0
  %616 = vmatprep.subr.mxu0 0.0
  %617 = vmatpush1.msra.mxu0 0.0
  %618 = vmatprep.subr.mxu0 0.0
  %619 = vmatpush1.msra.mxu0 0.0
  %620 = vmatprep.subr.mxu0 0.0
  %621 = vmatpush1.msra.mxu0 0.0
  %622 = vmatprep.subr.mxu0 0.0
  %623 = vmatpush1.msra.mxu0 0.0
  %624 = vmatprep.subr.mxu0 0.0
  %625 = vmatpush1.msra.mxu0 0.0
  %626 = vmatprep.subr.mxu0 0.0
  %627 = vmatpush1.msra.mxu0 0.0
  %628 = vmatprep.subr.mxu0 0.0
  %629 = vmatpush1.msra.mxu0 0.0
  %630 = vmatprep.subr.mxu0 0.0
  %631 = vmatpush1.msra.mxu0 0.0
  %632 = vmatprep.subr.mxu0 0.0
  %633 = vmatpush1.msra.mxu0 0.0
  %634 = vmatprep.subr.mxu0 0.0
  %635 = vmatpush1.msra.mxu0 0.0
  %636 = vmatprep.subr.mxu0 0.0
  %637 = vmatpush1.msra.mxu0 0.0
  %638 = vmatprep.subr.mxu0 0.0
  %639 = vmatpush1.msra.mxu0 0.0
  %640 = vmatprep.subr.mxu0 0.0
  %641 = vmatpush1.msra.mxu0 0.0
  %642 = vmatprep.subr.mxu0 0.0
  %643 = vmatpush1.msra.mxu0 0.0
  %644 = vmatprep.subr.mxu0 0.0
  %645 = vmatpush1.msra.mxu0 0.0
  %646 = vmatprep.subr.mxu0 0.0
  %647 = vmatpush1.msra.mxu0 0.0
  %648 = vmatprep.subr.mxu0 0.0
  %649 = vmatpush1.msra.mxu0 0.0
  %650 = vmatprep.subr.mxu0 0.0
  %651 = vmatpush1.msra.mxu0 0.0
  %652 = vmatprep.subr.mxu0 0.0
  %653 = vmatpush1.msra.mxu0 0.0
  %654 = vmatprep.subr.mxu0 0.0
  %655 = vmatpush1.msra.mxu0 0.0
  %656 = vmatprep.subr.mxu0 0.0
  %657 = vmatpush1.msra.mxu0 0.0
  %658 = vmatprep.subr.mxu0 0.0
  %659 = vmatpush1.msra.mxu0 0.0
  %660 = vmatprep.subr.mxu0 0.0
  %661 = vmatpush1.msra.mxu0 0.0
  %662 = vmatprep.mubr.f32.mxu0 0.0
  %663 = vmatmul.mubr.f32.gmra.mrb[0].mxu0 %v596
  %v664 = vpop.f32.mrb[0].mxu0
  %v665 = vadd.f32 0.0, %v664
  %v666 = vpop.f32.mrb[0].mxu0
  %667 = vdwg.mxu0
  %669 = vrot.lane.b32.xlu0 %v592, 32
  %v670 = vpop.permute.xlu0 %669
  %v671 = vsel %vm209, %v670, 0
  %673 = vmatprep.subr.mxu0 0.0
  %674 = vmatpush1.msra.mxu0 %v41
  %675 = vmatprep.subr.mxu0 0.0
  %676 = vmatpush1.msra.mxu0 %v42
  %677 = vmatprep.subr.mxu0 0.0
  %678 = vmatpush1.msra.mxu0 %v43
  %679 = vmatprep.subr.mxu0 0.0
  %680 = vmatpush1.msra.mxu0 %v44
  %681 = vmatprep.subr.mxu0 0.0
  %682 = vmatpush1.msra.mxu0 0.0
  %683 = vmatprep.subr.mxu0 0.0
  %684 = vmatpush1.msra.mxu0 0.0
  %685 = vmatprep.subr.mxu0 0.0
  %686 = vmatpush1.msra.mxu0 0.0
  %687 = vmatprep.subr.mxu0 0.0
  %688 = vmatpush1.msra.mxu0 0.0
  %689 = vmatprep.subr.mxu0 0.0
  %690 = vmatpush1.msra.mxu0 0.0
  %691 = vmatprep.subr.mxu0 0.0
  %692 = vmatpush1.msra.mxu0 0.0
  %693 = vmatprep.subr.mxu0 0.0
  %694 = vmatpush1.msra.mxu0 0.0
  %695 = vmatprep.subr.mxu0 0.0
  %696 = vmatpush1.msra.mxu0 0.0
  %697 = vmatprep.subr.mxu0 0.0
  %698 = vmatpush1.msra.mxu0 0.0
  %699 = vmatprep.subr.mxu0 0.0
  %700 = vmatpush1.msra.mxu0 0.0
  %701 = vmatprep.subr.mxu0 0.0
  %702 = vmatpush1.msra.mxu0 0.0
  %703 = vmatprep.subr.mxu0 0.0
  %704 = vmatpush1.msra.mxu0 0.0
  %705 = vmatprep.subr.mxu0 0.0
  %706 = vmatpush1.msra.mxu0 0.0
  %707 = vmatprep.subr.mxu0 0.0
  %708 = vmatpush1.msra.mxu0 0.0
  %709 = vmatprep.subr.mxu0 0.0
  %710 = vmatpush1.msra.mxu0 0.0
  %711 = vmatprep.subr.mxu0 0.0
  %712 = vmatpush1.msra.mxu0 0.0
  %713 = vmatprep.subr.mxu0 0.0
  %714 = vmatpush1.msra.mxu0 0.0
  %715 = vmatprep.subr.mxu0 0.0
  %716 = vmatpush1.msra.mxu0 0.0
  %717 = vmatprep.subr.mxu0 0.0
  %718 = vmatpush1.msra.mxu0 0.0
  %719 = vmatprep.subr.mxu0 0.0
  %720 = vmatpush1.msra.mxu0 0.0
  %721 = vmatprep.subr.mxu0 0.0
  %722 = vmatpush1.msra.mxu0 0.0
  %723 = vmatprep.subr.mxu0 0.0
  %724 = vmatpush1.msra.mxu0 0.0
  %725 = vmatprep.subr.mxu0 0.0
  %726 = vmatpush1.msra.mxu0 0.0
  %727 = vmatprep.subr.mxu0 0.0
  %728 = vmatpush1.msra.mxu0 0.0
  %729 = vmatprep.subr.mxu0 0.0
  %730 = vmatpush1.msra.mxu0 0.0
  %731 = vmatprep.subr.mxu0 0.0
  %732 = vmatpush1.msra.mxu0 0.0
  %733 = vmatprep.subr.mxu0 0.0
  %734 = vmatpush1.msra.mxu0 0.0
  %735 = vmatprep.subr.mxu0 0.0
  %736 = vmatpush1.msra.mxu0 0.0
  %737 = vmatprep.mubr.f32.mxu0 0.0
  %738 = vmatmul.mubr.f32.gmra.mrb[0].mxu0 %v671
  %v739 = vpop.f32.mrb[0].mxu0
  %v740 = vadd.f32 %v665, %v739
  %v741 = vpop.f32.mrb[0].mxu0
  %742 = vdwg.mxu0
  %v743 = vadd.f32 %v740, %v465
  %v744 = vxor.u32 %v743, 2147483648
  %v745 = vmul.f32 %v744, 1.442695
  %v746 = vpow.pop %v745
  %v747 = vadd.f32 %v746, 1.0
  %v748 = vrcp.pop %v747
  %v749 = vmul.f32 1.0, %v748
  %v750 = vmul.f32 %v749, 2.0
  %v751 = vsub.f32 %v750, 1.0
  %v752 = vmul.f32 %v749, %v490
  %754 = vrot.lane.b32.xlu0 %v751, 64
  %v755 = vpop.permute.xlu0 %754
  %v757 = vmul.f32 %v749, %v755
  %759 = vrot.lane.b32.xlu0 %v757, 32
  %v760 = vpop.permute.xlu0 %759
  %v762 = vadd.f32 %v752, %v760
  %v763 = vtanh.pop %v762
  %765 = vrot.lane.b32.xlu0 %v763, 64
  %v766 = vpop.permute.xlu0 %765
  %v768 = vmul.f32 %v749, %v766
  %769 = vmatprep.subr.mxu0 0.0
  %770 = vmatpush1.msra.mxu0 %v45
  %771 = vmatprep.subr.mxu0 0.0
  %772 = vmatpush1.msra.mxu0 %v46
  %773 = vmatprep.subr.mxu0 0.0
  %774 = vmatpush1.msra.mxu0 %v47
  %775 = vmatprep.subr.mxu0 0.0
  %776 = vmatpush1.msra.mxu0 %v48
  %777 = vmatprep.subr.mxu0 0.0
  %778 = vmatpush1.msra.mxu0 0.0
  %779 = vmatprep.subr.mxu0 0.0
  %780 = vmatpush1.msra.mxu0 0.0
  %781 = vmatprep.subr.mxu0 0.0
  %782 = vmatpush1.msra.mxu0 0.0
  %783 = vmatprep.subr.mxu0 0.0
  %784 = vmatpush1.msra.mxu0 0.0
  %785 = vmatprep.subr.mxu0 0.0
  %786 = vmatpush1.msra.mxu0 0.0
  %787 = vmatprep.subr.mxu0 0.0
  %788 = vmatpush1.msra.mxu0 0.0
  %789 = vmatprep.subr.mxu0 0.0
  %790 = vmatpush1.msra.mxu0 0.0
  %791 = vmatprep.subr.mxu0 0.0
  %792 = vmatpush1.msra.mxu0 0.0
  %793 = vmatprep.subr.mxu0 0.0
  %794 = vmatpush1.msra.mxu0 0.0
  %795 = vmatprep.subr.mxu0 0.0
  %796 = vmatpush1.msra.mxu0 0.0
  %797 = vmatprep.subr.mxu0 0.0
  %798 = vmatpush1.msra.mxu0 0.0
  %799 = vmatprep.subr.mxu0 0.0
  %800 = vmatpush1.msra.mxu0 0.0
  %801 = vmatprep.subr.mxu0 0.0
  %802 = vmatpush1.msra.mxu0 0.0
  %803 = vmatprep.subr.mxu0 0.0
  %804 = vmatpush1.msra.mxu0 0.0
  %805 = vmatprep.subr.mxu0 0.0
  %806 = vmatpush1.msra.mxu0 0.0
  %807 = vmatprep.subr.mxu0 0.0
  %808 = vmatpush1.msra.mxu0 0.0
  %809 = vmatprep.subr.mxu0 0.0
  %810 = vmatpush1.msra.mxu0 0.0
  %811 = vmatprep.subr.mxu0 0.0
  %812 = vmatpush1.msra.mxu0 0.0
  %813 = vmatprep.subr.mxu0 0.0
  %814 = vmatpush1.msra.mxu0 0.0
  %815 = vmatprep.subr.mxu0 0.0
  %816 = vmatpush1.msra.mxu0 0.0
  %817 = vmatprep.subr.mxu0 0.0
  %818 = vmatpush1.msra.mxu0 0.0
  %819 = vmatprep.subr.mxu0 0.0
  %820 = vmatpush1.msra.mxu0 0.0
  %821 = vmatprep.subr.mxu0 0.0
  %822 = vmatpush1.msra.mxu0 0.0
  %823 = vmatprep.subr.mxu0 0.0
  %824 = vmatpush1.msra.mxu0 0.0
  %825 = vmatprep.subr.mxu0 0.0
  %826 = vmatpush1.msra.mxu0 0.0
  %827 = vmatprep.subr.mxu0 0.0
  %828 = vmatpush1.msra.mxu0 0.0
  %829 = vmatprep.subr.mxu0 0.0
  %830 = vmatpush1.msra.mxu0 0.0
  %831 = vmatprep.subr.mxu0 0.0
  %832 = vmatpush1.msra.mxu0 0.0
  %833 = vmatprep.mubr.f32.mxu0 0.0
  %834 = vmatmul.mubr.f32.gmra.mrb[0].mxu0 %v671
  %v835 = vpop.f32.mrb[0].mxu0
  %v836 = vadd.f32 0.0, %v835
  %v837 = vpop.f32.mrb[0].mxu0
  %838 = vdwg.mxu0
  %v839 = vadd.f32 %v175, %v836
  %v840 = vxor.u32 %v839, 2147483648
  %v841 = vmul.f32 %v840, 1.442695
  %v842 = vpow.pop %v841
  %v843 = vadd.f32 %v842, 1.0
  %v844 = vrcp.pop %v843
  %v845 = vmul.f32 1.0, %v844
  %v846 = vmul.f32 %v845, 2.0
  %v847 = vsub.f32 %v846, 1.0
  %v848 = vmul.f32 %v845, %v586
  %850 = vrot.lane.b32.xlu0 %v847, 64
  %v851 = vpop.permute.xlu0 %850
  %v853 = vmul.f32 %v845, %v851
  %855 = vrot.lane.b32.xlu0 %v853, 32
  %v856 = vpop.permute.xlu0 %855
  %v858 = vadd.f32 %v848, %v856
  %v859 = vtanh.pop %v858
  %861 = vrot.lane.b32.xlu0 %v859, 64
  %v862 = vpop.permute.xlu0 %861
  %v864 = vmul.f32 %v845, %v862
  %866 = vrot.lane.b32.xlu0 %v768, 32
  %v867 = vpop.permute.xlu0 %866
  %v868 = vsel %vm209, %v867, 0
  %870 = vmatprep.subr.mxu0 0.0
  %871 = vmatpush1.msra.mxu0 %v49
  %872 = vmatprep.subr.mxu0 0.0
  %873 = vmatpush1.msra.mxu0 %v50
  %874 = vmatprep.subr.mxu0 0.0
  %875 = vmatpush1.msra.mxu0 %v51
  %876 = vmatprep.subr.mxu0 0.0
  %877 = vmatpush1.msra.mxu0 %v52
  %878 = vmatprep.subr.mxu0 0.0
  %879 = vmatpush1.msra.mxu0 0.0
  %880 = vmatprep.subr.mxu0 0.0
  %881 = vmatpush1.msra.mxu0 0.0
  %882 = vmatprep.subr.mxu0 0.0
  %883 = vmatpush1.msra.mxu0 0.0
  %884 = vmatprep.subr.mxu0 0.0
  %885 = vmatpush1.msra.mxu0 0.0
  %886 = vmatprep.subr.mxu0 0.0
  %887 = vmatpush1.msra.mxu0 0.0
  %888 = vmatprep.subr.mxu0 0.0
  %889 = vmatpush1.msra.mxu0 0.0
  %890 = vmatprep.subr.mxu0 0.0
  %891 = vmatpush1.msra.mxu0 0.0
  %892 = vmatprep.subr.mxu0 0.0
  %893 = vmatpush1.msra.mxu0 0.0
  %894 = vmatprep.subr.mxu0 0.0
  %895 = vmatpush1.msra.mxu0 0.0
  %896 = vmatprep.subr.mxu0 0.0
  %897 = vmatpush1.msra.mxu0 0.0
  %898 = vmatprep.subr.mxu0 0.0
  %899 = vmatpush1.msra.mxu0 0.0
  %900 = vmatprep.subr.mxu0 0.0
  %901 = vmatpush1.msra.mxu0 0.0
  %902 = vmatprep.subr.mxu0 0.0
  %903 = vmatpush1.msra.mxu0 0.0
  %904 = vmatprep.subr.mxu0 0.0
  %905 = vmatpush1.msra.mxu0 0.0
  %906 = vmatprep.subr.mxu0 0.0
  %907 = vmatpush1.msra.mxu0 0.0
  %908 = vmatprep.subr.mxu0 0.0
  %909 = vmatpush1.msra.mxu0 0.0
  %910 = vmatprep.subr.mxu0 0.0
  %911 = vmatpush1.msra.mxu0 0.0
  %912 = vmatprep.subr.mxu0 0.0
  %913 = vmatpush1.msra.mxu0 0.0
  %914 = vmatprep.subr.mxu0 0.0
  %915 = vmatpush1.msra.mxu0 0.0
  %916 = vmatprep.subr.mxu0 0.0
  %917 = vmatpush1.msra.mxu0 0.0
  %918 = vmatprep.subr.mxu0 0.0
  %919 = vmatpush1.msra.mxu0 0.0
  %920 = vmatprep.subr.mxu0 0.0
  %921 = vmatpush1.msra.mxu0 0.0
  %922 = vmatprep.subr.mxu0 0.0
  %923 = vmatpush1.msra.mxu0 0.0
  %924 = vmatprep.subr.mxu0 0.0
  %925 = vmatpush1.msra.mxu0 0.0
  %926 = vmatprep.subr.mxu0 0.0
  %927 = vmatpush1.msra.mxu0 0.0
  %928 = vmatprep.subr.mxu0 0.0
  %929 = vmatpush1.msra.mxu0 0.0
  %930 = vmatprep.subr.mxu0 0.0
  %931 = vmatpush1.msra.mxu0 0.0
  %932 = vmatprep.subr.mxu0 0.0
  %933 = vmatpush1.msra.mxu0 0.0
  %934 = vmatprep.mubr.f32.mxu0 0.0
  %935 = vmatmul.mubr.f32.gmra.mrb[0].mxu0 %v868
  %v936 = vpop.f32.mrb[0].mxu0
  %v937 = vadd.f32 0.0, %v936
  %v938 = vpop.f32.mrb[0].mxu0
  %939 = vdwg.mxu0
  %941 = vrot.lane.b32.xlu0 %v864, 32
  %v942 = vpop.permute.xlu0 %941
  %v943 = vsel %vm209, %v942, 0
  %945 = vmatprep.subr.mxu0 0.0
  %946 = vmatpush1.msra.mxu0 %v41
  %947 = vmatprep.subr.mxu0 0.0
  %948 = vmatpush1.msra.mxu0 %v42
  %949 = vmatprep.subr.mxu0 0.0
  %950 = vmatpush1.msra.mxu0 %v43
  %951 = vmatprep.subr.mxu0 0.0
  %952 = vmatpush1.msra.mxu0 %v44
  %953 = vmatprep.subr.mxu0 0.0
  %954 = vmatpush1.msra.mxu0 0.0
  %955 = vmatprep.subr.mxu0 0.0
  %956 = vmatpush1.msra.mxu0 0.0
  %957 = vmatprep.subr.mxu0 0.0
  %958 = vmatpush1.msra.mxu0 0.0
  %959 = vmatprep.subr.mxu0 0.0
  %960 = vmatpush1.msra.mxu0 0.0
  %961 = vmatprep.subr.mxu0 0.0
  %962 = vmatpush1.msra.mxu0 0.0
  %963 = vmatprep.subr.mxu0 0.0
  %964 = vmatpush1.msra.mxu0 0.0
  %965 = vmatprep.subr.mxu0 0.0
  %966 = vmatpush1.msra.mxu0 0.0
  %967 = vmatprep.subr.mxu0 0.0
  %968 = vmatpush1.msra.mxu0 0.0
  %969 = vmatprep.subr.mxu0 0.0
  %970 = vmatpush1.msra.mxu0 0.0
  %971 = vmatprep.subr.mxu0 0.0
  %972 = vmatpush1.msra.mxu0 0.0
  %973 = vmatprep.subr.mxu0 0.0
  %974 = vmatpush1.msra.mxu0 0.0
  %975 = vmatprep.subr.mxu0 0.0
  %976 = vmatpush1.msra.mxu0 0.0
  %977 = vmatprep.subr.mxu0 0.0
  %978 = vmatpush1.msra.mxu0 0.0
  %979 = vmatprep.subr.mxu0 0.0
  %980 = vmatpush1.msra.mxu0 0.0
  %981 = vmatprep.subr.mxu0 0.0
  %982 = vmatpush1.msra.mxu0 0.0
  %983 = vmatprep.subr.mxu0 0.0
  %984 = vmatpush1.msra.mxu0 0.0
  %985 = vmatprep.subr.mxu0 0.0
  %986 = vmatpush1.msra.mxu0 0.0
  %987 = vmatprep.subr.mxu0 0.0
  %988 = vmatpush1.msra.mxu0 0.0
  %989 = vmatprep.subr.mxu0 0.0
  %990 = vmatpush1.msra.mxu0 0.0
  %991 = vmatprep.subr.mxu0 0.0
  %992 = vmatpush1.msra.mxu0 0.0
  %993 = vmatprep.subr.mxu0 0.0
  %994 = vmatpush1.msra.mxu0 0.0
  %995 = vmatprep.subr.mxu0 0.0
  %996 = vmatpush1.msra.mxu0 0.0
  %997 = vmatprep.subr.mxu0 0.0
  %998 = vmatpush1.msra.mxu0 0.0
  %999 = vmatprep.subr.mxu0 0.0
  %1000 = vmatpush1.msra.mxu0 0.0
  %1001 = vmatprep.subr.mxu0 0.0
  %1002 = vmatpush1.msra.mxu0 0.0
  %1003 = vmatprep.subr.mxu0 0.0
  %1004 = vmatpush1.msra.mxu0 0.0
  %1005 = vmatprep.subr.mxu0 0.0
  %1006 = vmatpush1.msra.mxu0 0.0
  %1007 = vmatprep.subr.mxu0 0.0
  %1008 = vmatpush1.msra.mxu0 0.0
  %1009 = vmatprep.mubr.f32.mxu0 0.0
  %1010 = vmatmul.mubr.f32.gmra.mrb[0].mxu0 %v943
  %v1011 = vpop.f32.mrb[0].mxu0
  %v1012 = vadd.f32 %v937, %v1011
  %v1013 = vpop.f32.mrb[0].mxu0
  %1014 = vdwg.mxu0
  %v1015 = vadd.f32 %v1012, %v465
  %v1016 = vxor.u32 %v1015, 2147483648
  %v1017 = vmul.f32 %v1016, 1.442695
  %v1018 = vpow.pop %v1017
  %v1019 = vadd.f32 %v1018, 1.0
  %v1020 = vrcp.pop %v1019
  %v1021 = vmul.f32 1.0, %v1020
  %v1022 = vmul.f32 %v1021, 2.0
  %v1023 = vsub.f32 %v1022, 1.0
  %v1024 = vmul.f32 %v1021, %v762
  %1026 = vrot.lane.b32.xlu0 %v1023, 64
  %v1027 = vpop.permute.xlu0 %1026
  %v1029 = vmul.f32 %v1021, %v1027
  %1031 = vrot.lane.b32.xlu0 %v1029, 32
  %v1032 = vpop.permute.xlu0 %1031
  %v1034 = vadd.f32 %v1024, %v1032
  %v1035 = vtanh.pop %v1034
  %1037 = vrot.lane.b32.xlu0 %v1035, 64
  %v1038 = vpop.permute.xlu0 %1037
  %v1040 = vmul.f32 %v1021, %v1038
  %1041 = vmatprep.subr.mxu0 0.0
  %1042 = vmatpush1.msra.mxu0 %v45
  %1043 = vmatprep.subr.mxu0 0.0
  %1044 = vmatpush1.msra.mxu0 %v46
  %1045 = vmatprep.subr.mxu0 0.0
  %1046 = vmatpush1.msra.mxu0 %v47
  %1047 = vmatprep.subr.mxu0 0.0
  %1048 = vmatpush1.msra.mxu0 %v48
  %1049 = vmatprep.subr.mxu0 0.0
  %1050 = vmatpush1.msra.mxu0 0.0
  %1051 = vmatprep.subr.mxu0 0.0
  %1052 = vmatpush1.msra.mxu0 0.0
  %1053 = vmatprep.subr.mxu0 0.0
  %1054 = vmatpush1.msra.mxu0 0.0
  %1055 = vmatprep.subr.mxu0 0.0
  %1056 = vmatpush1.msra.mxu0 0.0
  %1057 = vmatprep.subr.mxu0 0.0
  %1058 = vmatpush1.msra.mxu0 0.0
  %1059 = vmatprep.subr.mxu0 0.0
  %1060 = vmatpush1.msra.mxu0 0.0
  %1061 = vmatprep.subr.mxu0 0.0
  %1062 = vmatpush1.msra.mxu0 0.0
  %1063 = vmatprep.subr.mxu0 0.0
  %1064 = vmatpush1.msra.mxu0 0.0
  %1065 = vmatprep.subr.mxu0 0.0
  %1066 = vmatpush1.msra.mxu0 0.0
  %1067 = vmatprep.subr.mxu0 0.0
  %1068 = vmatpush1.msra.mxu0 0.0
  %1069 = vmatprep.subr.mxu0 0.0
  %1070 = vmatpush1.msra.mxu0 0.0
  %1071 = vmatprep.subr.mxu0 0.0
  %1072 = vmatpush1.msra.mxu0 0.0
  %1073 = vmatprep.subr.mxu0 0.0
  %1074 = vmatpush1.msra.mxu0 0.0
  %1075 = vmatprep.subr.mxu0 0.0
  %1076 = vmatpush1.msra.mxu0 0.0
  %1077 = vmatprep.subr.mxu0 0.0
  %1078 = vmatpush1.msra.mxu0 0.0
  %1079 = vmatprep.subr.mxu0 0.0
  %1080 = vmatpush1.msra.mxu0 0.0
  %1081 = vmatprep.subr.mxu0 0.0
  %1082 = vmatpush1.msra.mxu0 0.0
  %1083 = vmatprep.subr.mxu0 0.0
  %1084 = vmatpush1.msra.mxu0 0.0
  %1085 = vmatprep.subr.mxu0 0.0
  %1086 = vmatpush1.msra.mxu0 0.0
  %1087 = vmatprep.subr.mxu0 0.0
  %1088 = vmatpush1.msra.mxu0 0.0
  %1089 = vmatprep.subr.mxu0 0.0
  %1090 = vmatpush1.msra.mxu0 0.0
  %1091 = vmatprep.subr.mxu0 0.0
  %1092 = vmatpush1.msra.mxu0 0.0
  %1093 = vmatprep.subr.mxu0 0.0
  %1094 = vmatpush1.msra.mxu0 0.0
  %1095 = vmatprep.subr.mxu0 0.0
  %1096 = vmatpush1.msra.mxu0 0.0
  %1097 = vmatprep.subr.mxu0 0.0
  %1098 = vmatpush1.msra.mxu0 0.0
  %1099 = vmatprep.subr.mxu0 0.0
  %1100 = vmatpush1.msra.mxu0 0.0
  %1101 = vmatprep.subr.mxu0 0.0
  %1102 = vmatpush1.msra.mxu0 0.0
  %1103 = vmatprep.subr.mxu0 0.0
  %1104 = vmatpush1.msra.mxu0 0.0
  %1105 = vmatprep.mubr.f32.mxu0 0.0
  %1106 = vmatmul.mubr.f32.gmra.mrb[0].mxu0 %v943
  %v1107 = vpop.f32.mrb[0].mxu0
  %v1108 = vadd.f32 0.0, %v1107
  %v1109 = vpop.f32.mrb[0].mxu0
  %1110 = vdwg.mxu0
  %v1111 = vadd.f32 %v180, %v1108
  %v1112 = vxor.u32 %v1111, 2147483648
  %v1113 = vmul.f32 %v1112, 1.442695
  %v1114 = vpow.pop %v1113
  %v1115 = vadd.f32 %v1114, 1.0
  %v1116 = vrcp.pop %v1115
  %v1117 = vmul.f32 1.0, %v1116
  %v1118 = vmul.f32 %v1117, 2.0
  %v1119 = vsub.f32 %v1118, 1.0
  %v1120 = vmul.f32 %v1117, %v858
  %1122 = vrot.lane.b32.xlu0 %v1119, 64
  %v1123 = vpop.permute.xlu0 %1122
  %v1125 = vmul.f32 %v1117, %v1123
  %1127 = vrot.lane.b32.xlu0 %v1125, 32
  %v1128 = vpop.permute.xlu0 %1127
  %v1130 = vadd.f32 %v1120, %v1128
  %v1131 = vtanh.pop %v1130
  %1133 = vrot.lane.b32.xlu0 %v1131, 64
  %v1134 = vpop.permute.xlu0 %1133
  %v1136 = vmul.f32 %v1117, %v1134
  %1138 = vrot.lane.b32.xlu0 %v1040, 32
  %v1139 = vpop.permute.xlu0 %1138
  %v1140 = vsel %vm209, %v1139, 0
  %1142 = vmatprep.subr.mxu0 0.0
  %1143 = vmatpush1.msra.mxu0 %v49
  %1144 = vmatprep.subr.mxu0 0.0
  %1145 = vmatpush1.msra.mxu0 %v50
  %1146 = vmatprep.subr.mxu0 0.0
  %1147 = vmatpush1.msra.mxu0 %v51
  %1148 = vmatprep.subr.mxu0 0.0
  %1149 = vmatpush1.msra.mxu0 %v52
  %1150 = vmatprep.subr.mxu0 0.0
  %1151 = vmatpush1.msra.mxu0 0.0
  %1152 = vmatprep.subr.mxu0 0.0
  %1153 = vmatpush1.msra.mxu0 0.0
  %1154 = vmatprep.subr.mxu0 0.0
  %1155 = vmatpush1.msra.mxu0 0.0
  %1156 = vmatprep.subr.mxu0 0.0
  %1157 = vmatpush1.msra.mxu0 0.0
  %1158 = vmatprep.subr.mxu0 0.0
  %1159 = vmatpush1.msra.mxu0 0.0
  %1160 = vmatprep.subr.mxu0 0.0
  %1161 = vmatpush1.msra.mxu0 0.0
  %1162 = vmatprep.subr.mxu0 0.0
  %1163 = vmatpush1.msra.mxu0 0.0
  %1164 = vmatprep.subr.mxu0 0.0
  %1165 = vmatpush1.msra.mxu0 0.0
  %1166 = vmatprep.subr.mxu0 0.0
  %1167 = vmatpush1.msra.mxu0 0.0
  %1168 = vmatprep.subr.mxu0 0.0
  %1169 = vmatpush1.msra.mxu0 0.0
  %1170 = vmatprep.subr.mxu0 0.0
  %1171 = vmatpush1.msra.mxu0 0.0
  %1172 = vmatprep.subr.mxu0 0.0
  %1173 = vmatpush1.msra.mxu0 0.0
  %1174 = vmatprep.subr.mxu0 0.0
  %1175 = vmatpush1.msra.mxu0 0.0
  %1176 = vmatprep.subr.mxu0 0.0
  %1177 = vmatpush1.msra.mxu0 0.0
  %1178 = vmatprep.subr.mxu0 0.0
  %1179 = vmatpush1.msra.mxu0 0.0
  %1180 = vmatprep.subr.mxu0 0.0
  %1181 = vmatpush1.msra.mxu0 0.0
  %1182 = vmatprep.subr.mxu0 0.0
  %1183 = vmatpush1.msra.mxu0 0.0
  %1184 = vmatprep.subr.mxu0 0.0
  %1185 = vmatpush1.msra.mxu0 0.0
  %1186 = vmatprep.subr.mxu0 0.0
  %1187 = vmatpush1.msra.mxu0 0.0
  %1188 = vmatprep.subr.mxu0 0.0
  %1189 = vmatpush1.msra.mxu0 0.0
  %1190 = vmatprep.subr.mxu0 0.0
  %1191 = vmatpush1.msra.mxu0 0.0
  %1192 = vmatprep.subr.mxu0 0.0
  %1193 = vmatpush1.msra.mxu0 0.0
  %1194 = vmatprep.subr.mxu0 0.0
  %1195 = vmatpush1.msra.mxu0 0.0
  %1196 = vmatprep.subr.mxu0 0.0
  %1197 = vmatpush1.msra.mxu0 0.0
  %1198 = vmatprep.subr.mxu0 0.0
  %1199 = vmatpush1.msra.mxu0 0.0
  %1200 = vmatprep.subr.mxu0 0.0
  %1201 = vmatpush1.msra.mxu0 0.0
  %1202 = vmatprep.subr.mxu0 0.0
  %1203 = vmatpush1.msra.mxu0 0.0
  %1204 = vmatprep.subr.mxu0 0.0
  %1205 = vmatpush1.msra.mxu0 0.0
  %1206 = vmatprep.mubr.f32.mxu0 0.0
  %1207 = vmatmul.mubr.f32.gmra.mrb[0].mxu0 %v1140
  %v1208 = vpop.f32.mrb[0].mxu0
  %v1209 = vadd.f32 0.0, %v1208
  %v1210 = vpop.f32.mrb[0].mxu0
  %1211 = vdwg.mxu0
  %1213 = vrot.lane.b32.xlu0 %v1136, 32
  %v1214 = vpop.permute.xlu0 %1213
  %v1215 = vsel %vm209, %v1214, 0
  %1217 = vmatprep.subr.mxu0 0.0
  %1218 = vmatpush1.msra.mxu0 %v41
  %1219 = vmatprep.subr.mxu0 0.0
  %1220 = vmatpush1.msra.mxu0 %v42
  %1221 = vmatprep.subr.mxu0 0.0
  %1222 = vmatpush1.msra.mxu0 %v43
  %1223 = vmatprep.subr.mxu0 0.0
  %1224 = vmatpush1.msra.mxu0 %v44
  %1225 = vmatprep.subr.mxu0 0.0
  %1226 = vmatpush1.msra.mxu0 0.0
  %1227 = vmatprep.subr.mxu0 0.0
  %1228 = vmatpush1.msra.mxu0 0.0
  %1229 = vmatprep.subr.mxu0 0.0
  %1230 = vmatpush1.msra.mxu0 0.0
  %1231 = vmatprep.subr.mxu0 0.0
  %1232 = vmatpush1.msra.mxu0 0.0
  %1233 = vmatprep.subr.mxu0 0.0
  %1234 = vmatpush1.msra.mxu0 0.0
  %1235 = vmatprep.subr.mxu0 0.0
  %1236 = vmatpush1.msra.mxu0 0.0
  %1237 = vmatprep.subr.mxu0 0.0
  %1238 = vmatpush1.msra.mxu0 0.0
  %1239 = vmatprep.subr.mxu0 0.0
  %1240 = vmatpush1.msra.mxu0 0.0
  %1241 = vmatprep.subr.mxu0 0.0
  %1242 = vmatpush1.msra.mxu0 0.0
  %1243 = vmatprep.subr.mxu0 0.0
  %1244 = vmatpush1.msra.mxu0 0.0
  %1245 = vmatprep.subr.mxu0 0.0
  %1246 = vmatpush1.msra.mxu0 0.0
  %1247 = vmatprep.subr.mxu0 0.0
  %1248 = vmatpush1.msra.mxu0 0.0
  %1249 = vmatprep.subr.mxu0 0.0
  %1250 = vmatpush1.msra.mxu0 0.0
  %1251 = vmatprep.subr.mxu0 0.0
  %1252 = vmatpush1.msra.mxu0 0.0
  %1253 = vmatprep.subr.mxu0 0.0
  %1254 = vmatpush1.msra.mxu0 0.0
  %1255 = vmatprep.subr.mxu0 0.0
  %1256 = vmatpush1.msra.mxu0 0.0
  %1257 = vmatprep.subr.mxu0 0.0
  %1258 = vmatpush1.msra.mxu0 0.0
  %1259 = vmatprep.subr.mxu0 0.0
  %1260 = vmatpush1.msra.mxu0 0.0
  %1261 = vmatprep.subr.mxu0 0.0
  %1262 = vmatpush1.msra.mxu0 0.0
  %1263 = vmatprep.subr.mxu0 0.0
  %1264 = vmatpush1.msra.mxu0 0.0
  %1265 = vmatprep.subr.mxu0 0.0
  %1266 = vmatpush1.msra.mxu0 0.0
  %1267 = vmatprep.subr.mxu0 0.0
  %1268 = vmatpush1.msra.mxu0 0.0
  %1269 = vmatprep.subr.mxu0 0.0
  %1270 = vmatpush1.msra.mxu0 0.0
  %1271 = vmatprep.subr.mxu0 0.0
  %1272 = vmatpush1.msra.mxu0 0.0
  %1273 = vmatprep.subr.mxu0 0.0
  %1274 = vmatpush1.msra.mxu0 0.0
  %1275 = vmatprep.subr.mxu0 0.0
  %1276 = vmatpush1.msra.mxu0 0.0
  %1277 = vmatprep.subr.mxu0 0.0
  %1278 = vmatpush1.msra.mxu0 0.0
  %1279 = vmatprep.subr.mxu0 0.0
  %1280 = vmatpush1.msra.mxu0 0.0
  %1281 = vmatprep.mubr.f32.mxu0 0.0
  %1282 = vmatmul.mubr.f32.gmra.mrb[0].mxu0 %v1215
  %v1283 = vpop.f32.mrb[0].mxu0
  %v1284 = vadd.f32 %v1209, %v1283
  %v1285 = vpop.f32.mrb[0].mxu0
  %1286 = vdwg.mxu0
  %v1287 = vadd.f32 %v1284, %v465
  %v1288 = vxor.u32 %v1287, 2147483648
  %v1289 = vmul.f32 %v1288, 1.442695
  %v1290 = vpow.pop %v1289
  %v1291 = vadd.f32 %v1290, 1.0
  %v1292 = vrcp.pop %v1291
  %v1293 = vmul.f32 1.0, %v1292
  %v1294 = vmul.f32 %v1293, 2.0
  %v1295 = vsub.f32 %v1294, 1.0
  %v1296 = vmul.f32 %v1293, %v1034
  %1298 = vrot.lane.b32.xlu0 %v1295, 64
  %v1299 = vpop.permute.xlu0 %1298
  %v1301 = vmul.f32 %v1293, %v1299
  %1303 = vrot.lane.b32.xlu0 %v1301, 32
  %v1304 = vpop.permute.xlu0 %1303
  %v1306 = vadd.f32 %v1296, %v1304
  %v1307 = vtanh.pop %v1306
  %1309 = vrot.lane.b32.xlu0 %v1307, 64
  %v1310 = vpop.permute.xlu0 %1309
  %v1312 = vmul.f32 %v1293, %v1310
  %1313 = vmatprep.subr.mxu0 0.0
  %1314 = vmatpush1.msra.mxu0 %v45
  %1315 = vmatprep.subr.mxu0 0.0
  %1316 = vmatpush1.msra.mxu0 %v46
  %1317 = vmatprep.subr.mxu0 0.0
  %1318 = vmatpush1.msra.mxu0 %v47
  %1319 = vmatprep.subr.mxu0 0.0
  %1320 = vmatpush1.msra.mxu0 %v48
  %1321 = vmatprep.subr.mxu0 0.0
  %1322 = vmatpush1.msra.mxu0 0.0
  %1323 = vmatprep.subr.mxu0 0.0
  %1324 = vmatpush1.msra.mxu0 0.0
  %1325 = vmatprep.subr.mxu0 0.0
  %1326 = vmatpush1.msra.mxu0 0.0
  %1327 = vmatprep.subr.mxu0 0.0
  %1328 = vmatpush1.msra.mxu0 0.0
  %1329 = vmatprep.subr.mxu0 0.0
  %1330 = vmatpush1.msra.mxu0 0.0
  %1331 = vmatprep.subr.mxu0 0.0
  %1332 = vmatpush1.msra.mxu0 0.0
  %1333 = vmatprep.subr.mxu0 0.0
  %1334 = vmatpush1.msra.mxu0 0.0
  %1335 = vmatprep.subr.mxu0 0.0
  %1336 = vmatpush1.msra.mxu0 0.0
  %1337 = vmatprep.subr.mxu0 0.0
  %1338 = vmatpush1.msra.mxu0 0.0
  %1339 = vmatprep.subr.mxu0 0.0
  %1340 = vmatpush1.msra.mxu0 0.0
  %1341 = vmatprep.subr.mxu0 0.0
  %1342 = vmatpush1.msra.mxu0 0.0
  %1343 = vmatprep.subr.mxu0 0.0
  %1344 = vmatpush1.msra.mxu0 0.0
  %1345 = vmatprep.subr.mxu0 0.0
  %1346 = vmatpush1.msra.mxu0 0.0
  %1347 = vmatprep.subr.mxu0 0.0
  %1348 = vmatpush1.msra.mxu0 0.0
  %1349 = vmatprep.subr.mxu0 0.0
  %1350 = vmatpush1.msra.mxu0 0.0
  %1351 = vmatprep.subr.mxu0 0.0
  %1352 = vmatpush1.msra.mxu0 0.0
  %1353 = vmatprep.subr.mxu0 0.0
  %1354 = vmatpush1.msra.mxu0 0.0
  %1355 = vmatprep.subr.mxu0 0.0
  %1356 = vmatpush1.msra.mxu0 0.0
  %1357 = vmatprep.subr.mxu0 0.0
  %1358 = vmatpush1.msra.mxu0 0.0
  %1359 = vmatprep.subr.mxu0 0.0
  %1360 = vmatpush1.msra.mxu0 0.0
  %1361 = vmatprep.subr.mxu0 0.0
  %1362 = vmatpush1.msra.mxu0 0.0
  %1363 = vmatprep.subr.mxu0 0.0
  %1364 = vmatpush1.msra.mxu0 0.0
  %1365 = vmatprep.subr.mxu0 0.0
  %1366 = vmatpush1.msra.mxu0 0.0
  %1367 = vmatprep.subr.mxu0 0.0
  %1368 = vmatpush1.msra.mxu0 0.0
  %1369 = vmatprep.subr.mxu0 0.0
  %1370 = vmatpush1.msra.mxu0 0.0
  %1371 = vmatprep.subr.mxu0 0.0
  %1372 = vmatpush1.msra.mxu0 0.0
  %1373 = vmatprep.subr.mxu0 0.0
  %1374 = vmatpush1.msra.mxu0 0.0
  %1375 = vmatprep.subr.mxu0 0.0
  %1376 = vmatpush1.msra.mxu0 0.0
  %1377 = vmatprep.mubr.f32.mxu0 0.0
  %1378 = vmatmul.mubr.f32.gmra.mrb[0].mxu0 %v1215
  %v1379 = vpop.f32.mrb[0].mxu0
  %v1380 = vadd.f32 0.0, %v1379
  %v1381 = vpop.f32.mrb[0].mxu0
  %1382 = vdwg.mxu0
  %v1383 = vadd.f32 %v185, %v1380
  %v1384 = vxor.u32 %v1383, 2147483648
  %v1385 = vmul.f32 %v1384, 1.442695
  %v1386 = vpow.pop %v1385
  %v1387 = vadd.f32 %v1386, 1.0
  %v1388 = vrcp.pop %v1387
  %v1389 = vmul.f32 1.0, %v1388
  %v1390 = vmul.f32 %v1389, 2.0
  %v1391 = vsub.f32 %v1390, 1.0
  %v1392 = vmul.f32 %v1389, %v1130
  %1394 = vrot.lane.b32.xlu0 %v1391, 64
  %v1395 = vpop.permute.xlu0 %1394
  %v1397 = vmul.f32 %v1389, %v1395
  %1399 = vrot.lane.b32.xlu0 %v1397, 32
  %v1400 = vpop.permute.xlu0 %1399
  %v1402 = vadd.f32 %v1392, %v1400
  %v1403 = vtanh.pop %v1402
  %1405 = vrot.lane.b32.xlu0 %v1403, 64
  %v1406 = vpop.permute.xlu0 %1405
  %v1408 = vmul.f32 %v1389, %v1406
  %1410 = vrot.lane.b32.xlu0 %v1312, 32
  %v1411 = vpop.permute.xlu0 %1410
  %v1412 = vsel %vm209, %v1411, 0
  %1414 = vmatprep.subr.mxu0 0.0
  %1415 = vmatpush1.msra.mxu0 %v49
  %1416 = vmatprep.subr.mxu0 0.0
  %1417 = vmatpush1.msra.mxu0 %v50
  %1418 = vmatprep.subr.mxu0 0.0
  %1419 = vmatpush1.msra.mxu0 %v51
  %1420 = vmatprep.subr.mxu0 0.0
  %1421 = vmatpush1.msra.mxu0 %v52
  %1422 = vmatprep.subr.mxu0 0.0
  %1423 = vmatpush1.msra.mxu0 0.0
  %1424 = vmatprep.subr.mxu0 0.0
  %1425 = vmatpush1.msra.mxu0 0.0
  %1426 = vmatprep.subr.mxu0 0.0
  %1427 = vmatpush1.msra.mxu0 0.0
  %1428 = vmatprep.subr.mxu0 0.0
  %1429 = vmatpush1.msra.mxu0 0.0
  %1430 = vmatprep.subr.mxu0 0.0
  %1431 = vmatpush1.msra.mxu0 0.0
  %1432 = vmatprep.subr.mxu0 0.0
  %1433 = vmatpush1.msra.mxu0 0.0
  %1434 = vmatprep.subr.mxu0 0.0
  %1435 = vmatpush1.msra.mxu0 0.0
  %1436 = vmatprep.subr.mxu0 0.0
  %1437 = vmatpush1.msra.mxu0 0.0
  %1438 = vmatprep.subr.mxu0 0.0
  %1439 = vmatpush1.msra.mxu0 0.0
  %1440 = vmatprep.subr.mxu0 0.0
  %1441 = vmatpush1.msra.mxu0 0.0
  %1442 = vmatprep.subr.mxu0 0.0
  %1443 = vmatpush1.msra.mxu0 0.0
  %1444 = vmatprep.subr.mxu0 0.0
  %1445 = vmatpush1.msra.mxu0 0.0
  %1446 = vmatprep.subr.mxu0 0.0
  %1447 = vmatpush1.msra.mxu0 0.0
  %1448 = vmatprep.subr.mxu0 0.0
  %1449 = vmatpush1.msra.mxu0 0.0
  %1450 = vmatprep.subr.mxu0 0.0
  %1451 = vmatpush1.msra.mxu0 0.0
  %1452 = vmatprep.subr.mxu0 0.0
  %1453 = vmatpush1.msra.mxu0 0.0
  %1454 = vmatprep.subr.mxu0 0.0
  %1455 = vmatpush1.msra.mxu0 0.0
  %1456 = vmatprep.subr.mxu0 0.0
  %1457 = vmatpush1.msra.mxu0 0.0
  %1458 = vmatprep.subr.mxu0 0.0
  %1459 = vmatpush1.msra.mxu0 0.0
  %1460 = vmatprep.subr.mxu0 0.0
  %1461 = vmatpush1.msra.mxu0 0.0
  %1462 = vmatprep.subr.mxu0 0.0
  %1463 = vmatpush1.msra.mxu0 0.0
  %1464 = vmatprep.subr.mxu0 0.0
  %1465 = vmatpush1.msra.mxu0 0.0
  %1466 = vmatprep.subr.mxu0 0.0
  %1467 = vmatpush1.msra.mxu0 0.0
  %1468 = vmatprep.subr.mxu0 0.0
  %1469 = vmatpush1.msra.mxu0 0.0
  %1470 = vmatprep.subr.mxu0 0.0
  %1471 = vmatpush1.msra.mxu0 0.0
  %1472 = vmatprep.subr.mxu0 0.0
  %1473 = vmatpush1.msra.mxu0 0.0
  %1474 = vmatprep.subr.mxu0 0.0
  %1475 = vmatpush1.msra.mxu0 0.0
  %1476 = vmatprep.subr.mxu0 0.0
  %1477 = vmatpush1.msra.mxu0 0.0
  %1478 = vmatprep.mubr.f32.mxu0 0.0
  %1479 = vmatmul.mubr.f32.gmra.mrb[0].mxu0 %v1412
  %v1480 = vpop.f32.mrb[0].mxu0
  %v1481 = vadd.f32 0.0, %v1480
  %v1482 = vpop.f32.mrb[0].mxu0
  %1483 = vdwg.mxu0
  %1485 = vrot.lane.b32.xlu0 %v1408, 32
  %v1486 = vpop.permute.xlu0 %1485
  %v1487 = vsel %vm209, %v1486, 0
  %1489 = vmatprep.subr.mxu0 0.0
  %1490 = vmatpush1.msra.mxu0 %v41
  %1491 = vmatprep.subr.mxu0 0.0
  %1492 = vmatpush1.msra.mxu0 %v42
  %1493 = vmatprep.subr.mxu0 0.0
  %1494 = vmatpush1.msra.mxu0 %v43
  %1495 = vmatprep.subr.mxu0 0.0
  %1496 = vmatpush1.msra.mxu0 %v44
  %1497 = vmatprep.subr.mxu0 0.0
  %1498 = vmatpush1.msra.mxu0 0.0
  %1499 = vmatprep.subr.mxu0 0.0
  %1500 = vmatpush1.msra.mxu0 0.0
  %1501 = vmatprep.subr.mxu0 0.0
  %1502 = vmatpush1.msra.mxu0 0.0
  %1503 = vmatprep.subr.mxu0 0.0
  %1504 = vmatpush1.msra.mxu0 0.0
  %1505 = vmatprep.subr.mxu0 0.0
  %1506 = vmatpush1.msra.mxu0 0.0
  %1507 = vmatprep.subr.mxu0 0.0
  %1508 = vmatpush1.msra.mxu0 0.0
  %1509 = vmatprep.subr.mxu0 0.0
  %1510 = vmatpush1.msra.mxu0 0.0
  %1511 = vmatprep.subr.mxu0 0.0
  %1512 = vmatpush1.msra.mxu0 0.0
  %1513 = vmatprep.subr.mxu0 0.0
  %1514 = vmatpush1.msra.mxu0 0.0
  %1515 = vmatprep.subr.mxu0 0.0
  %1516 = vmatpush1.msra.mxu0 0.0
  %1517 = vmatprep.subr.mxu0 0.0
  %1518 = vmatpush1.msra.mxu0 0.0
  %1519 = vmatprep.subr.mxu0 0.0
  %1520 = vmatpush1.msra.mxu0 0.0
  %1521 = vmatprep.subr.mxu0 0.0
  %1522 = vmatpush1.msra.mxu0 0.0
  %1523 = vmatprep.subr.mxu0 0.0
  %1524 = vmatpush1.msra.mxu0 0.0
  %1525 = vmatprep.subr.mxu0 0.0
  %1526 = vmatpush1.msra.mxu0 0.0
  %1527 = vmatprep.subr.mxu0 0.0
  %1528 = vmatpush1.msra.mxu0 0.0
  %1529 = vmatprep.subr.mxu0 0.0
  %1530 = vmatpush1.msra.mxu0 0.0
  %1531 = vmatprep.subr.mxu0 0.0
  %1532 = vmatpush1.msra.mxu0 0.0
  %1533 = vmatprep.subr.mxu0 0.0
  %1534 = vmatpush1.msra.mxu0 0.0
  %1535 = vmatprep.subr.mxu0 0.0
  %1536 = vmatpush1.msra.mxu0 0.0
  %1537 = vmatprep.subr.mxu0 0.0
  %1538 = vmatpush1.msra.mxu0 0.0
  %1539 = vmatprep.subr.mxu0 0.0
  %1540 = vmatpush1.msra.mxu0 0.0
  %1541 = vmatprep.subr.mxu0 0.0
  %1542 = vmatpush1.msra.mxu0 0.0
  %1543 = vmatprep.subr.mxu0 0.0
  %1544 = vmatpush1.msra.mxu0 0.0
  %1545 = vmatprep.subr.mxu0 0.0
  %1546 = vmatpush1.msra.mxu0 0.0
  %1547 = vmatprep.subr.mxu0 0.0
  %1548 = vmatpush1.msra.mxu0 0.0
  %1549 = vmatprep.subr.mxu0 0.0
  %1550 = vmatpush1.msra.mxu0 0.0
  %1551 = vmatprep.subr.mxu0 0.0
  %1552 = vmatpush1.msra.mxu0 0.0
  %1553 = vmatprep.mubr.f32.mxu0 0.0
  %1554 = vmatmul.mubr.f32.gmra.mrb[0].mxu0 %v1487
  %v1555 = vpop.f32.mrb[0].mxu0
  %v1556 = vadd.f32 %v1481, %v1555
  %v1557 = vpop.f32.mrb[0].mxu0
  %1558 = vdwg.mxu0
  %v1559 = vadd.f32 %v1556, %v465
  %v1560 = vxor.u32 %v1559, 2147483648
  %v1561 = vmul.f32 %v1560, 1.442695
  %v1562 = vpow.pop %v1561
  %v1563 = vadd.f32 %v1562, 1.0
  %v1564 = vrcp.pop %v1563
  %v1565 = vmul.f32 1.0, %v1564
  %v1566 = vmul.f32 %v1565, 2.0
  %v1567 = vsub.f32 %v1566, 1.0
  %v1568 = vmul.f32 %v1565, %v1306
  %1570 = vrot.lane.b32.xlu0 %v1567, 64
  %v1571 = vpop.permute.xlu0 %1570
  %v1573 = vmul.f32 %v1565, %v1571
  %1575 = vrot.lane.b32.xlu0 %v1573, 32
  %v1576 = vpop.permute.xlu0 %1575
  %v1578 = vadd.f32 %v1568, %v1576
  %v1579 = vtanh.pop %v1578
  %1581 = vrot.lane.b32.xlu0 %v1579, 64
  %v1582 = vpop.permute.xlu0 %1581
  %v1584 = vmul.f32 %v1565, %v1582
  %1585 = vmatprep.subr.mxu0 0.0
  %1586 = vmatpush1.msra.mxu0 %v45
  %1587 = vmatprep.subr.mxu0 0.0
  %1588 = vmatpush1.msra.mxu0 %v46
  %1589 = vmatprep.subr.mxu0 0.0
  %1590 = vmatpush1.msra.mxu0 %v47
  %1591 = vmatprep.subr.mxu0 0.0
  %1592 = vmatpush1.msra.mxu0 %v48
  %1593 = vmatprep.subr.mxu0 0.0
  %1594 = vmatpush1.msra.mxu0 0.0
  %1595 = vmatprep.subr.mxu0 0.0
  %1596 = vmatpush1.msra.mxu0 0.0
  %1597 = vmatprep.subr.mxu0 0.0
  %1598 = vmatpush1.msra.mxu0 0.0
  %1599 = vmatprep.subr.mxu0 0.0
  %1600 = vmatpush1.msra.mxu0 0.0
  %1601 = vmatprep.subr.mxu0 0.0
  %1602 = vmatpush1.msra.mxu0 0.0
  %1603 = vmatprep.subr.mxu0 0.0
  %1604 = vmatpush1.msra.mxu0 0.0
  %1605 = vmatprep.subr.mxu0 0.0
  %1606 = vmatpush1.msra.mxu0 0.0
  %1607 = vmatprep.subr.mxu0 0.0
  %1608 = vmatpush1.msra.mxu0 0.0
  %1609 = vmatprep.subr.mxu0 0.0
  %1610 = vmatpush1.msra.mxu0 0.0
  %1611 = vmatprep.subr.mxu0 0.0
  %1612 = vmatpush1.msra.mxu0 0.0
  %1613 = vmatprep.subr.mxu0 0.0
  %1614 = vmatpush1.msra.mxu0 0.0
  %1615 = vmatprep.subr.mxu0 0.0
  %1616 = vmatpush1.msra.mxu0 0.0
  %1617 = vmatprep.subr.mxu0 0.0
  %1618 = vmatpush1.msra.mxu0 0.0
  %1619 = vmatprep.subr.mxu0 0.0
  %1620 = vmatpush1.msra.mxu0 0.0
  %1621 = vmatprep.subr.mxu0 0.0
  %1622 = vmatpush1.msra.mxu0 0.0
  %1623 = vmatprep.subr.mxu0 0.0
  %1624 = vmatpush1.msra.mxu0 0.0
  %1625 = vmatprep.subr.mxu0 0.0
  %1626 = vmatpush1.msra.mxu0 0.0
  %1627 = vmatprep.subr.mxu0 0.0
  %1628 = vmatpush1.msra.mxu0 0.0
  %1629 = vmatprep.subr.mxu0 0.0
  %1630 = vmatpush1.msra.mxu0 0.0
  %1631 = vmatprep.subr.mxu0 0.0
  %1632 = vmatpush1.msra.mxu0 0.0
  %1633 = vmatprep.subr.mxu0 0.0
  %1634 = vmatpush1.msra.mxu0 0.0
  %1635 = vmatprep.subr.mxu0 0.0
  %1636 = vmatpush1.msra.mxu0 0.0
  %1637 = vmatprep.subr.mxu0 0.0
  %1638 = vmatpush1.msra.mxu0 0.0
  %1639 = vmatprep.subr.mxu0 0.0
  %1640 = vmatpush1.msra.mxu0 0.0
  %1641 = vmatprep.subr.mxu0 0.0
  %1642 = vmatpush1.msra.mxu0 0.0
  %1643 = vmatprep.subr.mxu0 0.0
  %1644 = vmatpush1.msra.mxu0 0.0
  %1645 = vmatprep.subr.mxu0 0.0
  %1646 = vmatpush1.msra.mxu0 0.0
  %1647 = vmatprep.subr.mxu0 0.0
  %1648 = vmatpush1.msra.mxu0 0.0
  %1649 = vmatprep.mubr.f32.mxu0 0.0
  %1650 = vmatmul.mubr.f32.gmra.mrb[0].mxu0 %v1487
  %v1651 = vpop.f32.mrb[0].mxu0
  %v1652 = vadd.f32 0.0, %v1651
  %v1653 = vpop.f32.mrb[0].mxu0
  %1654 = vdwg.mxu0
  %v1655 = vadd.f32 %v190, %v1652
  %v1656 = vxor.u32 %v1655, 2147483648
  %v1657 = vmul.f32 %v1656, 1.442695
  %v1658 = vpow.pop %v1657
  %v1659 = vadd.f32 %v1658, 1.0
  %v1660 = vrcp.pop %v1659
  %v1661 = vmul.f32 1.0, %v1660
  %v1662 = vmul.f32 %v1661, 2.0
  %v1663 = vsub.f32 %v1662, 1.0
  %v1664 = vmul.f32 %v1661, %v1402
  %1666 = vrot.lane.b32.xlu0 %v1663, 64
  %v1667 = vpop.permute.xlu0 %1666
  %v1669 = vmul.f32 %v1661, %v1667
  %1671 = vrot.lane.b32.xlu0 %v1669, 32
  %v1672 = vpop.permute.xlu0 %1671
  %v1674 = vadd.f32 %v1664, %v1672
  %v1675 = vtanh.pop %v1674
  %1677 = vrot.lane.b32.xlu0 %v1675, 64
  %v1678 = vpop.permute.xlu0 %1677
  %v1680 = vmul.f32 %v1661, %v1678
  %1682 = vrot.lane.b32.xlu0 %v1584, 32
  %v1683 = vpop.permute.xlu0 %1682
  %v1684 = vsel %vm209, %v1683, 0
  %1686 = vmatprep.subr.mxu0 0.0
  %1687 = vmatpush1.msra.mxu0 %v49
  %1688 = vmatprep.subr.mxu0 0.0
  %1689 = vmatpush1.msra.mxu0 %v50
  %1690 = vmatprep.subr.mxu0 0.0
  %1691 = vmatpush1.msra.mxu0 %v51
  %1692 = vmatprep.subr.mxu0 0.0
  %1693 = vmatpush1.msra.mxu0 %v52
  %1694 = vmatprep.subr.mxu0 0.0
  %1695 = vmatpush1.msra.mxu0 0.0
  %1696 = vmatprep.subr.mxu0 0.0
  %1697 = vmatpush1.msra.mxu0 0.0
  %1698 = vmatprep.subr.mxu0 0.0
  %1699 = vmatpush1.msra.mxu0 0.0
  %1700 = vmatprep.subr.mxu0 0.0
  %1701 = vmatpush1.msra.mxu0 0.0
  %1702 = vmatprep.subr.mxu0 0.0
  %1703 = vmatpush1.msra.mxu0 0.0
  %1704 = vmatprep.subr.mxu0 0.0
  %1705 = vmatpush1.msra.mxu0 0.0
  %1706 = vmatprep.subr.mxu0 0.0
  %1707 = vmatpush1.msra.mxu0 0.0
  %1708 = vmatprep.subr.mxu0 0.0
  %1709 = vmatpush1.msra.mxu0 0.0
  %1710 = vmatprep.subr.mxu0 0.0
  %1711 = vmatpush1.msra.mxu0 0.0
  %1712 = vmatprep.subr.mxu0 0.0
  %1713 = vmatpush1.msra.mxu0 0.0
  %1714 = vmatprep.subr.mxu0 0.0
  %1715 = vmatpush1.msra.mxu0 0.0
  %1716 = vmatprep.subr.mxu0 0.0
  %1717 = vmatpush1.msra.mxu0 0.0
  %1718 = vmatprep.subr.mxu0 0.0
  %1719 = vmatpush1.msra.mxu0 0.0
  %1720 = vmatprep.subr.mxu0 0.0
  %1721 = vmatpush1.msra.mxu0 0.0
  %1722 = vmatprep.subr.mxu0 0.0
  %1723 = vmatpush1.msra.mxu0 0.0
  %1724 = vmatprep.subr.mxu0 0.0
  %1725 = vmatpush1.msra.mxu0 0.0
  %1726 = vmatprep.subr.mxu0 0.0
  %1727 = vmatpush1.msra.mxu0 0.0
  %1728 = vmatprep.subr.mxu0 0.0
  %1729 = vmatpush1.msra.mxu0 0.0
  %1730 = vmatprep.subr.mxu0 0.0
  %1731 = vmatpush1.msra.mxu0 0.0
  %1732 = vmatprep.subr.mxu0 0.0
  %1733 = vmatpush1.msra.mxu0 0.0
  %1734 = vmatprep.subr.mxu0 0.0
  %1735 = vmatpush1.msra.mxu0 0.0
  %1736 = vmatprep.subr.mxu0 0.0
  %1737 = vmatpush1.msra.mxu0 0.0
  %1738 = vmatprep.subr.mxu0 0.0
  %1739 = vmatpush1.msra.mxu0 0.0
  %1740 = vmatprep.subr.mxu0 0.0
  %1741 = vmatpush1.msra.mxu0 0.0
  %1742 = vmatprep.subr.mxu0 0.0
  %1743 = vmatpush1.msra.mxu0 0.0
  %1744 = vmatprep.subr.mxu0 0.0
  %1745 = vmatpush1.msra.mxu0 0.0
  %1746 = vmatprep.subr.mxu0 0.0
  %1747 = vmatpush1.msra.mxu0 0.0
  %1748 = vmatprep.subr.mxu0 0.0
  %1749 = vmatpush1.msra.mxu0 0.0
  %1750 = vmatprep.mubr.f32.mxu0 0.0
  %1751 = vmatmul.mubr.f32.gmra.mrb[0].mxu0 %v1684
  %v1752 = vpop.f32.mrb[0].mxu0
  %v1753 = vadd.f32 0.0, %v1752
  %v1754 = vpop.f32.mrb[0].mxu0
  %1755 = vdwg.mxu0
  %1757 = vrot.lane.b32.xlu0 %v1680, 32
  %v1758 = vpop.permute.xlu0 %1757
  %v1759 = vsel %vm209, %v1758, 0
  %1761 = vmatprep.subr.mxu0 0.0
  %1762 = vmatpush1.msra.mxu0 %v41
  %1763 = vmatprep.subr.mxu0 0.0
  %1764 = vmatpush1.msra.mxu0 %v42
  %1765 = vmatprep.subr.mxu0 0.0
  %1766 = vmatpush1.msra.mxu0 %v43
  %1767 = vmatprep.subr.mxu0 0.0
  %1768 = vmatpush1.msra.mxu0 %v44
  %1769 = vmatprep.subr.mxu0 0.0
  %1770 = vmatpush1.msra.mxu0 0.0
  %1771 = vmatprep.subr.mxu0 0.0
  %1772 = vmatpush1.msra.mxu0 0.0
  %1773 = vmatprep.subr.mxu0 0.0
  %1774 = vmatpush1.msra.mxu0 0.0
  %1775 = vmatprep.subr.mxu0 0.0
  %1776 = vmatpush1.msra.mxu0 0.0
  %1777 = vmatprep.subr.mxu0 0.0
  %1778 = vmatpush1.msra.mxu0 0.0
  %1779 = vmatprep.subr.mxu0 0.0
  %1780 = vmatpush1.msra.mxu0 0.0
  %1781 = vmatprep.subr.mxu0 0.0
  %1782 = vmatpush1.msra.mxu0 0.0
  %1783 = vmatprep.subr.mxu0 0.0
  %1784 = vmatpush1.msra.mxu0 0.0
  %1785 = vmatprep.subr.mxu0 0.0
  %1786 = vmatpush1.msra.mxu0 0.0
  %1787 = vmatprep.subr.mxu0 0.0
  %1788 = vmatpush1.msra.mxu0 0.0
  %1789 = vmatprep.subr.mxu0 0.0
  %1790 = vmatpush1.msra.mxu0 0.0
  %1791 = vmatprep.subr.mxu0 0.0
  %1792 = vmatpush1.msra.mxu0 0.0
  %1793 = vmatprep.subr.mxu0 0.0
  %1794 = vmatpush1.msra.mxu0 0.0
  %1795 = vmatprep.subr.mxu0 0.0
  %1796 = vmatpush1.msra.mxu0 0.0
  %1797 = vmatprep.subr.mxu0 0.0
  %1798 = vmatpush1.msra.mxu0 0.0
  %1799 = vmatprep.subr.mxu0 0.0
  %1800 = vmatpush1.msra.mxu0 0.0
  %1801 = vmatprep.subr.mxu0 0.0
  %1802 = vmatpush1.msra.mxu0 0.0
  %1803 = vmatprep.subr.mxu0 0.0
  %1804 = vmatpush1.msra.mxu0 0.0
  %1805 = vmatprep.subr.mxu0 0.0
  %1806 = vmatpush1.msra.mxu0 0.0
  %1807 = vmatprep.subr.mxu0 0.0
  %1808 = vmatpush1.msra.mxu0 0.0
  %1809 = vmatprep.subr.mxu0 0.0
  %1810 = vmatpush1.msra.mxu0 0.0
  %1811 = vmatprep.subr.mxu0 0.0
  %1812 = vmatpush1.msra.mxu0 0.0
  %1813 = vmatprep.subr.mxu0 0.0
  %1814 = vmatpush1.msra.mxu0 0.0
  %1815 = vmatprep.subr.mxu0 0.0
  %1816 = vmatpush1.msra.mxu0 0.0
  %1817 = vmatprep.subr.mxu0 0.0
  %1818 = vmatpush1.msra.mxu0 0.0
  %1819 = vmatprep.subr.mxu0 0.0
  %1820 = vmatpush1.msra.mxu0 0.0
  %1821 = vmatprep.subr.mxu0 0.0
  %1822 = vmatpush1.msra.mxu0 0.0
  %1823 = vmatprep.subr.mxu0 0.0
  %1824 = vmatpush1.msra.mxu0 0.0
  %1825 = vmatprep.mubr.f32.mxu0 0.0
  %1826 = vmatmul.mubr.f32.gmra.mrb[0].mxu0 %v1759
  %v1827 = vpop.f32.mrb[0].mxu0
  %v1828 = vadd.f32 %v1753, %v1827
  %v1829 = vpop.f32.mrb[0].mxu0
  %1830 = vdwg.mxu0
  %v1831 = vadd.f32 %v1828, %v465
  %v1832 = vxor.u32 %v1831, 2147483648
  %v1833 = vmul.f32 %v1832, 1.442695
  %v1834 = vpow.pop %v1833
  %v1835 = vadd.f32 %v1834, 1.0
  %v1836 = vrcp.pop %v1835
  %v1837 = vmul.f32 1.0, %v1836
  %v1838 = vmul.f32 %v1837, 2.0
  %v1839 = vsub.f32 %v1838, 1.0
  %v1840 = vmul.f32 %v1837, %v1578
  %1842 = vrot.lane.b32.xlu0 %v1839, 64
  %v1843 = vpop.permute.xlu0 %1842
  %v1845 = vmul.f32 %v1837, %v1843
  %1847 = vrot.lane.b32.xlu0 %v1845, 32
  %v1848 = vpop.permute.xlu0 %1847
  %v1850 = vadd.f32 %v1840, %v1848
  %v1851 = vtanh.pop %v1850
  %1853 = vrot.lane.b32.xlu0 %v1851, 64
  %v1854 = vpop.permute.xlu0 %1853
  %v1856 = vmul.f32 %v1837, %v1854
  %1857 = vmatprep.subr.mxu0 0.0
  %1858 = vmatpush1.msra.mxu0 %v45
  %1859 = vmatprep.subr.mxu0 0.0
  %1860 = vmatpush1.msra.mxu0 %v46
  %1861 = vmatprep.subr.mxu0 0.0
  %1862 = vmatpush1.msra.mxu0 %v47
  %1863 = vmatprep.subr.mxu0 0.0
  %1864 = vmatpush1.msra.mxu0 %v48
  %1865 = vmatprep.subr.mxu0 0.0
  %1866 = vmatpush1.msra.mxu0 0.0
  %1867 = vmatprep.subr.mxu0 0.0
  %1868 = vmatpush1.msra.mxu0 0.0
  %1869 = vmatprep.subr.mxu0 0.0
  %1870 = vmatpush1.msra.mxu0 0.0
  %1871 = vmatprep.subr.mxu0 0.0
  %1872 = vmatpush1.msra.mxu0 0.0
  %1873 = vmatprep.subr.mxu0 0.0
  %1874 = vmatpush1.msra.mxu0 0.0
  %1875 = vmatprep.subr.mxu0 0.0
  %1876 = vmatpush1.msra.mxu0 0.0
  %1877 = vmatprep.subr.mxu0 0.0
  %1878 = vmatpush1.msra.mxu0 0.0
  %1879 = vmatprep.subr.mxu0 0.0
  %1880 = vmatpush1.msra.mxu0 0.0
  %1881 = vmatprep.subr.mxu0 0.0
  %1882 = vmatpush1.msra.mxu0 0.0
  %1883 = vmatprep.subr.mxu0 0.0
  %1884 = vmatpush1.msra.mxu0 0.0
  %1885 = vmatprep.subr.mxu0 0.0
  %1886 = vmatpush1.msra.mxu0 0.0
  %1887 = vmatprep.subr.mxu0 0.0
  %1888 = vmatpush1.msra.mxu0 0.0
  %1889 = vmatprep.subr.mxu0 0.0
  %1890 = vmatpush1.msra.mxu0 0.0
  %1891 = vmatprep.subr.mxu0 0.0
  %1892 = vmatpush1.msra.mxu0 0.0
  %1893 = vmatprep.subr.mxu0 0.0
  %1894 = vmatpush1.msra.mxu0 0.0
  %1895 = vmatprep.subr.mxu0 0.0
  %1896 = vmatpush1.msra.mxu0 0.0
  %1897 = vmatprep.subr.mxu0 0.0
  %1898 = vmatpush1.msra.mxu0 0.0
  %1899 = vmatprep.subr.mxu0 0.0
  %1900 = vmatpush1.msra.mxu0 0.0
  %1901 = vmatprep.subr.mxu0 0.0
  %1902 = vmatpush1.msra.mxu0 0.0
  %1903 = vmatprep.subr.mxu0 0.0
  %1904 = vmatpush1.msra.mxu0 0.0
  %1905 = vmatprep.subr.mxu0 0.0
  %1906 = vmatpush1.msra.mxu0 0.0
  %1907 = vmatprep.subr.mxu0 0.0
  %1908 = vmatpush1.msra.mxu0 0.0
  %1909 = vmatprep.subr.mxu0 0.0
  %1910 = vmatpush1.msra.mxu0 0.0
  %1911 = vmatprep.subr.mxu0 0.0
  %1912 = vmatpush1.msra.mxu0 0.0
  %1913 = vmatprep.subr.mxu0 0.0
  %1914 = vmatpush1.msra.mxu0 0.0
  %1915 = vmatprep.subr.mxu0 0.0
  %1916 = vmatpush1.msra.mxu0 0.0
  %1917 = vmatprep.subr.mxu0 0.0
  %1918 = vmatpush1.msra.mxu0 0.0
  %1919 = vmatprep.subr.mxu0 0.0
  %1920 = vmatpush1.msra.mxu0 0.0
  %1921 = vmatprep.mubr.f32.mxu0 0.0
  %1922 = vmatmul.mubr.f32.gmra.mrb[0].mxu0 %v1759
  %v1923 = vpop.f32.mrb[0].mxu0
  %v1924 = vadd.f32 0.0, %v1923
  %v1925 = vpop.f32.mrb[0].mxu0
  %1926 = vdwg.mxu0
  %v1927 = vadd.f32 %v195, %v1924
  %v1928 = vxor.u32 %v1927, 2147483648
  %v1929 = vmul.f32 %v1928, 1.442695
  %v1930 = vpow.pop %v1929
  %v1931 = vadd.f32 %v1930, 1.0
  %v1932 = vrcp.pop %v1931
  %v1933 = vmul.f32 1.0, %v1932
  %v1934 = vmul.f32 %v1933, 2.0
  %v1935 = vsub.f32 %v1934, 1.0
  %v1936 = vmul.f32 %v1933, %v1674
  %1938 = vrot.lane.b32.xlu0 %v1935, 64
  %v1939 = vpop.permute.xlu0 %1938
  %v1941 = vmul.f32 %v1933, %v1939
  %1943 = vrot.lane.b32.xlu0 %v1941, 32
  %v1944 = vpop.permute.xlu0 %1943
  %v1946 = vadd.f32 %v1936, %v1944
  %v1947 = vtanh.pop %v1946
  %1949 = vrot.lane.b32.xlu0 %v1947, 64
  %v1950 = vpop.permute.xlu0 %1949
  %v1952 = vmul.f32 %v1933, %v1950
  %1954 = vrot.lane.b32.xlu0 %v1856, 32
  %v1955 = vpop.permute.xlu0 %1954
  %v1956 = vsel %vm209, %v1955, 0
  %1958 = vmatprep.subr.mxu0 0.0
  %1959 = vmatpush1.msra.mxu0 %v49
  %1960 = vmatprep.subr.mxu0 0.0
  %1961 = vmatpush1.msra.mxu0 %v50
  %1962 = vmatprep.subr.mxu0 0.0
  %1963 = vmatpush1.msra.mxu0 %v51
  %1964 = vmatprep.subr.mxu0 0.0
  %1965 = vmatpush1.msra.mxu0 %v52
  %1966 = vmatprep.subr.mxu0 0.0
  %1967 = vmatpush1.msra.mxu0 0.0
  %1968 = vmatprep.subr.mxu0 0.0
  %1969 = vmatpush1.msra.mxu0 0.0
  %1970 = vmatprep.subr.mxu0 0.0
  %1971 = vmatpush1.msra.mxu0 0.0
  %1972 = vmatprep.subr.mxu0 0.0
  %1973 = vmatpush1.msra.mxu0 0.0
  %1974 = vmatprep.subr.mxu0 0.0
  %1975 = vmatpush1.msra.mxu0 0.0
  %1976 = vmatprep.subr.mxu0 0.0
  %1977 = vmatpush1.msra.mxu0 0.0
  %1978 = vmatprep.subr.mxu0 0.0
  %1979 = vmatpush1.msra.mxu0 0.0
  %1980 = vmatprep.subr.mxu0 0.0
  %1981 = vmatpush1.msra.mxu0 0.0
  %1982 = vmatprep.subr.mxu0 0.0
  %1983 = vmatpush1.msra.mxu0 0.0
  %1984 = vmatprep.subr.mxu0 0.0
  %1985 = vmatpush1.msra.mxu0 0.0
  %1986 = vmatprep.subr.mxu0 0.0
  %1987 = vmatpush1.msra.mxu0 0.0
  %1988 = vmatprep.subr.mxu0 0.0
  %1989 = vmatpush1.msra.mxu0 0.0
  %1990 = vmatprep.subr.mxu0 0.0
  %1991 = vmatpush1.msra.mxu0 0.0
  %1992 = vmatprep.subr.mxu0 0.0
  %1993 = vmatpush1.msra.mxu0 0.0
  %1994 = vmatprep.subr.mxu0 0.0
  %1995 = vmatpush1.msra.mxu0 0.0
  %1996 = vmatprep.subr.mxu0 0.0
  %1997 = vmatpush1.msra.mxu0 0.0
  %1998 = vmatprep.subr.mxu0 0.0
  %1999 = vmatpush1.msra.mxu0 0.0
  %2000 = vmatprep.subr.mxu0 0.0
  %2001 = vmatpush1.msra.mxu0 0.0
  %2002 = vmatprep.subr.mxu0 0.0
  %2003 = vmatpush1.msra.mxu0 0.0
  %2004 = vmatprep.subr.mxu0 0.0
  %2005 = vmatpush1.msra.mxu0 0.0
  %2006 = vmatprep.subr.mxu0 0.0
  %2007 = vmatpush1.msra.mxu0 0.0
  %2008 = vmatprep.subr.mxu0 0.0
  %2009 = vmatpush1.msra.mxu0 0.0
  %2010 = vmatprep.subr.mxu0 0.0
  %2011 = vmatpush1.msra.mxu0 0.0
  %2012 = vmatprep.subr.mxu0 0.0
  %2013 = vmatpush1.msra.mxu0 0.0
  %2014 = vmatprep.subr.mxu0 0.0
  %2015 = vmatpush1.msra.mxu0 0.0
  %2016 = vmatprep.subr.mxu0 0.0
  %2017 = vmatpush1.msra.mxu0 0.0
  %2018 = vmatprep.subr.mxu0 0.0
  %2019 = vmatpush1.msra.mxu0 0.0
  %2020 = vmatprep.subr.mxu0 0.0
  %2021 = vmatpush1.msra.mxu0 0.0
  %2022 = vmatprep.mubr.f32.mxu0 0.0
  %2023 = vmatmul.mubr.f32.gmra.mrb[0].mxu0 %v1956
  %v2024 = vpop.f32.mrb[0].mxu0
  %v2025 = vadd.f32 0.0, %v2024
  %v2026 = vpop.f32.mrb[0].mxu0
  %2027 = vdwg.mxu0
  %2029 = vrot.lane.b32.xlu0 %v1952, 32
  %v2030 = vpop.permute.xlu0 %2029
  %v2031 = vsel %vm209, %v2030, 0
  %2033 = vmatprep.subr.mxu0 0.0
  %2034 = vmatpush1.msra.mxu0 %v41
  %2035 = vmatprep.subr.mxu0 0.0
  %2036 = vmatpush1.msra.mxu0 %v42
  %2037 = vmatprep.subr.mxu0 0.0
  %2038 = vmatpush1.msra.mxu0 %v43
  %2039 = vmatprep.subr.mxu0 0.0
  %2040 = vmatpush1.msra.mxu0 %v44
  %2041 = vmatprep.subr.mxu0 0.0
  %2042 = vmatpush1.msra.mxu0 0.0
  %2043 = vmatprep.subr.mxu0 0.0
  %2044 = vmatpush1.msra.mxu0 0.0
  %2045 = vmatprep.subr.mxu0 0.0
  %2046 = vmatpush1.msra.mxu0 0.0
  %2047 = vmatprep.subr.mxu0 0.0
  %2048 = vmatpush1.msra.mxu0 0.0
  %2049 = vmatprep.subr.mxu0 0.0
  %2050 = vmatpush1.msra.mxu0 0.0
  %2051 = vmatprep.subr.mxu0 0.0
  %2052 = vmatpush1.msra.mxu0 0.0
  %2053 = vmatprep.subr.mxu0 0.0
  %2054 = vmatpush1.msra.mxu0 0.0
  %2055 = vmatprep.subr.mxu0 0.0
  %2056 = vmatpush1.msra.mxu0 0.0
  %2057 = vmatprep.subr.mxu0 0.0
  %2058 = vmatpush1.msra.mxu0 0.0
  %2059 = vmatprep.subr.mxu0 0.0
  %2060 = vmatpush1.msra.mxu0 0.0
  %2061 = vmatprep.subr.mxu0 0.0
  %2062 = vmatpush1.msra.mxu0 0.0
  %2063 = vmatprep.subr.mxu0 0.0
  %2064 = vmatpush1.msra.mxu0 0.0
  %2065 = vmatprep.subr.mxu0 0.0
  %2066 = vmatpush1.msra.mxu0 0.0
  %2067 = vmatprep.subr.mxu0 0.0
  %2068 = vmatpush1.msra.mxu0 0.0
  %2069 = vmatprep.subr.mxu0 0.0
  %2070 = vmatpush1.msra.mxu0 0.0
  %2071 = vmatprep.subr.mxu0 0.0
  %2072 = vmatpush1.msra.mxu0 0.0
  %2073 = vmatprep.subr.mxu0 0.0
  %2074 = vmatpush1.msra.mxu0 0.0
  %2075 = vmatprep.subr.mxu0 0.0
  %2076 = vmatpush1.msra.mxu0 0.0
  %2077 = vmatprep.subr.mxu0 0.0
  %2078 = vmatpush1.msra.mxu0 0.0
  %2079 = vmatprep.subr.mxu0 0.0
  %2080 = vmatpush1.msra.mxu0 0.0
  %2081 = vmatprep.subr.mxu0 0.0
  %2082 = vmatpush1.msra.mxu0 0.0
  %2083 = vmatprep.subr.mxu0 0.0
  %2084 = vmatpush1.msra.mxu0 0.0
  %2085 = vmatprep.subr.mxu0 0.0
  %2086 = vmatpush1.msra.mxu0 0.0
  %2087 = vmatprep.subr.mxu0 0.0
  %2088 = vmatpush1.msra.mxu0 0.0
  %2089 = vmatprep.subr.mxu0 0.0
  %2090 = vmatpush1.msra.mxu0 0.0
  %2091 = vmatprep.subr.mxu0 0.0
  %2092 = vmatpush1.msra.mxu0 0.0
  %2093 = vmatprep.subr.mxu0 0.0
  %2094 = vmatpush1.msra.mxu0 0.0
  %2095 = vmatprep.subr.mxu0 0.0
  %2096 = vmatpush1.msra.mxu0 0.0
  %2097 = vmatprep.mubr.f32.mxu0 0.0
  %2098 = vmatmul.mubr.f32.gmra.mrb[0].mxu0 %v2031
  %v2099 = vpop.f32.mrb[0].mxu0
  %v2100 = vadd.f32 %v2025, %v2099
  %v2101 = vpop.f32.mrb[0].mxu0
  %2102 = vdwg.mxu0
  %v2103 = vadd.f32 %v2100, %v465
  %v2104 = vxor.u32 %v2103, 2147483648
  %v2105 = vmul.f32 %v2104, 1.442695
  %v2106 = vpow.pop %v2105
  %v2107 = vadd.f32 %v2106, 1.0
  %v2108 = vrcp.pop %v2107
  %v2109 = vmul.f32 1.0, %v2108
  %v2110 = vmul.f32 %v2109, 2.0
  %v2111 = vsub.f32 %v2110, 1.0
  %v2112 = vmul.f32 %v2109, %v1850
  %2114 = vrot.lane.b32.xlu0 %v2111, 64
  %v2115 = vpop.permute.xlu0 %2114
  %v2117 = vmul.f32 %v2109, %v2115
  %2119 = vrot.lane.b32.xlu0 %v2117, 32
  %v2120 = vpop.permute.xlu0 %2119
  %v2122 = vadd.f32 %v2112, %v2120
  %v2123 = vtanh.pop %v2122
  %2125 = vrot.lane.b32.xlu0 %v2123, 64
  %v2126 = vpop.permute.xlu0 %2125
  %v2128 = vmul.f32 %v2109, %v2126
  %2129 = vmatprep.subr.mxu0 0.0
  %2130 = vmatpush1.msra.mxu0 %v45
  %2131 = vmatprep.subr.mxu0 0.0
  %2132 = vmatpush1.msra.mxu0 %v46
  %2133 = vmatprep.subr.mxu0 0.0
  %2134 = vmatpush1.msra.mxu0 %v47
  %2135 = vmatprep.subr.mxu0 0.0
  %2136 = vmatpush1.msra.mxu0 %v48
  %2137 = vmatprep.subr.mxu0 0.0
  %2138 = vmatpush1.msra.mxu0 0.0
  %2139 = vmatprep.subr.mxu0 0.0
  %2140 = vmatpush1.msra.mxu0 0.0
  %2141 = vmatprep.subr.mxu0 0.0
  %2142 = vmatpush1.msra.mxu0 0.0
  %2143 = vmatprep.subr.mxu0 0.0
  %2144 = vmatpush1.msra.mxu0 0.0
  %2145 = vmatprep.subr.mxu0 0.0
  %2146 = vmatpush1.msra.mxu0 0.0
  %2147 = vmatprep.subr.mxu0 0.0
  %2148 = vmatpush1.msra.mxu0 0.0
  %2149 = vmatprep.subr.mxu0 0.0
  %2150 = vmatpush1.msra.mxu0 0.0
  %2151 = vmatprep.subr.mxu0 0.0
  %2152 = vmatpush1.msra.mxu0 0.0
  %2153 = vmatprep.subr.mxu0 0.0
  %2154 = vmatpush1.msra.mxu0 0.0
  %2155 = vmatprep.subr.mxu0 0.0
  %2156 = vmatpush1.msra.mxu0 0.0
  %2157 = vmatprep.subr.mxu0 0.0
  %2158 = vmatpush1.msra.mxu0 0.0
  %2159 = vmatprep.subr.mxu0 0.0
  %2160 = vmatpush1.msra.mxu0 0.0
  %2161 = vmatprep.subr.mxu0 0.0
  %2162 = vmatpush1.msra.mxu0 0.0
  %2163 = vmatprep.subr.mxu0 0.0
  %2164 = vmatpush1.msra.mxu0 0.0
  %2165 = vmatprep.subr.mxu0 0.0
  %2166 = vmatpush1.msra.mxu0 0.0
  %2167 = vmatprep.subr.mxu0 0.0
  %2168 = vmatpush1.msra.mxu0 0.0
  %2169 = vmatprep.subr.mxu0 0.0
  %2170 = vmatpush1.msra.mxu0 0.0
  %2171 = vmatprep.subr.mxu0 0.0
  %2172 = vmatpush1.msra.mxu0 0.0
  %2173 = vmatprep.subr.mxu0 0.0
  %2174 = vmatpush1.msra.mxu0 0.0
  %2175 = vmatprep.subr.mxu0 0.0
  %2176 = vmatpush1.msra.mxu0 0.0
  %2177 = vmatprep.subr.mxu0 0.0
  %2178 = vmatpush1.msra.mxu0 0.0
  %2179 = vmatprep.subr.mxu0 0.0
  %2180 = vmatpush1.msra.mxu0 0.0
  %2181 = vmatprep.subr.mxu0 0.0
  %2182 = vmatpush1.msra.mxu0 0.0
  %2183 = vmatprep.subr.mxu0 0.0
  %2184 = vmatpush1.msra.mxu0 0.0
  %2185 = vmatprep.subr.mxu0 0.0
  %2186 = vmatpush1.msra.mxu0 0.0
  %2187 = vmatprep.subr.mxu0 0.0
  %2188 = vmatpush1.msra.mxu0 0.0
  %2189 = vmatprep.subr.mxu0 0.0
  %2190 = vmatpush1.msra.mxu0 0.0
  %2191 = vmatprep.subr.mxu0 0.0
  %2192 = vmatpush1.msra.mxu0 0.0
  %2193 = vmatprep.mubr.f32.mxu0 0.0
  %2194 = vmatmul.mubr.f32.gmra.mrb[0].mxu0 %v2031
  %v2195 = vpop.f32.mrb[0].mxu0
  %v2196 = vadd.f32 0.0, %v2195
  %v2197 = vpop.f32.mrb[0].mxu0
  %2198 = vdwg.mxu0
  %v2199 = vadd.f32 %v200, %v2196
  %v2200 = vxor.u32 %v2199, 2147483648
  %v2201 = vmul.f32 %v2200, 1.442695
  %v2202 = vpow.pop %v2201
  %v2203 = vadd.f32 %v2202, 1.0
  %v2204 = vrcp.pop %v2203
  %v2205 = vmul.f32 1.0, %v2204
  %v2206 = vmul.f32 %v2205, 2.0
  %v2207 = vsub.f32 %v2206, 1.0
  %v2208 = vmul.f32 %v2205, %v1946
  %2210 = vrot.lane.b32.xlu0 %v2207, 64
  %v2211 = vpop.permute.xlu0 %2210
  %v2213 = vmul.f32 %v2205, %v2211
  %2215 = vrot.lane.b32.xlu0 %v2213, 32
  %v2216 = vpop.permute.xlu0 %2215
  %v2218 = vadd.f32 %v2208, %v2216
  %v2219 = vtanh.pop %v2218
  %2221 = vrot.lane.b32.xlu0 %v2219, 64
  %v2222 = vpop.permute.xlu0 %2221
  %v2224 = vmul.f32 %v2205, %v2222
  %2226 = vrot.lane.b32.xlu0 %v2128, 32
  %v2227 = vpop.permute.xlu0 %2226
  %v2228 = vsel %vm209, %v2227, 0
  %2230 = vmatprep.subr.mxu0 0.0
  %2231 = vmatpush1.msra.mxu0 %v49
  %2232 = vmatprep.subr.mxu0 0.0
  %2233 = vmatpush1.msra.mxu0 %v50
  %2234 = vmatprep.subr.mxu0 0.0
  %2235 = vmatpush1.msra.mxu0 %v51
  %2236 = vmatprep.subr.mxu0 0.0
  %2237 = vmatpush1.msra.mxu0 %v52
  %2238 = vmatprep.subr.mxu0 0.0
  %2239 = vmatpush1.msra.mxu0 0.0
  %2240 = vmatprep.subr.mxu0 0.0
  %2241 = vmatpush1.msra.mxu0 0.0
  %2242 = vmatprep.subr.mxu0 0.0
  %2243 = vmatpush1.msra.mxu0 0.0
  %2244 = vmatprep.subr.mxu0 0.0
  %2245 = vmatpush1.msra.mxu0 0.0
  %2246 = vmatprep.subr.mxu0 0.0
  %2247 = vmatpush1.msra.mxu0 0.0
  %2248 = vmatprep.subr.mxu0 0.0
  %2249 = vmatpush1.msra.mxu0 0.0
  %2250 = vmatprep.subr.mxu0 0.0
  %2251 = vmatpush1.msra.mxu0 0.0
  %2252 = vmatprep.subr.mxu0 0.0
  %2253 = vmatpush1.msra.mxu0 0.0
  %2254 = vmatprep.subr.mxu0 0.0
  %2255 = vmatpush1.msra.mxu0 0.0
  %2256 = vmatprep.subr.mxu0 0.0
  %2257 = vmatpush1.msra.mxu0 0.0
  %2258 = vmatprep.subr.mxu0 0.0
  %2259 = vmatpush1.msra.mxu0 0.0
  %2260 = vmatprep.subr.mxu0 0.0
  %2261 = vmatpush1.msra.mxu0 0.0
  %2262 = vmatprep.subr.mxu0 0.0
  %2263 = vmatpush1.msra.mxu0 0.0
  %2264 = vmatprep.subr.mxu0 0.0
  %2265 = vmatpush1.msra.mxu0 0.0
  %2266 = vmatprep.subr.mxu0 0.0
  %2267 = vmatpush1.msra.mxu0 0.0
  %2268 = vmatprep.subr.mxu0 0.0
  %2269 = vmatpush1.msra.mxu0 0.0
  %2270 = vmatprep.subr.mxu0 0.0
  %2271 = vmatpush1.msra.mxu0 0.0
  %2272 = vmatprep.subr.mxu0 0.0
  %2273 = vmatpush1.msra.mxu0 0.0
  %2274 = vmatprep.subr.mxu0 0.0
  %2275 = vmatpush1.msra.mxu0 0.0
  %2276 = vmatprep.subr.mxu0 0.0
  %2277 = vmatpush1.msra.mxu0 0.0
  %2278 = vmatprep.subr.mxu0 0.0
  %2279 = vmatpush1.msra.mxu0 0.0
  %2280 = vmatprep.subr.mxu0 0.0
  %2281 = vmatpush1.msra.mxu0 0.0
  %2282 = vmatprep.subr.mxu0 0.0
  %2283 = vmatpush1.msra.mxu0 0.0
  %2284 = vmatprep.subr.mxu0 0.0
  %2285 = vmatpush1.msra.mxu0 0.0
  %2286 = vmatprep.subr.mxu0 0.0
  %2287 = vmatpush1.msra.mxu0 0.0
  %2288 = vmatprep.subr.mxu0 0.0
  %2289 = vmatpush1.msra.mxu0 0.0
  %2290 = vmatprep.subr.mxu0 0.0
  %2291 = vmatpush1.msra.mxu0 0.0
  %2292 = vmatprep.subr.mxu0 0.0
  %2293 = vmatpush1.msra.mxu0 0.0
  %2294 = vmatprep.mubr.f32.mxu0 0.0
  %2295 = vmatmul.mubr.f32.gmra.mrb[0].mxu0 %v2228
  %v2296 = vpop.f32.mrb[0].mxu0
  %v2297 = vadd.f32 0.0, %v2296
  %v2298 = vpop.f32.mrb[0].mxu0
  %2299 = vdwg.mxu0
  %2301 = vrot.lane.b32.xlu0 %v2224, 32
  %v2302 = vpop.permute.xlu0 %2301
  %v2303 = vsel %vm209, %v2302, 0
  %2305 = vmatprep.subr.mxu0 0.0
  %2306 = vmatpush1.msra.mxu0 %v41
  %2307 = vmatprep.subr.mxu0 0.0
  %2308 = vmatpush1.msra.mxu0 %v42
  %2309 = vmatprep.subr.mxu0 0.0
  %2310 = vmatpush1.msra.mxu0 %v43
  %2311 = vmatprep.subr.mxu0 0.0
  %2312 = vmatpush1.msra.mxu0 %v44
  %2313 = vmatprep.subr.mxu0 0.0
  %2314 = vmatpush1.msra.mxu0 0.0
  %2315 = vmatprep.subr.mxu0 0.0
  %2316 = vmatpush1.msra.mxu0 0.0
  %2317 = vmatprep.subr.mxu0 0.0
  %2318 = vmatpush1.msra.mxu0 0.0
  %2319 = vmatprep.subr.mxu0 0.0
  %2320 = vmatpush1.msra.mxu0 0.0
  %2321 = vmatprep.subr.mxu0 0.0
  %2322 = vmatpush1.msra.mxu0 0.0
  %2323 = vmatprep.subr.mxu0 0.0
  %2324 = vmatpush1.msra.mxu0 0.0
  %2325 = vmatprep.subr.mxu0 0.0
  %2326 = vmatpush1.msra.mxu0 0.0
  %2327 = vmatprep.subr.mxu0 0.0
  %2328 = vmatpush1.msra.mxu0 0.0
  %2329 = vmatprep.subr.mxu0 0.0
  %2330 = vmatpush1.msra.mxu0 0.0
  %2331 = vmatprep.subr.mxu0 0.0
  %2332 = vmatpush1.msra.mxu0 0.0
  %2333 = vmatprep.subr.mxu0 0.0
  %2334 = vmatpush1.msra.mxu0 0.0
  %2335 = vmatprep.subr.mxu0 0.0
  %2336 = vmatpush1.msra.mxu0 0.0
  %2337 = vmatprep.subr.mxu0 0.0
  %2338 = vmatpush1.msra.mxu0 0.0
  %2339 = vmatprep.subr.mxu0 0.0
  %2340 = vmatpush1.msra.mxu0 0.0
  %2341 = vmatprep.subr.mxu0 0.0
  %2342 = vmatpush1.msra.mxu0 0.0
  %2343 = vmatprep.subr.mxu0 0.0
  %2344 = vmatpush1.msra.mxu0 0.0
  %2345 = vmatprep.subr.mxu0 0.0
  %2346 = vmatpush1.msra.mxu0 0.0
  %2347 = vmatprep.subr.mxu0 0.0
  %2348 = vmatpush1.msra.mxu0 0.0
  %2349 = vmatprep.subr.mxu0 0.0
  %2350 = vmatpush1.msra.mxu0 0.0
  %2351 = vmatprep.subr.mxu0 0.0
  %2352 = vmatpush1.msra.mxu0 0.0
  %2353 = vmatprep.subr.mxu0 0.0
  %2354 = vmatpush1.msra.mxu0 0.0
  %2355 = vmatprep.subr.mxu0 0.0
  %2356 = vmatpush1.msra.mxu0 0.0
  %2357 = vmatprep.subr.mxu0 0.0
  %2358 = vmatpush1.msra.mxu0 0.0
  %2359 = vmatprep.subr.mxu0 0.0
  %2360 = vmatpush1.msra.mxu0 0.0
  %2361 = vmatprep.subr.mxu0 0.0
  %2362 = vmatpush1.msra.mxu0 0.0
  %2363 = vmatprep.subr.mxu0 0.0
  %2364 = vmatpush1.msra.mxu0 0.0
  %2365 = vmatprep.subr.mxu0 0.0
  %2366 = vmatpush1.msra.mxu0 0.0
  %2367 = vmatprep.subr.mxu0 0.0
  %2368 = vmatpush1.msra.mxu0 0.0
  %2369 = vmatprep.mubr.f32.mxu0 0.0
  %2370 = vmatmul.mubr.f32.gmra.mrb[0].mxu0 %v2303
  %v2371 = vpop.f32.mrb[0].mxu0
  %v2372 = vadd.f32 %v2297, %v2371
  %v2373 = vpop.f32.mrb[0].mxu0
  %2374 = vdwg.mxu0
  %v2375 = vadd.f32 %v2372, %v465
  %v2376 = vxor.u32 %v2375, 2147483648
  %v2377 = vmul.f32 %v2376, 1.442695
  %v2378 = vpow.pop %v2377
  %v2379 = vadd.f32 %v2378, 1.0
  %v2380 = vrcp.pop %v2379
  %v2381 = vmul.f32 1.0, %v2380
  %v2382 = vmul.f32 %v2381, 2.0
  %v2383 = vsub.f32 %v2382, 1.0
  %v2384 = vmul.f32 %v2381, %v2122
  %2386 = vrot.lane.b32.xlu0 %v2383, 64
  %v2387 = vpop.permute.xlu0 %2386
  %v2389 = vmul.f32 %v2381, %v2387
  %2391 = vrot.lane.b32.xlu0 %v2389, 32
  %v2392 = vpop.permute.xlu0 %2391
  %v2394 = vadd.f32 %v2384, %v2392
  %v2395 = vtanh.pop %v2394
  %2397 = vrot.lane.b32.xlu0 %v2395, 64
  %v2398 = vpop.permute.xlu0 %2397
  %v2400 = vmul.f32 %v2381, %v2398
  %v2401 = vld [vmem:[%s9] sm:$0xff]
  %v2402 = vld [vmem:[%s9 + $0x8] sm:$0xff]
  %v2403 = vld [vmem:[%s9 + $0x10] sm:$0xff]
  %v2404 = vld [vmem:[%s9 + $0x18] sm:$0xff]
  %v2405 = vld [vmem:[#allocation2] sm:$0x1]
  %v2407 = vlaneseq
  %v2408 = vshrl.u32 %v2407, 7
  %v2409 = vsub.s32 0, %v2408
  %v2410 = vrot.slane %v2405, %v2409
  %2413 = vrot.lane.b32.xlu0 %v2400, 32
  %v2414 = vpop.permute.xlu0 %2413
  %v2415 = vsel %vm209, %v2414, 0
  %2417 = vmatprep.subr.mxu0 0.0
  %2418 = vmatpush1.msra.mxu0 %v2401
  %2419 = vmatprep.subr.mxu0 0.0
  %2420 = vmatpush1.msra.mxu0 %v2402
  %2421 = vmatprep.subr.mxu0 0.0
  %2422 = vmatpush1.msra.mxu0 %v2403
  %2423 = vmatprep.subr.mxu0 0.0
  %2424 = vmatpush1.msra.mxu0 %v2404
  %2425 = vmatprep.subr.mxu0 0.0
  %2426 = vmatpush1.msra.mxu0 0.0
  %2427 = vmatprep.subr.mxu0 0.0
  %2428 = vmatpush1.msra.mxu0 0.0
  %2429 = vmatprep.subr.mxu0 0.0
  %2430 = vmatpush1.msra.mxu0 0.0
  %2431 = vmatprep.subr.mxu0 0.0
  %2432 = vmatpush1.msra.mxu0 0.0
  %2433 = vmatprep.subr.mxu0 0.0
  %2434 = vmatpush1.msra.mxu0 0.0
  %2435 = vmatprep.subr.mxu0 0.0
  %2436 = vmatpush1.msra.mxu0 0.0
  %2437 = vmatprep.subr.mxu0 0.0
  %2438 = vmatpush1.msra.mxu0 0.0
  %2439 = vmatprep.subr.mxu0 0.0
  %2440 = vmatpush1.msra.mxu0 0.0
  %2441 = vmatprep.subr.mxu0 0.0
  %2442 = vmatpush1.msra.mxu0 0.0
  %2443 = vmatprep.subr.mxu0 0.0
  %2444 = vmatpush1.msra.mxu0 0.0
  %2445 = vmatprep.subr.mxu0 0.0
  %2446 = vmatpush1.msra.mxu0 0.0
  %2447 = vmatprep.subr.mxu0 0.0
  %2448 = vmatpush1.msra.mxu0 0.0
  %2449 = vmatprep.subr.mxu0 0.0
  %2450 = vmatpush1.msra.mxu0 0.0
  %2451 = vmatprep.subr.mxu0 0.0
  %2452 = vmatpush1.msra.mxu0 0.0
  %2453 = vmatprep.subr.mxu0 0.0
  %2454 = vmatpush1.msra.mxu0 0.0
  %2455 = vmatprep.subr.mxu0 0.0
  %2456 = vmatpush1.msra.mxu0 0.0
  %2457 = vmatprep.subr.mxu0 0.0
  %2458 = vmatpush1.msra.mxu0 0.0
  %2459 = vmatprep.subr.mxu0 0.0
  %2460 = vmatpush1.msra.mxu0 0.0
  %2461 = vmatprep.subr.mxu0 0.0
  %2462 = vmatpush1.msra.mxu0 0.0
  %2463 = vmatprep.subr.mxu0 0.0
  %2464 = vmatpush1.msra.mxu0 0.0
  %2465 = vmatprep.subr.mxu0 0.0
  %2466 = vmatpush1.msra.mxu0 0.0
  %2467 = vmatprep.subr.mxu0 0.0
  %2468 = vmatpush1.msra.mxu0 0.0
  %2469 = vmatprep.subr.mxu0 0.0
  %2470 = vmatpush1.msra.mxu0 0.0
  %2471 = vmatprep.subr.mxu0 0.0
  %2472 = vmatpush1.msra.mxu0 0.0
  %2473 = vmatprep.subr.mxu0 0.0
  %2474 = vmatpush1.msra.mxu0 0.0
  %2475 = vmatprep.subr.mxu0 0.0
  %2476 = vmatpush1.msra.mxu0 0.0
  %2477 = vmatprep.subr.mxu0 0.0
  %2478 = vmatpush1.msra.mxu0 0.0
  %2479 = vmatprep.subr.mxu0 0.0
  %2480 = vmatpush1.msra.mxu0 0.0
  %2481 = vmatprep.mubr.f32.mxu0 0.0
  %2482 = vmatmul.mubr.f32.gmra.mrb[0].mxu0 %v2415
  %v2483 = vpop.f32.mrb[0].mxu0
  %v2484 = vadd.f32 %v2410, %v2483
  %v2485 = vpop.f32.mrb[0].mxu0
  %2486 = vdwg.mxu0
  %vm2487 = vcmask 7168
  %2488 = vst.msk [vmem:[%s11] sm:$0xff] %vm2487, %v2484
  // Predicated region
  $region46: #{lstm_forward.1} parent=0 // pred_check
    _
  $region47: #{lstm_forward.1} parent=0 // pred_check_branch
    %2490 = sbr.rel (0) target = $region49
  $region48: #{lstm_forward.1} parent=0 // pred_region
    _
  $region49: #{lstm_forward.1} parent=0 // pred_fallthru
    _
  // Predicated region
  $region50: #{lstm_forward.1} parent=0 // pred_check
    _
  $region51: #{lstm_forward.1} parent=0 // pred_check_branch
    %2492 = sbr.rel (0) target = $region53
  $region52: #{lstm_forward.1} parent=0 // pred_region
    _
  $region53: #{lstm_forward.1} parent=0 // pred_fallthru
    _

</llo_original>
